<compile_context>
chip_gen: v5e
topology: v5e:2x2
jax: 0.10.0
libtpu: 0.0.40
codegen_flags: <defaults>
</compile_context>

<pallas_src>
import numpy as np

import jax
import jax.numpy as jnp
from jax import lax
from jax.experimental import pallas as pl
from jax.experimental.pallas import tpu as pltpu


# ----------------------- host-side weight packing ---------------------------

def _build_structs(w_conv, hin, win, oh, ow, stride, dilation, pad_top, pad_left):
    """Build per-vertical-tap row-selection (S) and block-Toeplitz (T) matrices.

    w_conv: (Cout, Cin, kh, kw) direct-conv kernel (already flipped/swapped for
            transposed convs).  The layer then computes, on activations stored
            as A[y, x*Cin + ci]:   out = sum_i (S[i] @ A) @ T[i]
    """
    cout, cin, kh, kw = w_conv.shape
    sh, sw = stride
    dh, dw = dilation
    S = np.zeros((kh, oh, hin), np.float32)
    T = np.zeros((kh, win * cin, ow * cout), np.float32)
    for i in range(kh):
        for oy in range(oh):
            r = oy * sh + i - pad_top            # row in dilated+padded space
            if r >= 0 and r % dh == 0 and r // dh < hin:
                S[i, oy, r // dh] = 1.0
        for ox in range(ow):
            for xin in range(win):
                j = pad_left + xin * dw - ox * sw   # kernel col hitting input col xin
                if 0 <= j < kw:
                    T[i, xin * cin:(xin + 1) * cin,
                         ox * cout:(ox + 1) * cout] = w_conv[:, :, i, j].T
    return S, T


def _pack_conv(w_oihw, bias, hin, win, stride, padding):
    w = np.asarray(w_oihw, np.float32)
    cout, cin, kh, kw = w.shape
    sh, sw = stride
    ph, pw = padding
    oh = (hin + 2 * ph - kh) // sh + 1
    ow = (win + 2 * pw - kw) // sw + 1
    S, T = _build_structs(w, hin, win, oh, ow, stride=(sh, sw), dilation=(1, 1),
                          pad_top=ph, pad_left=pw)
    B = np.tile(np.asarray(bias, np.float32), ow).reshape(1, ow * cout)
    return (S, T, B), (oh, ow, cout)


def _pack_deconv(w_iohw, bias, hin, win, stride, padding, output_padding):
    wt = np.asarray(w_iohw, np.float32)           # (Cin, Cout, kh, kw)
    cin, cout, kh, kw = wt.shape
    sh, sw = stride
    ph, pw = padding
    oph, opw = output_padding
    oh = (hin - 1) * sh - 2 * ph + kh + oph
    ow = (win - 1) * sw - 2 * pw + kw + opw
    # equivalent direct conv: flipped kernel, swapped channels, dilated input
    w_conv = np.flip(wt, (2, 3)).transpose(1, 0, 2, 3)    # (Cout, Cin, kh, kw)
    S, T = _build_structs(w_conv, hin, win, oh, ow, stride=(1, 1), dilation=(sh, sw),
                          pad_top=kh - 1 - ph, pad_left=kw - 1 - pw)
    B = np.tile(np.asarray(bias, np.float32), ow).reshape(1, ow * cout)
    return (S, T, B), (oh, ow, cout)


def pack_params(params, input_hw=(32, 32)):
    """Repack PyTorch-layout weights into per-layer (S, T, bias_tiled) GEMM constants."""
    h, w = input_hw
    specs = [
        ("conv",   params["w1"],  params["b1"],
         dict(stride=(3, 3), padding=(1, 1))),
        ("conv",   params["w2"],  params["b2"],
         dict(stride=(2, 2), padding=(0, 0))),
        ("conv",   params["w3"],  params["b3"],
         dict(stride=(1, 1), padding=(0, 0))),
        ("deconv", params["wd1"], params["bd1"],
         dict(stride=(2, 2), padding=(1, 1), output_padding=(1, 1))),
        ("deconv", params["wd2"], params["bd2"],
         dict(stride=(3, 3), padding=(1, 2), output_padding=(0, 0))),
    ]
    layers = []
    cout = None
    for kind, wgt, bias, cfg in specs:
        if kind == "conv":
            (S, T, B), (h, w, cout) = _pack_conv(wgt, bias, h, w, **cfg)
        else:
            (S, T, B), (h, w, cout) = _pack_deconv(wgt, bias, h, w, **cfg)
        layers.append((jnp.asarray(S), jnp.asarray(T), jnp.asarray(B)))
    return layers, (h, w, cout)


# ------------------------------ Pallas kernel --------------------------------

_ACTS = ("relu", "none", "none", "relu", "tanh")


def _fused_ae_kernel(*refs):
    """Whole autoencoder forward for one batch item, entirely in VMEM."""
    x_ref, o_ref = refs[0], refs[-1]
    layer_refs = refs[1:-1]                      # (S, T, bias) per layer

    a = x_ref[0]                                 # (H, W*C) activation slab
    for li, act in enumerate(_ACTS):
        s_ref = layer_refs[3 * li + 0]
        t_ref = layer_refs[3 * li + 1]
        b_ref = layer_refs[3 * li + 2]
        kh = s_ref.shape[0]
        acc = None
        for i in range(kh):                      # static unroll over vertical taps
            rows = jnp.dot(s_ref[i], a, preferred_element_type=jnp.float32)
            part = jnp.dot(rows, t_ref[i], preferred_element_type=jnp.float32)
            acc = part if acc is None else acc + part
        acc = acc + b_ref[...]
        if act == "relu":
            a = jnp.maximum(acc, 0.0)
        elif act == "tanh":
            a = jnp.tanh(acc)
        else:
            a = acc
    o_ref[0] = a                                 # (OH, OW*Cout)


def make_forward(params, input_hw=(32, 32)):
    layers, (oh, ow, oc) = pack_params(params, input_hw)
    hin, win = input_hw
    cin = int(params["w1"].shape[1])

    const_inputs = []
    const_specs = []
    flops_i = 0
    for (S, T, B) in layers:
        const_inputs += [S, T, B]
        const_specs += [
            pl.BlockSpec(S.shape, lambda b: (0, 0, 0)),
            pl.BlockSpec(T.shape, lambda b: (0, 0, 0)),
            pl.BlockSpec(B.shape, lambda b: (0, 0)),
        ]
        kh_, oh_, hin_ = S.shape
        k_, n_ = T.shape[1], T.shape[2]
        flops_i += 2 * kh_ * (oh_ * hin_ * k_ + oh_ * k_ * n_)
    const_bytes = sum(int(a.size) * 4 for a in const_inputs)
    io_bytes_i = (hin * win * cin + oh * ow * oc) * 4

    @jax.jit
    def forward(x):
        n = x.shape[0]
        # one-time layout prep: NCHW -> (N, H, W*C) slab (channels fastest)
        x2d = jnp.transpose(x, (0, 2, 3, 1)).reshape(n, hin, win * cin)
        out2d = pl.pallas_call(
            _fused_ae_kernel,
            grid=(n,),
            in_specs=[pl.BlockSpec((1, hin, win * cin), lambda b: (b, 0, 0))]
                     + const_specs,
            out_specs=pl.BlockSpec((1, oh, ow * oc), lambda b: (b, 0, 0)),
            out_shape=jax.ShapeDtypeStruct((n, oh, ow * oc), jnp.float32),
            compiler_params=pltpu.CompilerParams(
                dimension_semantics=("parallel",),       # v7x: 2 TCs split batch
                vmem_limit_bytes=32 * 1024 * 1024,
            ),
            cost_estimate=pl.CostEstimate(
                flops=n * flops_i,
                transcendentals=n * oh * ow * oc,
                bytes_accessed=n * io_bytes_i + const_bytes,
            ),
        )(x2d, *const_inputs)
        # one-time layout restore: (N, OH, OW*C) -> NCHW
        return jnp.transpose(out2d.reshape(n, oh, ow, oc), (0, 3, 1, 2))

    return forward


# ------------------------------ params ---------------------------------------

def init_params(key):
    ks = jax.random.split(key, 10)
    s = 0.05
    return {
        # encoder (Conv2d weights: (Cout, Cin, kh, kw))
        "w1": jax.random.normal(ks[0], (32, 3, 5, 5), jnp.float32) * s,
        "b1": jax.random.normal(ks[1], (32,), jnp.float32) * s,
        "w2": jax.random.normal(ks[2], (16, 32, 3, 3), jnp.float32) * s,
        "b2": jax.random.normal(ks[3], (16,), jnp.float32) * s,
        "w3": jax.random.normal(ks[4], (6, 16, 3, 3), jnp.float32) * s,
        "b3": jax.random.normal(ks[5], (6,), jnp.float32) * s,
        # decoder (ConvTranspose2d weights: (Cin, Cout, kh, kw))
        "wd1": jax.random.normal(ks[6], (6, 8, 5, 5), jnp.float32) * s,
        "bd1": jax.random.normal(ks[7], (8,), jnp.float32) * s,
        "wd2": jax.random.normal(ks[8], (8, 3, 5, 5), jnp.float32) * s,
        "bd2": jax.random.normal(ks[9], (3,), jnp.float32) * s,
    }


# --------------------------- pure-JAX reference -------------------------------

def _ref_conv(x, w, b, stride, padding, lhs_dilation=(1, 1)):
    y = lax.conv_general_dilated(
        x, w, window_strides=stride, padding=padding,
        lhs_dilation=lhs_dilation,
        dimension_numbers=("NCHW", "OIHW", "NCHW"))
    return y + b[None, :, None, None]


def forward_ref(p, x):
    out = jax.nn.relu(_ref_conv(x, p["w1"], p["b1"], (3, 3), [(1, 1), (1, 1)]))
    out = _ref_conv(out, p["w2"], p["b2"], (2, 2), [(0, 0), (0, 0)])
    z = _ref_conv(out, p["w3"], p["b3"], (1, 1), [(0, 0), (0, 0)])
    wd1 = jnp.flip(p["wd1"], axis=(-2, -1)).transpose(1, 0, 2, 3)
    out = jax.nn.relu(_ref_conv(z, wd1, p["bd1"], (1, 1),
                                [(3, 4), (3, 4)], lhs_dilation=(2, 2)))
    wd2 = jnp.flip(p["wd2"], axis=(-2, -1)).transpose(1, 0, 2, 3)
    rec = jnp.tanh(_ref_conv(out, wd2, p["bd2"], (1, 1),
                             [(3, 3), (2, 2)], lhs_dilation=(3, 3)))
    return rec


# ------------------------------ main ------------------------------------------

if __name__ == "__main__":
    key = jax.random.PRNGKey(0)
    pkey, xkey = jax.random.split(key)
    params = init_params(pkey)

    # NCHW input, matching PyTorch: batch=2, C=3, H=W=32
    x = jax.random.normal(xkey, (2, 3, 32, 32), jnp.float32)

    forward = make_forward(params, input_hw=(32, 32))
    recon = jax.block_until_ready(forward(x))
    assert recon.shape == (2, 3, 18, 16), recon.shape

    ref = jax.block_until_ready(forward_ref(params, x))
    max_err = float(jnp.max(jnp.abs(recon - ref)))
    assert jnp.allclose(recon, ref, atol=5e-4, rtol=5e-3), max_err

    print("KERNEL_OK")
</pallas_src>

<mosaic_0001>
module attributes {stable_mosaic.version = 11 : i64} {
  func.func @_fused_ae_kernel(%arg0: i32, %arg1: memref<1x32x96xf32, #tpu.memory_space<vmem>>, %arg2: memref<5x10x32xf32, #tpu.memory_space<vmem>>, %arg3: memref<5x96x320xf32, #tpu.memory_space<vmem>>, %arg4: memref<1x320xf32, #tpu.memory_space<vmem>>, %arg5: memref<3x4x10xf32, #tpu.memory_space<vmem>>, %arg6: memref<3x320x64xf32, #tpu.memory_space<vmem>>, %arg7: memref<1x64xf32, #tpu.memory_space<vmem>>, %arg8: memref<3x2x4xf32, #tpu.memory_space<vmem>>, %arg9: memref<3x64x12xf32, #tpu.memory_space<vmem>>, %arg10: memref<1x12xf32, #tpu.memory_space<vmem>>, %arg11: memref<5x6x2xf32, #tpu.memory_space<vmem>>, %arg12: memref<5x12x48xf32, #tpu.memory_space<vmem>>, %arg13: memref<1x48xf32, #tpu.memory_space<vmem>>, %arg14: memref<5x18x6xf32, #tpu.memory_space<vmem>>, %arg15: memref<5x48x48xf32, #tpu.memory_space<vmem>>, %arg16: memref<1x48xf32, #tpu.memory_space<vmem>>, %arg17: memref<1x18x48xf32, #tpu.memory_space<vmem>>) attributes {dimension_semantics = [#tpu.dimension_semantics<parallel>], iteration_bounds = array<i64: 2>, scalar_prefetch = 0 : i64, scratch_operands = 0 : i64, tpu.core_type = #tpu.core_type<tc>, window_params = [{transform_indices = @transform_0, window_bounds = array<i64: 1, 32, 96>}, {pipeline_mode = #tpu.pipeline_mode<synchronous>, transform_indices = @transform_1, window_bounds = array<i64: 5, 10, 32>}, {pipeline_mode = #tpu.pipeline_mode<synchronous>, transform_indices = @transform_2, window_bounds = array<i64: 5, 96, 320>}, {pipeline_mode = #tpu.pipeline_mode<synchronous>, transform_indices = @transform_3, window_bounds = array<i64: 1, 320>}, {pipeline_mode = #tpu.pipeline_mode<synchronous>, transform_indices = @transform_4, window_bounds = array<i64: 3, 4, 10>}, {pipeline_mode = #tpu.pipeline_mode<synchronous>, transform_indices = @transform_5, window_bounds = array<i64: 3, 320, 64>}, {pipeline_mode = #tpu.pipeline_mode<synchronous>, transform_indices = @transform_6, window_bounds = array<i64: 1, 64>}, {pipeline_mode = #tpu.pipeline_mode<synchronous>, transform_indices = @transform_7, window_bounds = array<i64: 3, 2, 4>}, {pipeline_mode = #tpu.pipeline_mode<synchronous>, transform_indices = @transform_8, window_bounds = array<i64: 3, 64, 12>}, {pipeline_mode = #tpu.pipeline_mode<synchronous>, transform_indices = @transform_9, window_bounds = array<i64: 1, 12>}, {pipeline_mode = #tpu.pipeline_mode<synchronous>, transform_indices = @transform_10, window_bounds = array<i64: 5, 6, 2>}, {pipeline_mode = #tpu.pipeline_mode<synchronous>, transform_indices = @transform_11, window_bounds = array<i64: 5, 12, 48>}, {pipeline_mode = #tpu.pipeline_mode<synchronous>, transform_indices = @transform_12, window_bounds = array<i64: 1, 48>}, {pipeline_mode = #tpu.pipeline_mode<synchronous>, transform_indices = @transform_13, window_bounds = array<i64: 5, 18, 6>}, {pipeline_mode = #tpu.pipeline_mode<synchronous>, transform_indices = @transform_14, window_bounds = array<i64: 5, 48, 48>}, {pipeline_mode = #tpu.pipeline_mode<synchronous>, transform_indices = @transform_15, window_bounds = array<i64: 1, 48>}, {transform_indices = @transform_16, window_bounds = array<i64: 1, 18, 48>}]} {
    %c0 = arith.constant 0 : index
    %c0_0 = arith.constant 0 : index
    %c0_1 = arith.constant 0 : index
    %0 = vector.load %arg1[%c0, %c0_0, %c0_1] : memref<1x32x96xf32, #tpu.memory_space<vmem>>, vector<1x32x96xf32>
    %1 = vector.shape_cast %0 : vector<1x32x96xf32> to vector<32x96xf32>
    %c0_2 = arith.constant 0 : index
    %c0_3 = arith.constant 0 : index
    %c0_4 = arith.constant 0 : index
    %2 = vector.load %arg2[%c0_2, %c0_3, %c0_4] : memref<5x10x32xf32, #tpu.memory_space<vmem>>, vector<1x10x32xf32>
    %3 = vector.shape_cast %2 : vector<1x10x32xf32> to vector<10x32xf32>
    %cst = arith.constant dense<0.000000e+00> : vector<10x96xf32>
    %4 = tpu.matmul %3, %1, %cst {dimension_numbers = #tpu.dot_dimension_numbers<[1], [0], [0], [1], [0, 0, 1, 1], [], []>} : vector<10x32xf32>, vector<32x96xf32>, vector<10x96xf32> -> vector<10x96xf32>
    %c0_5 = arith.constant 0 : index
    %c0_6 = arith.constant 0 : index
    %c0_7 = arith.constant 0 : index
    %5 = vector.load %arg3[%c0_5, %c0_6, %c0_7] : memref<5x96x320xf32, #tpu.memory_space<vmem>>, vector<1x96x320xf32>
    %6 = vector.shape_cast %5 : vector<1x96x320xf32> to vector<96x320xf32>
    %cst_8 = arith.constant dense<0.000000e+00> : vector<10x320xf32>
    %7 = tpu.matmul %4, %6, %cst_8 {dimension_numbers = #tpu.dot_dimension_numbers<[1], [0], [0], [1], [0, 0, 1, 1], [], []>} : vector<10x96xf32>, vector<96x320xf32>, vector<10x320xf32> -> vector<10x320xf32>
    %c1 = arith.constant 1 : index
    %c0_9 = arith.constant 0 : index
    %c0_10 = arith.constant 0 : index
    %8 = vector.load %arg2[%c1, %c0_9, %c0_10] : memref<5x10x32xf32, #tpu.memory_space<vmem>>, vector<1x10x32xf32>
    %9 = vector.shape_cast %8 : vector<1x10x32xf32> to vector<10x32xf32>
    %cst_11 = arith.constant dense<0.000000e+00> : vector<10x96xf32>
    %10 = tpu.matmul %9, %1, %cst_11 {dimension_numbers = #tpu.dot_dimension_numbers<[1], [0], [0], [1], [0, 0, 1, 1], [], []>} : vector<10x32xf32>, vector<32x96xf32>, vector<10x96xf32> -> vector<10x96xf32>
    %c1_12 = arith.constant 1 : index
    %c0_13 = arith.constant 0 : index
    %c0_14 = arith.constant 0 : index
    %11 = vector.load %arg3[%c1_12, %c0_13, %c0_14] : memref<5x96x320xf32, #tpu.memory_space<vmem>>, vector<1x96x320xf32>
    %12 = vector.shape_cast %11 : vector<1x96x320xf32> to vector<96x320xf32>
    %cst_15 = arith.constant dense<0.000000e+00> : vector<10x320xf32>
    %13 = tpu.matmul %10, %12, %cst_15 {dimension_numbers = #tpu.dot_dimension_numbers<[1], [0], [0], [1], [0, 0, 1, 1], [], []>} : vector<10x96xf32>, vector<96x320xf32>, vector<10x320xf32> -> vector<10x320xf32>
    %14 = arith.addf %7, %13 : vector<10x320xf32>
    %c2 = arith.constant 2 : index
    %c0_16 = arith.constant 0 : index
    %c0_17 = arith.constant 0 : index
    %15 = vector.load %arg2[%c2, %c0_16, %c0_17] : memref<5x10x32xf32, #tpu.memory_space<vmem>>, vector<1x10x32xf32>
    %16 = vector.shape_cast %15 : vector<1x10x32xf32> to vector<10x32xf32>
    %cst_18 = arith.constant dense<0.000000e+00> : vector<10x96xf32>
    %17 = tpu.matmul %16, %1, %cst_18 {dimension_numbers = #tpu.dot_dimension_numbers<[1], [0], [0], [1], [0, 0, 1, 1], [], []>} : vector<10x32xf32>, vector<32x96xf32>, vector<10x96xf32> -> vector<10x96xf32>
    %c2_19 = arith.constant 2 : index
    %c0_20 = arith.constant 0 : index
    %c0_21 = arith.constant 0 : index
    %18 = vector.load %arg3[%c2_19, %c0_20, %c0_21] : memref<5x96x320xf32, #tpu.memory_space<vmem>>, vector<1x96x320xf32>
    %19 = vector.shape_cast %18 : vector<1x96x320xf32> to vector<96x320xf32>
    %cst_22 = arith.constant dense<0.000000e+00> : vector<10x320xf32>
    %20 = tpu.matmul %17, %19, %cst_22 {dimension_numbers = #tpu.dot_dimension_numbers<[1], [0], [0], [1], [0, 0, 1, 1], [], []>} : vector<10x96xf32>, vector<96x320xf32>, vector<10x320xf32> -> vector<10x320xf32>
    %21 = arith.addf %14, %20 : vector<10x320xf32>
    %c3 = arith.constant 3 : index
    %c0_23 = arith.constant 0 : index
    %c0_24 = arith.constant 0 : index
    %22 = vector.load %arg2[%c3, %c0_23, %c0_24] : memref<5x10x32xf32, #tpu.memory_space<vmem>>, vector<1x10x32xf32>
    %23 = vector.shape_cast %22 : vector<1x10x32xf32> to vector<10x32xf32>
    %cst_25 = arith.constant dense<0.000000e+00> : vector<10x96xf32>
    %24 = tpu.matmul %23, %1, %cst_25 {dimension_numbers = #tpu.dot_dimension_numbers<[1], [0], [0], [1], [0, 0, 1, 1], [], []>} : vector<10x32xf32>, vector<32x96xf32>, vector<10x96xf32> -> vector<10x96xf32>
    %c3_26 = arith.constant 3 : index
    %c0_27 = arith.constant 0 : index
    %c0_28 = arith.constant 0 : index
    %25 = vector.load %arg3[%c3_26, %c0_27, %c0_28] : memref<5x96x320xf32, #tpu.memory_space<vmem>>, vector<1x96x320xf32>
    %26 = vector.shape_cast %25 : vector<1x96x320xf32> to vector<96x320xf32>
    %cst_29 = arith.constant dense<0.000000e+00> : vector<10x320xf32>
    %27 = tpu.matmul %24, %26, %cst_29 {dimension_numbers = #tpu.dot_dimension_numbers<[1], [0], [0], [1], [0, 0, 1, 1], [], []>} : vector<10x96xf32>, vector<96x320xf32>, vector<10x320xf32> -> vector<10x320xf32>
    %28 = arith.addf %21, %27 : vector<10x320xf32>
    %c4 = arith.constant 4 : index
    %c0_30 = arith.constant 0 : index
    %c0_31 = arith.constant 0 : index
    %29 = vector.load %arg2[%c4, %c0_30, %c0_31] : memref<5x10x32xf32, #tpu.memory_space<vmem>>, vector<1x10x32xf32>
    %30 = vector.shape_cast %29 : vector<1x10x32xf32> to vector<10x32xf32>
    %cst_32 = arith.constant dense<0.000000e+00> : vector<10x96xf32>
    %31 = tpu.matmul %30, %1, %cst_32 {dimension_numbers = #tpu.dot_dimension_numbers<[1], [0], [0], [1], [0, 0, 1, 1], [], []>} : vector<10x32xf32>, vector<32x96xf32>, vector<10x96xf32> -> vector<10x96xf32>
    %c4_33 = arith.constant 4 : index
    %c0_34 = arith.constant 0 : index
    %c0_35 = arith.constant 0 : index
    %32 = vector.load %arg3[%c4_33, %c0_34, %c0_35] : memref<5x96x320xf32, #tpu.memory_space<vmem>>, vector<1x96x320xf32>
    %33 = vector.shape_cast %32 : vector<1x96x320xf32> to vector<96x320xf32>
    %cst_36 = arith.constant dense<0.000000e+00> : vector<10x320xf32>
    %34 = tpu.matmul %31, %33, %cst_36 {dimension_numbers = #tpu.dot_dimension_numbers<[1], [0], [0], [1], [0, 0, 1, 1], [], []>} : vector<10x96xf32>, vector<96x320xf32>, vector<10x320xf32> -> vector<10x320xf32>
    %35 = arith.addf %28, %34 : vector<10x320xf32>
    %c0_37 = arith.constant 0 : index
    %c0_38 = arith.constant 0 : index
    %36 = vector.load %arg4[%c0_37, %c0_38] : memref<1x320xf32, #tpu.memory_space<vmem>>, vector<1x320xf32>
    %37 = vector.broadcast %36 : vector<1x320xf32> to vector<10x320xf32>
    %38 = arith.addf %35, %37 : vector<10x320xf32>
    %cst_39 = arith.constant 0.000000e+00 : f32
    %39 = vector.broadcast %cst_39 : f32 to vector<10x320xf32>
    %40 = arith.maximumf %38, %39 : vector<10x320xf32>
    %c0_40 = arith.constant 0 : index
    %c0_41 = arith.constant 0 : index
    %c0_42 = arith.constant 0 : index
    %41 = vector.load %arg5[%c0_40, %c0_41, %c0_42] : memref<3x4x10xf32, #tpu.memory_space<vmem>>, vector<1x4x10xf32>
    %42 = vector.shape_cast %41 : vector<1x4x10xf32> to vector<4x10xf32>
    %cst_43 = arith.constant dense<0.000000e+00> : vector<4x320xf32>
    %43 = tpu.matmul %42, %40, %cst_43 {dimension_numbers = #tpu.dot_dimension_numbers<[1], [0], [0], [1], [0, 0, 1, 1], [], []>} : vector<4x10xf32>, vector<10x320xf32>, vector<4x320xf32> -> vector<4x320xf32>
    %c0_44 = arith.constant 0 : index
    %c0_45 = arith.constant 0 : index
    %c0_46 = arith.constant 0 : index
    %44 = vector.load %arg6[%c0_44, %c0_45, %c0_46] : memref<3x320x64xf32, #tpu.memory_space<vmem>>, vector<1x320x64xf32>
    %45 = vector.shape_cast %44 : vector<1x320x64xf32> to vector<320x64xf32>
    %cst_47 = arith.constant dense<0.000000e+00> : vector<4x64xf32>
    %46 = tpu.matmul %43, %45, %cst_47 {dimension_numbers = #tpu.dot_dimension_numbers<[1], [0], [0], [1], [0, 0, 1, 1], [], []>} : vector<4x320xf32>, vector<320x64xf32>, vector<4x64xf32> -> vector<4x64xf32>
    %c1_48 = arith.constant 1 : index
    %c0_49 = arith.constant 0 : index
    %c0_50 = arith.constant 0 : index
    %47 = vector.load %arg5[%c1_48, %c0_49, %c0_50] : memref<3x4x10xf32, #tpu.memory_space<vmem>>, vector<1x4x10xf32>
    %48 = vector.shape_cast %47 : vector<1x4x10xf32> to vector<4x10xf32>
    %cst_51 = arith.constant dense<0.000000e+00> : vector<4x320xf32>
    %49 = tpu.matmul %48, %40, %cst_51 {dimension_numbers = #tpu.dot_dimension_numbers<[1], [0], [0], [1], [0, 0, 1, 1], [], []>} : vector<4x10xf32>, vector<10x320xf32>, vector<4x320xf32> -> vector<4x320xf32>
    %c1_52 = arith.constant 1 : index
    %c0_53 = arith.constant 0 : index
    %c0_54 = arith.constant 0 : index
    %50 = vector.load %arg6[%c1_52, %c0_53, %c0_54] : memref<3x320x64xf32, #tpu.memory_space<vmem>>, vector<1x320x64xf32>
    %51 = vector.shape_cast %50 : vector<1x320x64xf32> to vector<320x64xf32>
    %cst_55 = arith.constant dense<0.000000e+00> : vector<4x64xf32>
    %52 = tpu.matmul %49, %51, %cst_55 {dimension_numbers = #tpu.dot_dimension_numbers<[1], [0], [0], [1], [0, 0, 1, 1], [], []>} : vector<4x320xf32>, vector<320x64xf32>, vector<4x64xf32> -> vector<4x64xf32>
    %53 = arith.addf %46, %52 : vector<4x64xf32>
    %c2_56 = arith.constant 2 : index
    %c0_57 = arith.constant 0 : index
    %c0_58 = arith.constant 0 : index
    %54 = vector.load %arg5[%c2_56, %c0_57, %c0_58] : memref<3x4x10xf32, #tpu.memory_space<vmem>>, vector<1x4x10xf32>
    %55 = vector.shape_cast %54 : vector<1x4x10xf32> to vector<4x10xf32>
    %cst_59 = arith.constant dense<0.000000e+00> : vector<4x320xf32>
    %56 = tpu.matmul %55, %40, %cst_59 {dimension_numbers = #tpu.dot_dimension_numbers<[1], [0], [0], [1], [0, 0, 1, 1], [], []>} : vector<4x10xf32>, vector<10x320xf32>, vector<4x320xf32> -> vector<4x320xf32>
    %c2_60 = arith.constant 2 : index
    %c0_61 = arith.constant 0 : index
    %c0_62 = arith.constant 0 : index
    %57 = vector.load %arg6[%c2_60, %c0_61, %c0_62] : memref<3x320x64xf32, #tpu.memory_space<vmem>>, vector<1x320x64xf32>
    %58 = vector.shape_cast %57 : vector<1x320x64xf32> to vector<320x64xf32>
    %cst_63 = arith.constant dense<0.000000e+00> : vector<4x64xf32>
    %59 = tpu.matmul %56, %58, %cst_63 {dimension_numbers = #tpu.dot_dimension_numbers<[1], [0], [0], [1], [0, 0, 1, 1], [], []>} : vector<4x320xf32>, vector<320x64xf32>, vector<4x64xf32> -> vector<4x64xf32>
    %60 = arith.addf %53, %59 : vector<4x64xf32>
    %c0_64 = arith.constant 0 : index
    %c0_65 = arith.constant 0 : index
    %61 = vector.load %arg7[%c0_64, %c0_65] : memref<1x64xf32, #tpu.memory_space<vmem>>, vector<1x64xf32>
    %62 = vector.broadcast %61 : vector<1x64xf32> to vector<4x64xf32>
    %63 = arith.addf %60, %62 : vector<4x64xf32>
    %c0_66 = arith.constant 0 : index
    %c0_67 = arith.constant 0 : index
    %c0_68 = arith.constant 0 : index
    %64 = vector.load %arg8[%c0_66, %c0_67, %c0_68] : memref<3x2x4xf32, #tpu.memory_space<vmem>>, vector<1x2x4xf32>
    %65 = vector.shape_cast %64 : vector<1x2x4xf32> to vector<2x4xf32>
    %cst_69 = arith.constant dense<0.000000e+00> : vector<2x64xf32>
    %66 = tpu.matmul %65, %63, %cst_69 {dimension_numbers = #tpu.dot_dimension_numbers<[1], [0], [0], [1], [0, 0, 1, 1], [], []>} : vector<2x4xf32>, vector<4x64xf32>, vector<2x64xf32> -> vector<2x64xf32>
    %c0_70 = arith.constant 0 : index
    %c0_71 = arith.constant 0 : index
    %c0_72 = arith.constant 0 : index
    %67 = vector.load %arg9[%c0_70, %c0_71, %c0_72] : memref<3x64x12xf32, #tpu.memory_space<vmem>>, vector<1x64x12xf32>
    %68 = vector.shape_cast %67 : vector<1x64x12xf32> to vector<64x12xf32>
    %cst_73 = arith.constant dense<0.000000e+00> : vector<2x12xf32>
    %69 = tpu.matmul %66, %68, %cst_73 {dimension_numbers = #tpu.dot_dimension_numbers<[1], [0], [0], [1], [0, 0, 1, 1], [], []>} : vector<2x64xf32>, vector<64x12xf32>, vector<2x12xf32> -> vector<2x12xf32>
    %c1_74 = arith.constant 1 : index
    %c0_75 = arith.constant 0 : index
    %c0_76 = arith.constant 0 : index
    %70 = vector.load %arg8[%c1_74, %c0_75, %c0_76] : memref<3x2x4xf32, #tpu.memory_space<vmem>>, vector<1x2x4xf32>
    %71 = vector.shape_cast %70 : vector<1x2x4xf32> to vector<2x4xf32>
    %cst_77 = arith.constant dense<0.000000e+00> : vector<2x64xf32>
    %72 = tpu.matmul %71, %63, %cst_77 {dimension_numbers = #tpu.dot_dimension_numbers<[1], [0], [0], [1], [0, 0, 1, 1], [], []>} : vector<2x4xf32>, vector<4x64xf32>, vector<2x64xf32> -> vector<2x64xf32>
    %c1_78 = arith.constant 1 : index
    %c0_79 = arith.constant 0 : index
    %c0_80 = arith.constant 0 : index
    %73 = vector.load %arg9[%c1_78, %c0_79, %c0_80] : memref<3x64x12xf32, #tpu.memory_space<vmem>>, vector<1x64x12xf32>
    %74 = vector.shape_cast %73 : vector<1x64x12xf32> to vector<64x12xf32>
    %cst_81 = arith.constant dense<0.000000e+00> : vector<2x12xf32>
    %75 = tpu.matmul %72, %74, %cst_81 {dimension_numbers = #tpu.dot_dimension_numbers<[1], [0], [0], [1], [0, 0, 1, 1], [], []>} : vector<2x64xf32>, vector<64x12xf32>, vector<2x12xf32> -> vector<2x12xf32>
    %76 = arith.addf %69, %75 : vector<2x12xf32>
    %c2_82 = arith.constant 2 : index
    %c0_83 = arith.constant 0 : index
    %c0_84 = arith.constant 0 : index
    %77 = vector.load %arg8[%c2_82, %c0_83, %c0_84] : memref<3x2x4xf32, #tpu.memory_space<vmem>>, vector<1x2x4xf32>
    %78 = vector.shape_cast %77 : vector<1x2x4xf32> to vector<2x4xf32>
    %cst_85 = arith.constant dense<0.000000e+00> : vector<2x64xf32>
    %79 = tpu.matmul %78, %63, %cst_85 {dimension_numbers = #tpu.dot_dimension_numbers<[1], [0], [0], [1], [0, 0, 1, 1], [], []>} : vector<2x4xf32>, vector<4x64xf32>, vector<2x64xf32> -> vector<2x64xf32>
    %c2_86 = arith.constant 2 : index
    %c0_87 = arith.constant 0 : index
    %c0_88 = arith.constant 0 : index
    %80 = vector.load %arg9[%c2_86, %c0_87, %c0_88] : memref<3x64x12xf32, #tpu.memory_space<vmem>>, vector<1x64x12xf32>
    %81 = vector.shape_cast %80 : vector<1x64x12xf32> to vector<64x12xf32>
    %cst_89 = arith.constant dense<0.000000e+00> : vector<2x12xf32>
    %82 = tpu.matmul %79, %81, %cst_89 {dimension_numbers = #tpu.dot_dimension_numbers<[1], [0], [0], [1], [0, 0, 1, 1], [], []>} : vector<2x64xf32>, vector<64x12xf32>, vector<2x12xf32> -> vector<2x12xf32>
    %83 = arith.addf %76, %82 : vector<2x12xf32>
    %c0_90 = arith.constant 0 : index
    %c0_91 = arith.constant 0 : index
    %84 = vector.load %arg10[%c0_90, %c0_91] : memref<1x12xf32, #tpu.memory_space<vmem>>, vector<1x12xf32>
    %85 = vector.broadcast %84 : vector<1x12xf32> to vector<2x12xf32>
    %86 = arith.addf %83, %85 : vector<2x12xf32>
    %c0_92 = arith.constant 0 : index
    %c0_93 = arith.constant 0 : index
    %c0_94 = arith.constant 0 : index
    %87 = vector.load %arg11[%c0_92, %c0_93, %c0_94] : memref<5x6x2xf32, #tpu.memory_space<vmem>>, vector<1x6x2xf32>
    %88 = vector.shape_cast %87 : vector<1x6x2xf32> to vector<6x2xf32>
    %cst_95 = arith.constant dense<0.000000e+00> : vector<6x12xf32>
    %89 = tpu.matmul %88, %86, %cst_95 {dimension_numbers = #tpu.dot_dimension_numbers<[1], [0], [0], [1], [0, 0, 1, 1], [], []>} : vector<6x2xf32>, vector<2x12xf32>, vector<6x12xf32> -> vector<6x12xf32>
    %c0_96 = arith.constant 0 : index
    %c0_97 = arith.constant 0 : index
    %c0_98 = arith.constant 0 : index
    %90 = vector.load %arg12[%c0_96, %c0_97, %c0_98] : memref<5x12x48xf32, #tpu.memory_space<vmem>>, vector<1x12x48xf32>
    %91 = vector.shape_cast %90 : vector<1x12x48xf32> to vector<12x48xf32>
    %cst_99 = arith.constant dense<0.000000e+00> : vector<6x48xf32>
    %92 = tpu.matmul %89, %91, %cst_99 {dimension_numbers = #tpu.dot_dimension_numbers<[1], [0], [0], [1], [0, 0, 1, 1], [], []>} : vector<6x12xf32>, vector<12x48xf32>, vector<6x48xf32> -> vector<6x48xf32>
    %c1_100 = arith.constant 1 : index
    %c0_101 = arith.constant 0 : index
    %c0_102 = arith.constant 0 : index
    %93 = vector.load %arg11[%c1_100, %c0_101, %c0_102] : memref<5x6x2xf32, #tpu.memory_space<vmem>>, vector<1x6x2xf32>
    %94 = vector.shape_cast %93 : vector<1x6x2xf32> to vector<6x2xf32>
    %cst_103 = arith.constant dense<0.000000e+00> : vector<6x12xf32>
    %95 = tpu.matmul %94, %86, %cst_103 {dimension_numbers = #tpu.dot_dimension_numbers<[1], [0], [0], [1], [0, 0, 1, 1], [], []>} : vector<6x2xf32>, vector<2x12xf32>, vector<6x12xf32> -> vector<6x12xf32>
    %c1_104 = arith.constant 1 : index
    %c0_105 = arith.constant 0 : index
    %c0_106 = arith.constant 0 : index
    %96 = vector.load %arg12[%c1_104, %c0_105, %c0_106] : memref<5x12x48xf32, #tpu.memory_space<vmem>>, vector<1x12x48xf32>
    %97 = vector.shape_cast %96 : vector<1x12x48xf32> to vector<12x48xf32>
    %cst_107 = arith.constant dense<0.000000e+00> : vector<6x48xf32>
    %98 = tpu.matmul %95, %97, %cst_107 {dimension_numbers = #tpu.dot_dimension_numbers<[1], [0], [0], [1], [0, 0, 1, 1], [], []>} : vector<6x12xf32>, vector<12x48xf32>, vector<6x48xf32> -> vector<6x48xf32>
    %99 = arith.addf %92, %98 : vector<6x48xf32>
    %c2_108 = arith.constant 2 : index
    %c0_109 = arith.constant 0 : index
    %c0_110 = arith.constant 0 : index
    %100 = vector.load %arg11[%c2_108, %c0_109, %c0_110] : memref<5x6x2xf32, #tpu.memory_space<vmem>>, vector<1x6x2xf32>
    %101 = vector.shape_cast %100 : vector<1x6x2xf32> to vector<6x2xf32>
    %cst_111 = arith.constant dense<0.000000e+00> : vector<6x12xf32>
    %102 = tpu.matmul %101, %86, %cst_111 {dimension_numbers = #tpu.dot_dimension_numbers<[1], [0], [0], [1], [0, 0, 1, 1], [], []>} : vector<6x2xf32>, vector<2x12xf32>, vector<6x12xf32> -> vector<6x12xf32>
    %c2_112 = arith.constant 2 : index
    %c0_113 = arith.constant 0 : index
    %c0_114 = arith.constant 0 : index
    %103 = vector.load %arg12[%c2_112, %c0_113, %c0_114] : memref<5x12x48xf32, #tpu.memory_space<vmem>>, vector<1x12x48xf32>
    %104 = vector.shape_cast %103 : vector<1x12x48xf32> to vector<12x48xf32>
    %cst_115 = arith.constant dense<0.000000e+00> : vector<6x48xf32>
    %105 = tpu.matmul %102, %104, %cst_115 {dimension_numbers = #tpu.dot_dimension_numbers<[1], [0], [0], [1], [0, 0, 1, 1], [], []>} : vector<6x12xf32>, vector<12x48xf32>, vector<6x48xf32> -> vector<6x48xf32>
    %106 = arith.addf %99, %105 : vector<6x48xf32>
    %c3_116 = arith.constant 3 : index
    %c0_117 = arith.constant 0 : index
    %c0_118 = arith.constant 0 : index
    %107 = vector.load %arg11[%c3_116, %c0_117, %c0_118] : memref<5x6x2xf32, #tpu.memory_space<vmem>>, vector<1x6x2xf32>
    %108 = vector.shape_cast %107 : vector<1x6x2xf32> to vector<6x2xf32>
    %cst_119 = arith.constant dense<0.000000e+00> : vector<6x12xf32>
    %109 = tpu.matmul %108, %86, %cst_119 {dimension_numbers = #tpu.dot_dimension_numbers<[1], [0], [0], [1], [0, 0, 1, 1], [], []>} : vector<6x2xf32>, vector<2x12xf32>, vector<6x12xf32> -> vector<6x12xf32>
    %c3_120 = arith.constant 3 : index
    %c0_121 = arith.constant 0 : index
    %c0_122 = arith.constant 0 : index
    %110 = vector.load %arg12[%c3_120, %c0_121, %c0_122] : memref<5x12x48xf32, #tpu.memory_space<vmem>>, vector<1x12x48xf32>
    %111 = vector.shape_cast %110 : vector<1x12x48xf32> to vector<12x48xf32>
    %cst_123 = arith.constant dense<0.000000e+00> : vector<6x48xf32>
    %112 = tpu.matmul %109, %111, %cst_123 {dimension_numbers = #tpu.dot_dimension_numbers<[1], [0], [0], [1], [0, 0, 1, 1], [], []>} : vector<6x12xf32>, vector<12x48xf32>, vector<6x48xf32> -> vector<6x48xf32>
    %113 = arith.addf %106, %112 : vector<6x48xf32>
    %c4_124 = arith.constant 4 : index
    %c0_125 = arith.constant 0 : index
    %c0_126 = arith.constant 0 : index
    %114 = vector.load %arg11[%c4_124, %c0_125, %c0_126] : memref<5x6x2xf32, #tpu.memory_space<vmem>>, vector<1x6x2xf32>
    %115 = vector.shape_cast %114 : vector<1x6x2xf32> to vector<6x2xf32>
    %cst_127 = arith.constant dense<0.000000e+00> : vector<6x12xf32>
    %116 = tpu.matmul %115, %86, %cst_127 {dimension_numbers = #tpu.dot_dimension_numbers<[1], [0], [0], [1], [0, 0, 1, 1], [], []>} : vector<6x2xf32>, vector<2x12xf32>, vector<6x12xf32> -> vector<6x12xf32>
    %c4_128 = arith.constant 4 : index
    %c0_129 = arith.constant 0 : index
    %c0_130 = arith.constant 0 : index
    %117 = vector.load %arg12[%c4_128, %c0_129, %c0_130] : memref<5x12x48xf32, #tpu.memory_space<vmem>>, vector<1x12x48xf32>
    %118 = vector.shape_cast %117 : vector<1x12x48xf32> to vector<12x48xf32>
    %cst_131 = arith.constant dense<0.000000e+00> : vector<6x48xf32>
    %119 = tpu.matmul %116, %118, %cst_131 {dimension_numbers = #tpu.dot_dimension_numbers<[1], [0], [0], [1], [0, 0, 1, 1], [], []>} : vector<6x12xf32>, vector<12x48xf32>, vector<6x48xf32> -> vector<6x48xf32>
    %120 = arith.addf %113, %119 : vector<6x48xf32>
    %c0_132 = arith.constant 0 : index
    %c0_133 = arith.constant 0 : index
    %121 = vector.load %arg13[%c0_132, %c0_133] : memref<1x48xf32, #tpu.memory_space<vmem>>, vector<1x48xf32>
    %122 = vector.broadcast %121 : vector<1x48xf32> to vector<6x48xf32>
    %123 = arith.addf %120, %122 : vector<6x48xf32>
    %cst_134 = arith.constant 0.000000e+00 : f32
    %124 = vector.broadcast %cst_134 : f32 to vector<6x48xf32>
    %125 = arith.maximumf %123, %124 : vector<6x48xf32>
    %c0_135 = arith.constant 0 : index
    %c0_136 = arith.constant 0 : index
    %c0_137 = arith.constant 0 : index
    %126 = vector.load %arg14[%c0_135, %c0_136, %c0_137] : memref<5x18x6xf32, #tpu.memory_space<vmem>>, vector<1x18x6xf32>
    %127 = vector.shape_cast %126 : vector<1x18x6xf32> to vector<18x6xf32>
    %cst_138 = arith.constant dense<0.000000e+00> : vector<18x48xf32>
    %128 = tpu.matmul %127, %125, %cst_138 {dimension_numbers = #tpu.dot_dimension_numbers<[1], [0], [0], [1], [0, 0, 1, 1], [], []>} : vector<18x6xf32>, vector<6x48xf32>, vector<18x48xf32> -> vector<18x48xf32>
    %c0_139 = arith.constant 0 : index
    %c0_140 = arith.constant 0 : index
    %c0_141 = arith.constant 0 : index
    %129 = vector.load %arg15[%c0_139, %c0_140, %c0_141] : memref<5x48x48xf32, #tpu.memory_space<vmem>>, vector<1x48x48xf32>
    %130 = vector.shape_cast %129 : vector<1x48x48xf32> to vector<48x48xf32>
    %cst_142 = arith.constant dense<0.000000e+00> : vector<18x48xf32>
    %131 = tpu.matmul %128, %130, %cst_142 {dimension_numbers = #tpu.dot_dimension_numbers<[1], [0], [0], [1], [0, 0, 1, 1], [], []>} : vector<18x48xf32>, vector<48x48xf32>, vector<18x48xf32> -> vector<18x48xf32>
    %c1_143 = arith.constant 1 : index
    %c0_144 = arith.constant 0 : index
    %c0_145 = arith.constant 0 : index
    %132 = vector.load %arg14[%c1_143, %c0_144, %c0_145] : memref<5x18x6xf32, #tpu.memory_space<vmem>>, vector<1x18x6xf32>
    %133 = vector.shape_cast %132 : vector<1x18x6xf32> to vector<18x6xf32>
    %cst_146 = arith.constant dense<0.000000e+00> : vector<18x48xf32>
    %134 = tpu.matmul %133, %125, %cst_146 {dimension_numbers = #tpu.dot_dimension_numbers<[1], [0], [0], [1], [0, 0, 1, 1], [], []>} : vector<18x6xf32>, vector<6x48xf32>, vector<18x48xf32> -> vector<18x48xf32>
    %c1_147 = arith.constant 1 : index
    %c0_148 = arith.constant 0 : index
    %c0_149 = arith.constant 0 : index
    %135 = vector.load %arg15[%c1_147, %c0_148, %c0_149] : memref<5x48x48xf32, #tpu.memory_space<vmem>>, vector<1x48x48xf32>
    %136 = vector.shape_cast %135 : vector<1x48x48xf32> to vector<48x48xf32>
    %cst_150 = arith.constant dense<0.000000e+00> : vector<18x48xf32>
    %137 = tpu.matmul %134, %136, %cst_150 {dimension_numbers = #tpu.dot_dimension_numbers<[1], [0], [0], [1], [0, 0, 1, 1], [], []>} : vector<18x48xf32>, vector<48x48xf32>, vector<18x48xf32> -> vector<18x48xf32>
    %138 = arith.addf %131, %137 : vector<18x48xf32>
    %c2_151 = arith.constant 2 : index
    %c0_152 = arith.constant 0 : index
    %c0_153 = arith.constant 0 : index
    %139 = vector.load %arg14[%c2_151, %c0_152, %c0_153] : memref<5x18x6xf32, #tpu.memory_space<vmem>>, vector<1x18x6xf32>
    %140 = vector.shape_cast %139 : vector<1x18x6xf32> to vector<18x6xf32>
    %cst_154 = arith.constant dense<0.000000e+00> : vector<18x48xf32>
    %141 = tpu.matmul %140, %125, %cst_154 {dimension_numbers = #tpu.dot_dimension_numbers<[1], [0], [0], [1], [0, 0, 1, 1], [], []>} : vector<18x6xf32>, vector<6x48xf32>, vector<18x48xf32> -> vector<18x48xf32>
    %c2_155 = arith.constant 2 : index
    %c0_156 = arith.constant 0 : index
    %c0_157 = arith.constant 0 : index
    %142 = vector.load %arg15[%c2_155, %c0_156, %c0_157] : memref<5x48x48xf32, #tpu.memory_space<vmem>>, vector<1x48x48xf32>
    %143 = vector.shape_cast %142 : vector<1x48x48xf32> to vector<48x48xf32>
    %cst_158 = arith.constant dense<0.000000e+00> : vector<18x48xf32>
    %144 = tpu.matmul %141, %143, %cst_158 {dimension_numbers = #tpu.dot_dimension_numbers<[1], [0], [0], [1], [0, 0, 1, 1], [], []>} : vector<18x48xf32>, vector<48x48xf32>, vector<18x48xf32> -> vector<18x48xf32>
    %145 = arith.addf %138, %144 : vector<18x48xf32>
    %c3_159 = arith.constant 3 : index
    %c0_160 = arith.constant 0 : index
    %c0_161 = arith.constant 0 : index
    %146 = vector.load %arg14[%c3_159, %c0_160, %c0_161] : memref<5x18x6xf32, #tpu.memory_space<vmem>>, vector<1x18x6xf32>
    %147 = vector.shape_cast %146 : vector<1x18x6xf32> to vector<18x6xf32>
    %cst_162 = arith.constant dense<0.000000e+00> : vector<18x48xf32>
    %148 = tpu.matmul %147, %125, %cst_162 {dimension_numbers = #tpu.dot_dimension_numbers<[1], [0], [0], [1], [0, 0, 1, 1], [], []>} : vector<18x6xf32>, vector<6x48xf32>, vector<18x48xf32> -> vector<18x48xf32>
    %c3_163 = arith.constant 3 : index
    %c0_164 = arith.constant 0 : index
    %c0_165 = arith.constant 0 : index
    %149 = vector.load %arg15[%c3_163, %c0_164, %c0_165] : memref<5x48x48xf32, #tpu.memory_space<vmem>>, vector<1x48x48xf32>
    %150 = vector.shape_cast %149 : vector<1x48x48xf32> to vector<48x48xf32>
    %cst_166 = arith.constant dense<0.000000e+00> : vector<18x48xf32>
    %151 = tpu.matmul %148, %150, %cst_166 {dimension_numbers = #tpu.dot_dimension_numbers<[1], [0], [0], [1], [0, 0, 1, 1], [], []>} : vector<18x48xf32>, vector<48x48xf32>, vector<18x48xf32> -> vector<18x48xf32>
    %152 = arith.addf %145, %151 : vector<18x48xf32>
    %c4_167 = arith.constant 4 : index
    %c0_168 = arith.constant 0 : index
    %c0_169 = arith.constant 0 : index
    %153 = vector.load %arg14[%c4_167, %c0_168, %c0_169] : memref<5x18x6xf32, #tpu.memory_space<vmem>>, vector<1x18x6xf32>
    %154 = vector.shape_cast %153 : vector<1x18x6xf32> to vector<18x6xf32>
    %cst_170 = arith.constant dense<0.000000e+00> : vector<18x48xf32>
    %155 = tpu.matmul %154, %125, %cst_170 {dimension_numbers = #tpu.dot_dimension_numbers<[1], [0], [0], [1], [0, 0, 1, 1], [], []>} : vector<18x6xf32>, vector<6x48xf32>, vector<18x48xf32> -> vector<18x48xf32>
    %c4_171 = arith.constant 4 : index
    %c0_172 = arith.constant 0 : index
    %c0_173 = arith.constant 0 : index
    %156 = vector.load %arg15[%c4_171, %c0_172, %c0_173] : memref<5x48x48xf32, #tpu.memory_space<vmem>>, vector<1x48x48xf32>
    %157 = vector.shape_cast %156 : vector<1x48x48xf32> to vector<48x48xf32>
    %cst_174 = arith.constant dense<0.000000e+00> : vector<18x48xf32>
    %158 = tpu.matmul %155, %157, %cst_174 {dimension_numbers = #tpu.dot_dimension_numbers<[1], [0], [0], [1], [0, 0, 1, 1], [], []>} : vector<18x48xf32>, vector<48x48xf32>, vector<18x48xf32> -> vector<18x48xf32>
    %159 = arith.addf %152, %158 : vector<18x48xf32>
    %c0_175 = arith.constant 0 : index
    %c0_176 = arith.constant 0 : index
    %160 = vector.load %arg16[%c0_175, %c0_176] : memref<1x48xf32, #tpu.memory_space<vmem>>, vector<1x48xf32>
    %161 = vector.broadcast %160 : vector<1x48xf32> to vector<18x48xf32>
    %162 = arith.addf %159, %161 : vector<18x48xf32>
    %163 = math.tanh %162 : vector<18x48xf32>
    %c0_177 = arith.constant 0 : index
    %c0_178 = arith.constant 0 : index
    %c0_179 = arith.constant 0 : index
    %164 = vector.load %arg17[%c0_177, %c0_178, %c0_179] : memref<1x18x48xf32, #tpu.memory_space<vmem>>, vector<1x18x48xf32>
    %165 = vector.shape_cast %164 : vector<1x18x48xf32> to vector<18x48xf32>
    %166 = vector.shape_cast %163 : vector<18x48xf32> to vector<1x18x48xf32>
    tpu.vector_store %arg17[%c0_177, %c0_178, %c0_179], %166 {strides = array<i32>} : memref<1x18x48xf32, #tpu.memory_space<vmem>>, vector<1x18x48xf32>,
    return
  }
  func.func @transform_0(%arg0: i32) -> (i32, i32, i32) {
    %c0_i32 = arith.constant 0 : i32
    %c0_i32_0 = arith.constant 0 : i32
    %c0_i32_1 = arith.constant 0 : i32
    return %arg0, %c0_i32, %c0_i32_0 : i32, i32, i32
  }
  func.func @transform_1(%arg0: i32) -> (i32, i32, i32) {
    %c0_i32 = arith.constant 0 : i32
    %c0_i32_0 = arith.constant 0 : i32
    %c0_i32_1 = arith.constant 0 : i32
    %c0_i32_2 = arith.constant 0 : i32
    return %c0_i32, %c0_i32_0, %c0_i32_1 : i32, i32, i32
  }
  func.func @transform_2(%arg0: i32) -> (i32, i32, i32) {
    %c0_i32 = arith.constant 0 : i32
    %c0_i32_0 = arith.constant 0 : i32
    %c0_i32_1 = arith.constant 0 : i32
    %c0_i32_2 = arith.constant 0 : i32
    return %c0_i32, %c0_i32_0, %c0_i32_1 : i32, i32, i32
  }
  func.func @transform_3(%arg0: i32) -> (i32, i32) {
    %c0_i32 = arith.constant 0 : i32
    %c0_i32_0 = arith.constant 0 : i32
    %c0_i32_1 = arith.constant 0 : i32
    return %c0_i32, %c0_i32_0 : i32, i32
  }
  func.func @transform_4(%arg0: i32) -> (i32, i32, i32) {
    %c0_i32 = arith.constant 0 : i32
    %c0_i32_0 = arith.constant 0 : i32
    %c0_i32_1 = arith.constant 0 : i32
    %c0_i32_2 = arith.constant 0 : i32
    return %c0_i32, %c0_i32_0, %c0_i32_1 : i32, i32, i32
  }
  func.func @transform_5(%arg0: i32) -> (i32, i32, i32) {
    %c0_i32 = arith.constant 0 : i32
    %c0_i32_0 = arith.constant 0 : i32
    %c0_i32_1 = arith.constant 0 : i32
    %c0_i32_2 = arith.constant 0 : i32
    return %c0_i32, %c0_i32_0, %c0_i32_1 : i32, i32, i32
  }
  func.func @transform_6(%arg0: i32) -> (i32, i32) {
    %c0_i32 = arith.constant 0 : i32
    %c0_i32_0 = arith.constant 0 : i32
    %c0_i32_1 = arith.constant 0 : i32
    return %c0_i32, %c0_i32_0 : i32, i32
  }
  func.func @transform_7(%arg0: i32) -> (i32, i32, i32) {
    %c0_i32 = arith.constant 0 : i32
    %c0_i32_0 = arith.constant 0 : i32
    %c0_i32_1 = arith.constant 0 : i32
    %c0_i32_2 = arith.constant 0 : i32
    return %c0_i32, %c0_i32_0, %c0_i32_1 : i32, i32, i32
  }
  func.func @transform_8(%arg0: i32) -> (i32, i32, i32) {
    %c0_i32 = arith.constant 0 : i32
    %c0_i32_0 = arith.constant 0 : i32
    %c0_i32_1 = arith.constant 0 : i32
    %c0_i32_2 = arith.constant 0 : i32
    return %c0_i32, %c0_i32_0, %c0_i32_1 : i32, i32, i32
  }
  func.func @transform_9(%arg0: i32) -> (i32, i32) {
    %c0_i32 = arith.constant 0 : i32
    %c0_i32_0 = arith.constant 0 : i32
    %c0_i32_1 = arith.constant 0 : i32
    return %c0_i32, %c0_i32_0 : i32, i32
  }
  func.func @transform_10(%arg0: i32) -> (i32, i32, i32) {
    %c0_i32 = arith.constant 0 : i32
    %c0_i32_0 = arith.constant 0 : i32
    %c0_i32_1 = arith.constant 0 : i32
    %c0_i32_2 = arith.constant 0 : i32
    return %c0_i32, %c0_i32_0, %c0_i32_1 : i32, i32, i32
  }
  func.func @transform_11(%arg0: i32) -> (i32, i32, i32) {
    %c0_i32 = arith.constant 0 : i32
    %c0_i32_0 = arith.constant 0 : i32
    %c0_i32_1 = arith.constant 0 : i32
    %c0_i32_2 = arith.constant 0 : i32
    return %c0_i32, %c0_i32_0, %c0_i32_1 : i32, i32, i32
  }
  func.func @transform_12(%arg0: i32) -> (i32, i32) {
    %c0_i32 = arith.constant 0 : i32
    %c0_i32_0 = arith.constant 0 : i32
    %c0_i32_1 = arith.constant 0 : i32
    return %c0_i32, %c0_i32_0 : i32, i32
  }
  func.func @transform_13(%arg0: i32) -> (i32, i32, i32) {
    %c0_i32 = arith.constant 0 : i32
    %c0_i32_0 = arith.constant 0 : i32
    %c0_i32_1 = arith.constant 0 : i32
    %c0_i32_2 = arith.constant 0 : i32
    return %c0_i32, %c0_i32_0, %c0_i32_1 : i32, i32, i32
  }
  func.func @transform_14(%arg0: i32) -> (i32, i32, i32) {
    %c0_i32 = arith.constant 0 : i32
    %c0_i32_0 = arith.constant 0 : i32
    %c0_i32_1 = arith.constant 0 : i32
    %c0_i32_2 = arith.constant 0 : i32
    return %c0_i32, %c0_i32_0, %c0_i32_1 : i32, i32, i32
  }
  func.func @transform_15(%arg0: i32) -> (i32, i32) {
    %c0_i32 = arith.constant 0 : i32
    %c0_i32_0 = arith.constant 0 : i32
    %c0_i32_1 = arith.constant 0 : i32
    return %c0_i32, %c0_i32_0 : i32, i32
  }
  func.func @transform_16(%arg0: i32) -> (i32, i32, i32) {
    %c0_i32 = arith.constant 0 : i32
    %c0_i32_0 = arith.constant 0 : i32
    %c0_i32_1 = arith.constant 0 : i32
    return %arg0, %c0_i32, %c0_i32_0 : i32, i32, i32
  }
}

</mosaic_0001>

<llo_original>
// kernel: forward.1
$region0: #{forward.1}
  #allocation0 [shape = 'u32[]', space=smem, size = 0x4, offset = 0x4, fixed_abs, tag = 'smem constant byte address 0x4 - core index']
  #allocation1 [shape = 'u32[72,128]{1,0:T(1,128)}', space=vmem, size = 0x9000, scoped, tag = 'internal scratch']
  %s0 = inlined_call_operand.vmem [shape: f32[2,32,96], index: 0, kind: input, shape index: {}]
  %s1 = inlined_call_operand.hbm [shape: f32[5,10,32], index: 1, kind: input, shape index: {}]
  %s2 = inlined_call_operand.hbm [shape: f32[5,96,320], index: 2, kind: input, shape index: {}]
  %s3 = inlined_call_operand.hbm [shape: f32[1,320], index: 3, kind: input, shape index: {}]
  %s4 = inlined_call_operand.hbm [shape: f32[3,4,10], index: 4, kind: input, shape index: {}]
  %s5 = inlined_call_operand.hbm [shape: f32[3,320,64], index: 5, kind: input, shape index: {}]
  %s6 = inlined_call_operand.vmem [shape: f32[1,64], index: 6, kind: input, shape index: {}]
  %s7 = inlined_call_operand.vmem [shape: f32[3,2,4], index: 7, kind: input, shape index: {}]
  %s8 = inlined_call_operand.vmem [shape: f32[3,64,12], index: 8, kind: input, shape index: {}]
  %s9 = inlined_call_operand.vmem [shape: f32[1,12], index: 9, kind: input, shape index: {}]
  %s10 = inlined_call_operand.hbm [shape: f32[5,6,2], index: 10, kind: input, shape index: {}]
  %s11 = inlined_call_operand.vmem [shape: f32[5,12,48], index: 11, kind: input, shape index: {}]
  %s12 = inlined_call_operand.vmem [shape: f32[1,48], index: 12, kind: input, shape index: {}]
  %s13 = inlined_call_operand.vmem [shape: f32[5,18,6], index: 13, kind: input, shape index: {}]
  %s14 = inlined_call_operand.vmem [shape: f32[5,48,48], index: 14, kind: input, shape index: {}]
  %s15 = inlined_call_operand.vmem [shape: f32[1,48], index: 15, kind: input, shape index: {}]
  %s16 = inlined_call_operand.vmem [shape: f32[2,18,48], index: 16, kind: output, shape index: {}]
  %s17 = sld [smem:[#allocation0]]
  $region121: #{forward.1} parent=0
    _
  %s19 = ssub.s32 1, %s17
  %s20 = scalar_select 0, %s19, %s17
  $region1: #{forward.1} parent=0
    #allocation2 [shape = 'u8[40960]{0}', space=vmem, size = 0xa000, scoped, tag = 'input window, operand 1, single buffered']
    #allocation3 [shape = 's32[2]{0}', space=sflag, size = 0x8, scoped, tag = 'scoped memory for forward.1']
    #allocation4 [shape = 'u8[737280]{0}', space=vmem, size = 0xb4000, scoped, tag = 'input window, operand 2, single buffered']
    #allocation5 [shape = 's32[1]{0}', space=sflag, size = 0x4, scoped, tag = 'scoped memory for forward.1']
    #allocation6 [shape = 'u8[1536]{0}', space=vmem, size = 0x800, scoped, tag = 'input window, operand 3, single buffered']
    #allocation7 [shape = 'u8[6144]{0}', space=vmem, size = 0x1800, scoped, tag = 'input window, operand 4, single buffered']
    #allocation8 [shape = 's32[1]{0}', space=sflag, size = 0x4, scoped, tag = 'scoped memory for forward.1']
    #allocation9 [shape = 'u8[491520]{0}', space=vmem, size = 0x78000, scoped, tag = 'input window, operand 5, single buffered']
    #allocation10 [shape = 'u8[20480]{0}', space=vmem, size = 0x5000, scoped, tag = 'input window, operand 10, single buffered']
    #allocation11 [shape = 's32[1]{0}', space=sflag, size = 0x4, scoped, tag = 'scoped memory for forward.1']
    %21 = vsyncpa [#allocation3], 0
    %22 = vsyncpa [#allocation5], 0
    %23 = vsyncpa [#allocation8], 0
    %24 = vsyncpa [#allocation11], 0
    loop: start=0, step=1, limit=4
    $region2: #{forward.1} parent=1 // loop_pre_header
      _
    $region3: #{forward.1} parent=1 // loop_header
      %s26 = sphi 0, %s30
      %p27 = scmp.ge.s32.totalorder %s26, 4
      %s36 = sphi 0, %s38
      %s39 = sphi 0, %s36
      %s40 = sphi 0, %s39
      %s56 = sphi 0, %s40
      %s60 = sphi 0, %s60
      %s62 = sphi 0, %s60
      %s63 = sphi 0, %s62
      %s77 = sphi 0, %s63
      %s81 = sphi 0, %s81
      %s83 = sphi 0, %s81
      %s84 = sphi 0, %s83
      %s98 = sphi 0, %s84
      %s102 = sphi 0, %s102
      %s104 = sphi 0, %s102
      %s105 = sphi 0, %s104
      %s119 = sphi 0, %s105
      %s123 = sphi 0, %s123
      %s125 = sphi 0, %s123
      %s126 = sphi 0, %s125
      %s140 = sphi 0, %s126
      %s144 = sphi 0, %s144
      %s146 = sphi 0, %s144
      %s147 = sphi 0, %s146
      %s161 = sphi 0, %s147
      %s165 = sphi 0, %s165
      %s167 = sphi 0, %s165
      %s168 = sphi 0, %s167
      %s182 = sphi 0, %s168
      %s186 = sphi 0, %s186
      %s188 = sphi 0, %s186
      %s189 = sphi 0, %s188
      %s203 = sphi 0, %s189
      %s207 = sphi 0, %s207
      %s209 = sphi 0, %s207
      %s210 = sphi 0, %s209
      %s224 = sphi 0, %s210
      %s228 = sphi 0, %s228
      %s230 = sphi 0, %s228
      %s231 = sphi 0, %s230
      %s245 = sphi 0, %s231
      %s249 = sphi 0, %s249
      %s251 = sphi 0, %s249
      %s252 = sphi 0, %s251
      %s266 = sphi 0, %s252
      %s270 = sphi 0, %s270
      %s272 = sphi 0, %s270
      %s273 = sphi 0, %s272
      %s287 = sphi 0, %s273
      %s291 = sphi 0, %s291
      %s293 = sphi 0, %s291
      %s294 = sphi 0, %s293
      %s308 = sphi 0, %s294
      %s312 = sphi 0, %s312
      %s314 = sphi 0, %s312
      %s315 = sphi 0, %s314
      %s329 = sphi 0, %s315
      %s333 = sphi 0, %s333
      %s335 = sphi 0, %s333
      %s336 = sphi 0, %s335
      %s350 = sphi 0, %s336
      %s354 = sphi 0, %s354
      %s356 = sphi 0, %s354
      %s357 = sphi 0, %s356
      %s371 = sphi 0, %s357
      %s377 = sphi 0, %s379
      %s380 = sphi 0, %s377
      %s381 = sphi 0, %s380
      %s397 = sphi 0, %s381
    $region4: #{forward.1} parent=1 // loop_header_branch
      %29 = sbr.rel (%p27) target = $region8
    $region5: #{forward.1} parent=1 // loop_body
      %s31 = ssub.s32 %s26, 1
      %s32 = ssub.s32 %s26, 2
      %s33 = sadd.s32 %s26, 1
      %s34 = ssub.s32 %s26, %s33
      %p35 = scmp.eq.s32.totalorder %s34, 0
      %s37 = sadd.s32 %s36, 1
      %s38 = scalar_select %p35, %s36, %s37
      %p41 = pneg %p35
      %p42 = scmp.eq.s32.totalorder %s26, 1
      %p43 = por %p41, %p42
      %p44 = scmp.ne.s32.totalorder %s36, %s39
      %p45 = scmp.eq.s32.totalorder %s26, 0
      %p46 = por %p44, %p45
      %p47 = scmp.ne.s32.totalorder %s36, %s39
      %p48 = scmp.eq.s32.totalorder %s31, 1
      %p49 = por %p47, %p48
      %p50 = scmp.ne.s32.totalorder %s39, %s40
      %p51 = scmp.eq.s32.totalorder %s31, 0
      %p52 = por %p50, %p51
      %p53 = scmp.ne.s32.totalorder %s39, %s40
      %p54 = scmp.eq.s32.totalorder %s32, 1
      %p55 = por %p53, %p54
      %p57 = scmp.ne.s32.totalorder %s40, %s56
      %p58 = scmp.eq.s32.totalorder %s32, 0
      %p59 = por %p57, %p58
      %s61 = sadd.s32 %s60, 1
      %p64 = scmp.eq.s32.totalorder %s26, 1
      %p65 = scmp.ne.s32.totalorder %s60, %s62
      %p66 = scmp.eq.s32.totalorder %s26, 0
      %p67 = por %p65, %p66
      %p68 = scmp.ne.s32.totalorder %s60, %s62
      %p69 = scmp.eq.s32.totalorder %s31, 1
      %p70 = por %p68, %p69
      %p71 = scmp.ne.s32.totalorder %s62, %s63
      %p72 = scmp.eq.s32.totalorder %s31, 0
      %p73 = por %p71, %p72
      %p74 = scmp.ne.s32.totalorder %s62, %s63
      %p75 = scmp.eq.s32.totalorder %s32, 1
      %p76 = por %p74, %p75
      %p78 = scmp.ne.s32.totalorder %s63, %s77
      %p79 = scmp.eq.s32.totalorder %s32, 0
      %p80 = por %p78, %p79
      %s82 = sadd.s32 %s81, 1
      %p85 = scmp.eq.s32.totalorder %s26, 1
      %p86 = scmp.ne.s32.totalorder %s81, %s83
      %p87 = scmp.eq.s32.totalorder %s26, 0
      %p88 = por %p86, %p87
      %p89 = scmp.ne.s32.totalorder %s81, %s83
      %p90 = scmp.eq.s32.totalorder %s31, 1
      %p91 = por %p89, %p90
      %p92 = scmp.ne.s32.totalorder %s83, %s84
      %p93 = scmp.eq.s32.totalorder %s31, 0
      %p94 = por %p92, %p93
      %p95 = scmp.ne.s32.totalorder %s83, %s84
      %p96 = scmp.eq.s32.totalorder %s32, 1
      %p97 = por %p95, %p96
      %p99 = scmp.ne.s32.totalorder %s84, %s98
      %p100 = scmp.eq.s32.totalorder %s32, 0
      %p101 = por %p99, %p100
      %s103 = sadd.s32 %s102, 1
      %p106 = scmp.eq.s32.totalorder %s26, 1
      %p107 = scmp.ne.s32.totalorder %s102, %s104
      %p108 = scmp.eq.s32.totalorder %s26, 0
      %p109 = por %p107, %p108
      %p110 = scmp.ne.s32.totalorder %s102, %s104
      %p111 = scmp.eq.s32.totalorder %s31, 1
      %p112 = por %p110, %p111
      %p113 = scmp.ne.s32.totalorder %s104, %s105
      %p114 = scmp.eq.s32.totalorder %s31, 0
      %p115 = por %p113, %p114
      %p116 = scmp.ne.s32.totalorder %s104, %s105
      %p117 = scmp.eq.s32.totalorder %s32, 1
      %p118 = por %p116, %p117
      %p120 = scmp.ne.s32.totalorder %s105, %s119
      %p121 = scmp.eq.s32.totalorder %s32, 0
      %p122 = por %p120, %p121
      %s124 = sadd.s32 %s123, 1
      %p127 = scmp.eq.s32.totalorder %s26, 1
      %p128 = scmp.ne.s32.totalorder %s123, %s125
      %p129 = scmp.eq.s32.totalorder %s26, 0
      %p130 = por %p128, %p129
      %p131 = scmp.ne.s32.totalorder %s123, %s125
      %p132 = scmp.eq.s32.totalorder %s31, 1
      %p133 = por %p131, %p132
      %p134 = scmp.ne.s32.totalorder %s125, %s126
      %p135 = scmp.eq.s32.totalorder %s31, 0
      %p136 = por %p134, %p135
      %p137 = scmp.ne.s32.totalorder %s125, %s126
      %p138 = scmp.eq.s32.totalorder %s32, 1
      %p139 = por %p137, %p138
      %p141 = scmp.ne.s32.totalorder %s126, %s140
      %p142 = scmp.eq.s32.totalorder %s32, 0
      %p143 = por %p141, %p142
      %s145 = sadd.s32 %s144, 1
      %p148 = scmp.eq.s32.totalorder %s26, 1
      %p149 = scmp.ne.s32.totalorder %s144, %s146
      %p150 = scmp.eq.s32.totalorder %s26, 0
      %p151 = por %p149, %p150
      %p152 = scmp.ne.s32.totalorder %s144, %s146
      %p153 = scmp.eq.s32.totalorder %s31, 1
      %p154 = por %p152, %p153
      %p155 = scmp.ne.s32.totalorder %s146, %s147
      %p156 = scmp.eq.s32.totalorder %s31, 0
      %p157 = por %p155, %p156
      %p158 = scmp.ne.s32.totalorder %s146, %s147
      %p159 = scmp.eq.s32.totalorder %s32, 1
      %p160 = por %p158, %p159
      %p162 = scmp.ne.s32.totalorder %s147, %s161
      %p163 = scmp.eq.s32.totalorder %s32, 0
      %p164 = por %p162, %p163
      %s166 = sadd.s32 %s165, 1
      %p169 = scmp.eq.s32.totalorder %s26, 1
      %p170 = scmp.ne.s32.totalorder %s165, %s167
      %p171 = scmp.eq.s32.totalorder %s26, 0
      %p172 = por %p170, %p171
      %p173 = scmp.ne.s32.totalorder %s165, %s167
      %p174 = scmp.eq.s32.totalorder %s31, 1
      %p175 = por %p173, %p174
      %p176 = scmp.ne.s32.totalorder %s167, %s168
      %p177 = scmp.eq.s32.totalorder %s31, 0
      %p178 = por %p176, %p177
      %p179 = scmp.ne.s32.totalorder %s167, %s168
      %p180 = scmp.eq.s32.totalorder %s32, 1
      %p181 = por %p179, %p180
      %p183 = scmp.ne.s32.totalorder %s168, %s182
      %p184 = scmp.eq.s32.totalorder %s32, 0
      %p185 = por %p183, %p184
      %s187 = sadd.s32 %s186, 1
      %p190 = scmp.eq.s32.totalorder %s26, 1
      %p191 = scmp.ne.s32.totalorder %s186, %s188
      %p192 = scmp.eq.s32.totalorder %s26, 0
      %p193 = por %p191, %p192
      %p194 = scmp.ne.s32.totalorder %s186, %s188
      %p195 = scmp.eq.s32.totalorder %s31, 1
      %p196 = por %p194, %p195
      %p197 = scmp.ne.s32.totalorder %s188, %s189
      %p198 = scmp.eq.s32.totalorder %s31, 0
      %p199 = por %p197, %p198
      %p200 = scmp.ne.s32.totalorder %s188, %s189
      %p201 = scmp.eq.s32.totalorder %s32, 1
      %p202 = por %p200, %p201
      %p204 = scmp.ne.s32.totalorder %s189, %s203
      %p205 = scmp.eq.s32.totalorder %s32, 0
      %p206 = por %p204, %p205
      %s208 = sadd.s32 %s207, 1
      %p211 = scmp.eq.s32.totalorder %s26, 1
      %p212 = scmp.ne.s32.totalorder %s207, %s209
      %p213 = scmp.eq.s32.totalorder %s26, 0
      %p214 = por %p212, %p213
      %p215 = scmp.ne.s32.totalorder %s207, %s209
      %p216 = scmp.eq.s32.totalorder %s31, 1
      %p217 = por %p215, %p216
      %p218 = scmp.ne.s32.totalorder %s209, %s210
      %p219 = scmp.eq.s32.totalorder %s31, 0
      %p220 = por %p218, %p219
      %p221 = scmp.ne.s32.totalorder %s209, %s210
      %p222 = scmp.eq.s32.totalorder %s32, 1
      %p223 = por %p221, %p222
      %p225 = scmp.ne.s32.totalorder %s210, %s224
      %p226 = scmp.eq.s32.totalorder %s32, 0
      %p227 = por %p225, %p226
      %s229 = sadd.s32 %s228, 1
      %p232 = scmp.eq.s32.totalorder %s26, 1
      %p233 = scmp.ne.s32.totalorder %s228, %s230
      %p234 = scmp.eq.s32.totalorder %s26, 0
      %p235 = por %p233, %p234
      %p236 = scmp.ne.s32.totalorder %s228, %s230
      %p237 = scmp.eq.s32.totalorder %s31, 1
      %p238 = por %p236, %p237
      %p239 = scmp.ne.s32.totalorder %s230, %s231
      %p240 = scmp.eq.s32.totalorder %s31, 0
      %p241 = por %p239, %p240
      %p242 = scmp.ne.s32.totalorder %s230, %s231
      %p243 = scmp.eq.s32.totalorder %s32, 1
      %p244 = por %p242, %p243
      %p246 = scmp.ne.s32.totalorder %s231, %s245
      %p247 = scmp.eq.s32.totalorder %s32, 0
      %p248 = por %p246, %p247
      %s250 = sadd.s32 %s249, 1
      %p253 = scmp.eq.s32.totalorder %s26, 1
      %p254 = scmp.ne.s32.totalorder %s249, %s251
      %p255 = scmp.eq.s32.totalorder %s26, 0
      %p256 = por %p254, %p255
      %p257 = scmp.ne.s32.totalorder %s249, %s251
      %p258 = scmp.eq.s32.totalorder %s31, 1
      %p259 = por %p257, %p258
      %p260 = scmp.ne.s32.totalorder %s251, %s252
      %p261 = scmp.eq.s32.totalorder %s31, 0
      %p262 = por %p260, %p261
      %p263 = scmp.ne.s32.totalorder %s251, %s252
      %p264 = scmp.eq.s32.totalorder %s32, 1
      %p265 = por %p263, %p264
      %p267 = scmp.ne.s32.totalorder %s252, %s266
      %p268 = scmp.eq.s32.totalorder %s32, 0
      %p269 = por %p267, %p268
      %s271 = sadd.s32 %s270, 1
      %p274 = scmp.eq.s32.totalorder %s26, 1
      %p275 = scmp.ne.s32.totalorder %s270, %s272
      %p276 = scmp.eq.s32.totalorder %s26, 0
      %p277 = por %p275, %p276
      %p278 = scmp.ne.s32.totalorder %s270, %s272
      %p279 = scmp.eq.s32.totalorder %s31, 1
      %p280 = por %p278, %p279
      %p281 = scmp.ne.s32.totalorder %s272, %s273
      %p282 = scmp.eq.s32.totalorder %s31, 0
      %p283 = por %p281, %p282
      %p284 = scmp.ne.s32.totalorder %s272, %s273
      %p285 = scmp.eq.s32.totalorder %s32, 1
      %p286 = por %p284, %p285
      %p288 = scmp.ne.s32.totalorder %s273, %s287
      %p289 = scmp.eq.s32.totalorder %s32, 0
      %p290 = por %p288, %p289
      %s292 = sadd.s32 %s291, 1
      %p295 = scmp.eq.s32.totalorder %s26, 1
      %p296 = scmp.ne.s32.totalorder %s291, %s293
      %p297 = scmp.eq.s32.totalorder %s26, 0
      %p298 = por %p296, %p297
      %p299 = scmp.ne.s32.totalorder %s291, %s293
      %p300 = scmp.eq.s32.totalorder %s31, 1
      %p301 = por %p299, %p300
      %p302 = scmp.ne.s32.totalorder %s293, %s294
      %p303 = scmp.eq.s32.totalorder %s31, 0
      %p304 = por %p302, %p303
      %p305 = scmp.ne.s32.totalorder %s293, %s294
      %p306 = scmp.eq.s32.totalorder %s32, 1
      %p307 = por %p305, %p306
      %p309 = scmp.ne.s32.totalorder %s294, %s308
      %p310 = scmp.eq.s32.totalorder %s32, 0
      %p311 = por %p309, %p310
      %s313 = sadd.s32 %s312, 1
      %p316 = scmp.eq.s32.totalorder %s26, 1
      %p317 = scmp.ne.s32.totalorder %s312, %s314
      %p318 = scmp.eq.s32.totalorder %s26, 0
      %p319 = por %p317, %p318
      %p320 = scmp.ne.s32.totalorder %s312, %s314
      %p321 = scmp.eq.s32.totalorder %s31, 1
      %p322 = por %p320, %p321
      %p323 = scmp.ne.s32.totalorder %s314, %s315
      %p324 = scmp.eq.s32.totalorder %s31, 0
      %p325 = por %p323, %p324
      %p326 = scmp.ne.s32.totalorder %s314, %s315
      %p327 = scmp.eq.s32.totalorder %s32, 1
      %p328 = por %p326, %p327
      %p330 = scmp.ne.s32.totalorder %s315, %s329
      %p331 = scmp.eq.s32.totalorder %s32, 0
      %p332 = por %p330, %p331
      %s334 = sadd.s32 %s333, 1
      %p337 = scmp.eq.s32.totalorder %s26, 1
      %p338 = scmp.ne.s32.totalorder %s333, %s335
      %p339 = scmp.eq.s32.totalorder %s26, 0
      %p340 = por %p338, %p339
      %p341 = scmp.ne.s32.totalorder %s333, %s335
      %p342 = scmp.eq.s32.totalorder %s31, 1
      %p343 = por %p341, %p342
      %p344 = scmp.ne.s32.totalorder %s335, %s336
      %p345 = scmp.eq.s32.totalorder %s31, 0
      %p346 = por %p344, %p345
      %p347 = scmp.ne.s32.totalorder %s335, %s336
      %p348 = scmp.eq.s32.totalorder %s32, 1
      %p349 = por %p347, %p348
      %p351 = scmp.ne.s32.totalorder %s336, %s350
      %p352 = scmp.eq.s32.totalorder %s32, 0
      %p353 = por %p351, %p352
      %s355 = sadd.s32 %s354, 1
      %p358 = scmp.eq.s32.totalorder %s26, 1
      %p359 = scmp.ne.s32.totalorder %s354, %s356
      %p360 = scmp.eq.s32.totalorder %s26, 0
      %p361 = por %p359, %p360
      %p362 = scmp.ne.s32.totalorder %s354, %s356
      %p363 = scmp.eq.s32.totalorder %s31, 1
      %p364 = por %p362, %p363
      %p365 = scmp.ne.s32.totalorder %s356, %s357
      %p366 = scmp.eq.s32.totalorder %s31, 0
      %p367 = por %p365, %p366
      %p368 = scmp.ne.s32.totalorder %s356, %s357
      %p369 = scmp.eq.s32.totalorder %s32, 1
      %p370 = por %p368, %p369
      %p372 = scmp.ne.s32.totalorder %s357, %s371
      %p373 = scmp.eq.s32.totalorder %s32, 0
      %p374 = por %p372, %p373
      %s375 = ssub.s32 %s26, %s33
      %p376 = scmp.eq.s32.totalorder %s375, 0
      %s378 = sadd.s32 %s377, 1
      %s379 = scalar_select %p376, %s377, %s378
      %p382 = pneg %p376
      %p383 = scmp.eq.s32.totalorder %s26, 1
      %p384 = por %p382, %p383
      %p385 = scmp.ne.s32.totalorder %s377, %s380
      %p386 = scmp.eq.s32.totalorder %s26, 0
      %p387 = por %p385, %p386
      %p388 = scmp.ne.s32.totalorder %s377, %s380
      %p389 = scmp.eq.s32.totalorder %s31, 1
      %p390 = por %p388, %p389
      %p391 = scmp.ne.s32.totalorder %s380, %s381
      %p392 = scmp.eq.s32.totalorder %s31, 0
      %p393 = por %p391, %p392
      %p394 = scmp.ne.s32.totalorder %s380, %s381
      %p395 = scmp.eq.s32.totalorder %s32, 1
      %p396 = por %p394, %p395
      %p398 = scmp.ne.s32.totalorder %s381, %s397
      %p399 = scmp.eq.s32.totalorder %s32, 0
      %p400 = por %p398, %p399
      %p401 = scmp.le.s32.totalorder 1, %s26
      %p402 = scmp.lt.s32.totalorder %s26, 3
      %p403 = pnand %p401, %p402
      %p404 = pneg %p403
      // Predicated region
      $region9: #{forward.1} parent=5 // pred_check
        _
      $region10: #{forward.1} parent=5 // pred_check_branch
        %406 = sbr.rel (%p403) target = $region12
      $region11: #{forward.1} parent=5 // pred_region
        %s407 = ssub.s32 %s26, 1
        // Predicated region
        $region13: #{forward.1} parent=11 // pred_check
          %p408 = pneg %p73
        $region14: #{forward.1} parent=11 // pred_check_branch
          %410 = sbr.rel (%p408) target = $region16
        $region15: #{forward.1} parent=11 // pred_region
          %412 = vsyncadd [#allocation3], 0
          %s413 = sshll.u32 %s1, 4
          %s414 = int_to_ptr.hbm [resolvable:$true] %s413
          %s415 = sshll.u32 [#allocation2], 4
          %s416 = int_to_ptr.vmem [resolvable:$true] %s415
          %421 = dma.hbm_to_vmem [thread:$0]  %s414, 1280, %s416, [#allocation3], 128, 128, 8
        $region16: #{forward.1} parent=11 // pred_fallthru
          _
        // Predicated region
        $region17: #{forward.1} parent=11 // pred_check
          %p422 = pneg %p94
        $region18: #{forward.1} parent=11 // pred_check_branch
          %424 = sbr.rel (%p422) target = $region20
        $region19: #{forward.1} parent=11 // pred_region
          %426 = vsyncadd [#allocation5], 0
          %s427 = sshll.u32 %s2, 4
          %s428 = int_to_ptr.hbm [resolvable:$true] %s427
          %s429 = sshll.u32 [#allocation4], 4
          %s430 = int_to_ptr.vmem [resolvable:$true] %s429
          %435 = dma.hbm_to_vmem [thread:$0]  %s428, 23040, %s430, [#allocation5], 384, 384, 24
        $region20: #{forward.1} parent=11 // pred_fallthru
          _
        // Predicated region
        $region21: #{forward.1} parent=11 // pred_check
          %p436 = pneg %p115
        $region22: #{forward.1} parent=11 // pred_check_branch
          %438 = sbr.rel (%p436) target = $region24
        $region23: #{forward.1} parent=11 // pred_region
          %440 = vsyncadd [#allocation5], 0
          %s442 = sshll.u32 %s3, 4
          %s443 = int_to_ptr.hbm [resolvable:$true] %s442
          %s444 = sshll.u32 [#allocation6], 4
          %s445 = int_to_ptr.vmem [resolvable:$true] %s444
          %447 = dma.hbm_to_vmem [thread:$0]  %s443, 48, %s445, [#allocation5]
        $region24: #{forward.1} parent=11 // pred_fallthru
          _
        // Predicated region
        $region25: #{forward.1} parent=11 // pred_check
          %p448 = pneg %p136
        $region26: #{forward.1} parent=11 // pred_check_branch
          %450 = sbr.rel (%p448) target = $region28
        $region27: #{forward.1} parent=11 // pred_region
          %452 = vsyncadd [#allocation8], 0
          %s453 = sshll.u32 %s4, 4
          %s454 = int_to_ptr.hbm [resolvable:$true] %s453
          %s455 = sshll.u32 [#allocation7], 4
          %s456 = int_to_ptr.vmem [resolvable:$true] %s455
          %461 = dma.hbm_to_vmem [thread:$0]  %s454, 192, %s456, [#allocation8], 64, 64, 4
        $region28: #{forward.1} parent=11 // pred_fallthru
          _
        // Predicated region
        $region29: #{forward.1} parent=11 // pred_check
          %p462 = pneg %p157
        $region30: #{forward.1} parent=11 // pred_check_branch
          %464 = sbr.rel (%p462) target = $region32
        $region31: #{forward.1} parent=11 // pred_region
          %466 = vsyncadd [#allocation8], 0
          %s467 = sshll.u32 %s5, 4
          %s468 = int_to_ptr.hbm [resolvable:$true] %s467
          %s469 = sshll.u32 [#allocation9], 4
          %s470 = int_to_ptr.vmem [resolvable:$true] %s469
          %475 = dma.hbm_to_vmem [thread:$0]  %s468, 15360, %s470, [#allocation8], 128, 128, 8
        $region32: #{forward.1} parent=11 // pred_fallthru
          _
        // Predicated region
        $region33: #{forward.1} parent=11 // pred_check
          %p476 = pneg %p178
        $region34: #{forward.1} parent=11 // pred_check_branch
          %478 = sbr.rel (%p476) target = $region36
        $region35: #{forward.1} parent=11 // pred_region
          _
        $region36: #{forward.1} parent=11 // pred_fallthru
          _
        // Predicated region
        $region37: #{forward.1} parent=11 // pred_check
          %p479 = pneg %p199
        $region38: #{forward.1} parent=11 // pred_check_branch
          %481 = sbr.rel (%p479) target = $region40
        $region39: #{forward.1} parent=11 // pred_region
          _
        $region40: #{forward.1} parent=11 // pred_fallthru
          _
        // Predicated region
        $region41: #{forward.1} parent=11 // pred_check
          %p482 = pneg %p220
        $region42: #{forward.1} parent=11 // pred_check_branch
          %484 = sbr.rel (%p482) target = $region44
        $region43: #{forward.1} parent=11 // pred_region
          _
        $region44: #{forward.1} parent=11 // pred_fallthru
          _
        // Predicated region
        $region45: #{forward.1} parent=11 // pred_check
          %p485 = pneg %p241
        $region46: #{forward.1} parent=11 // pred_check_branch
          %487 = sbr.rel (%p485) target = $region48
        $region47: #{forward.1} parent=11 // pred_region
          _
        $region48: #{forward.1} parent=11 // pred_fallthru
          _
        // Predicated region
        $region49: #{forward.1} parent=11 // pred_check
          %p488 = pneg %p262
        $region50: #{forward.1} parent=11 // pred_check_branch
          %490 = sbr.rel (%p488) target = $region52
        $region51: #{forward.1} parent=11 // pred_region
          %492 = vsyncadd [#allocation11], 0
          %s493 = sshll.u32 %s10, 4
          %s494 = int_to_ptr.hbm [resolvable:$true] %s493
          %s495 = sshll.u32 [#allocation10], 4
          %s496 = int_to_ptr.vmem [resolvable:$true] %s495
          %501 = dma.hbm_to_vmem [thread:$0]  %s494, 640, %s496, [#allocation11], 128, 128, 8
        $region52: #{forward.1} parent=11 // pred_fallthru
          _
        // Predicated region
        $region53: #{forward.1} parent=11 // pred_check
          %p502 = pneg %p283
        $region54: #{forward.1} parent=11 // pred_check_branch
          %504 = sbr.rel (%p502) target = $region56
        $region55: #{forward.1} parent=11 // pred_region
          _
        $region56: #{forward.1} parent=11 // pred_fallthru
          _
        // Predicated region
        $region57: #{forward.1} parent=11 // pred_check
          %p505 = pneg %p304
        $region58: #{forward.1} parent=11 // pred_check_branch
          %507 = sbr.rel (%p505) target = $region60
        $region59: #{forward.1} parent=11 // pred_region
          _
        $region60: #{forward.1} parent=11 // pred_fallthru
          _
        // Predicated region
        $region61: #{forward.1} parent=11 // pred_check
          %p508 = pneg %p325
        $region62: #{forward.1} parent=11 // pred_check_branch
          %510 = sbr.rel (%p508) target = $region64
        $region63: #{forward.1} parent=11 // pred_region
          _
        $region64: #{forward.1} parent=11 // pred_fallthru
          _
        // Predicated region
        $region65: #{forward.1} parent=11 // pred_check
          %p511 = pneg %p346
        $region66: #{forward.1} parent=11 // pred_check_branch
          %513 = sbr.rel (%p511) target = $region68
        $region67: #{forward.1} parent=11 // pred_region
          _
        $region68: #{forward.1} parent=11 // pred_fallthru
          _
        // Predicated region
        $region69: #{forward.1} parent=11 // pred_check
          %p514 = pneg %p367
        $region70: #{forward.1} parent=11 // pred_check_branch
          %516 = sbr.rel (%p514) target = $region72
        $region71: #{forward.1} parent=11 // pred_region
          _
        $region72: #{forward.1} parent=11 // pred_fallthru
          _
      $region12: #{forward.1} parent=5 // pred_fallthru
        _
      %p517 = scmp.lt.s32.totalorder %s26, 2
      // Predicated region
      $region73: #{forward.1} parent=5 // pred_check
        %p518 = pneg %p517
      $region74: #{forward.1} parent=5 // pred_check_branch
        %520 = sbr.rel (%p518) target = $region76
      $region75: #{forward.1} parent=5 // pred_region
        // Predicated region
        $region77: #{forward.1} parent=75 // pred_check
          %p521 = pneg %p46
        $region78: #{forward.1} parent=75 // pred_check_branch
          %523 = sbr.rel (%p521) target = $region80
        $region79: #{forward.1} parent=75 // pred_region
          %p524 = scmp.lt.s32.totalorder %s26, 1
          %s525 = scalar_select %p524, %s26, 1
          %s526 = smul.addr %s525, 4
          %s527 = smul.addr %s526, 8
          %s528 = scalar_lea.vmem %s0, %s527
        $region80: #{forward.1} parent=75 // pred_fallthru
          _
      $region76: #{forward.1} parent=5 // pred_fallthru
        _
      %p529 = scmp.le.s32.totalorder 1, %s26
      %p530 = scmp.lt.s32.totalorder %s26, 3
      %p531 = pnand %p529, %p530
      %p532 = pneg %p531
      // Predicated region
      $region81: #{forward.1} parent=5 // pred_check
        _
      $region82: #{forward.1} parent=5 // pred_check_branch
        %534 = sbr.rel (%p531) target = $region84
      $region83: #{forward.1} parent=5 // pred_region
        %s535 = ssub.s32 %s26, 1
        // Predicated region
        $region85: #{forward.1} parent=83 // pred_check
          %p536 = pneg %p73
        $region86: #{forward.1} parent=83 // pred_check_branch
          %538 = sbr.rel (%p536) target = $region88
        $region87: #{forward.1} parent=83 // pred_region
          %540 = dma.done [#allocation3], 1280
        $region88: #{forward.1} parent=83 // pred_fallthru
          _
        // Predicated region
        $region89: #{forward.1} parent=83 // pred_check
          %p541 = pneg %p94
        $region90: #{forward.1} parent=83 // pred_check_branch
          %543 = sbr.rel (%p541) target = $region92
        $region91: #{forward.1} parent=83 // pred_region
          %545 = dma.done [#allocation5], 23040
        $region92: #{forward.1} parent=83 // pred_fallthru
          _
        // Predicated region
        $region93: #{forward.1} parent=83 // pred_check
          %p546 = pneg %p115
        $region94: #{forward.1} parent=83 // pred_check_branch
          %548 = sbr.rel (%p546) target = $region96
        $region95: #{forward.1} parent=83 // pred_region
          %550 = dma.done [#allocation5], 48
        $region96: #{forward.1} parent=83 // pred_fallthru
          _
        // Predicated region
        $region97: #{forward.1} parent=83 // pred_check
          %p551 = pneg %p136
        $region98: #{forward.1} parent=83 // pred_check_branch
          %553 = sbr.rel (%p551) target = $region100
        $region99: #{forward.1} parent=83 // pred_region
          %555 = dma.done [#allocation8], 192
        $region100: #{forward.1} parent=83 // pred_fallthru
          _
        // Predicated region
        $region101: #{forward.1} parent=83 // pred_check
          %p556 = pneg %p157
        $region102: #{forward.1} parent=83 // pred_check_branch
          %558 = sbr.rel (%p556) target = $region104
        $region103: #{forward.1} parent=83 // pred_region
          %560 = dma.done [#allocation8], 15360
        $region104: #{forward.1} parent=83 // pred_fallthru
          _
        // Predicated region
        $region105: #{forward.1} parent=83 // pred_check
          %p561 = pneg %p262
        $region106: #{forward.1} parent=83 // pred_check_branch
          %563 = sbr.rel (%p561) target = $region108
        $region107: #{forward.1} parent=83 // pred_region
          %565 = dma.done [#allocation11], 640
        $region108: #{forward.1} parent=83 // pred_fallthru
          _
        %p566 = scmp.lt.s32.totalorder %s31, 1
        %s567 = scalar_select %p566, %s31, 1
        %s568 = smul.addr %s567, 4
        %s569 = smul.addr %s568, 8
        %s570 = scalar_lea.vmem %s0, %s569
        %p571 = pneg %p52
        %p572 = pneg %p49
        %p573 = pneg %p73
        %p574 = pneg %p70
        %p575 = pneg %p94
        %p576 = pneg %p91
        %p577 = pneg %p115
        %p578 = pneg %p112
        %p579 = pneg %p136
        %p580 = pneg %p133
        %p581 = pneg %p157
        %p582 = pneg %p154
        %p583 = pneg %p178
        %p584 = pneg %p175
        %p585 = pneg %p199
        %p586 = pneg %p196
        %p587 = pneg %p220
        %p588 = pneg %p217
        %p589 = pneg %p241
        %p590 = pneg %p238
        %p591 = pneg %p262
        %p592 = pneg %p259
        %p593 = pneg %p283
        %p594 = pneg %p280
        %p595 = pneg %p304
        %p596 = pneg %p301
        %p597 = pneg %p325
        %p598 = pneg %p322
        %p599 = pneg %p346
        %p600 = pneg %p343
        %p601 = pneg %p367
        %p602 = pneg %p364
        %p603 = pneg %p393
        %p604 = pneg %p390
        %p605 = scmp.lt.s32.totalorder %s31, 1
        %s606 = scalar_select %p605, %s31, 1
        %s607 = smul.addr %s606, 3
        %s608 = smul.addr %s607, 8
        %s609 = scalar_lea.vmem %s16, %s608
        %p610 = scmp.lt.s32.totalorder %s31, 1
        %s611 = scalar_select %p610, %s31, 1
        %s612 = smul.addr %s611, 4
        %s613 = smul.addr %s612, 8
        %s614 = scalar_lea.vmem %s0, %s613
        %p615 = scmp.lt.s32.totalorder %s31, 1
        %s616 = scalar_select %p615, %s31, 1
        %s617 = smul.addr %s616, 3
        %s618 = smul.addr %s617, 8
        %s619 = scalar_lea.vmem %s16, %s618
        %v620 = vld [vmem:[%s614] sm:$0xff]
        %v621 = vld [vmem:[%s614 + $0x8] sm:$0xff]
        %v622 = vld [vmem:[%s614 + $0x10] sm:$0xff]
        %v623 = vld [vmem:[%s614 + $0x18] sm:$0xff]
        %v624 = vld [vmem:[#allocation2] sm:$0xff]
        %v625 = vld [vmem:[#allocation2 + $0x8] sm:$0x3]
        %vm626 = vcmask 261120
        %v628 = vsel %vm626, %v624, 0
        %v631 = vsel %vm626, %v625, 0
        %633 = vmatpush.msra.mxu0 0.0
        %634 = vmatpush.msra.mxu0 0.0
        %635 = vmatpush.msra.mxu0 0.0
        %636 = vmatpush.msra.mxu0 0.0
        %637 = vmatpush.msra.mxu0 0.0
        %638 = vmatpush.msra.mxu0 0.0
        %639 = vmatpush.msra.mxu0 0.0
        %640 = vmatpush.msra.mxu0 0.0
        %641 = vmatpush.msra.mxu0 0.0
        %642 = vmatpush.msra.mxu0 0.0
        %643 = vmatpush.msra.mxu0 0.0
        %644 = vmatpush.msra.mxu0 0.0
        %645 = vmatpush.msra.mxu0 %v623
        %646 = vmatpush.msra.mxu0 %v622
        %647 = vmatpush.msra.mxu0 %v621
        %648 = vmatpush.msra.mxu0 %v620
        %649 = vmatmul.f32.gmra.mxu0 %v628
        %v650 = vpop.f32.mrf.mxu0
        %v651 = vadd.f32 0.0, %v650
        %652 = vmatmul.f32.gmra.mxu0 %v631
        %v653 = vpop.f32.mrf.mxu0
        %v654 = vadd.f32 0.0, %v653
        %655 = vdwg.mxu0
        %v656 = vld [vmem:[#allocation4] sm:$0xff]
        %v657 = vld [vmem:[#allocation4 + $0x8] sm:$0xff]
        %v658 = vld [vmem:[#allocation4 + $0x10] sm:$0xff]
        %v659 = vld [vmem:[#allocation4 + $0x18] sm:$0xff]
        %v660 = vld [vmem:[#allocation4 + $0x20] sm:$0xff]
        %v661 = vld [vmem:[#allocation4 + $0x28] sm:$0xff]
        %v662 = vld [vmem:[#allocation4 + $0x30] sm:$0xff]
        %v663 = vld [vmem:[#allocation4 + $0x38] sm:$0xff]
        %v664 = vld [vmem:[#allocation4 + $0x40] sm:$0xff]
        %v665 = vld [vmem:[#allocation4 + $0x48] sm:$0xff]
        %v666 = vld [vmem:[#allocation4 + $0x50] sm:$0xff]
        %v667 = vld [vmem:[#allocation4 + $0x58] sm:$0xff]
        %v668 = vld [vmem:[#allocation4 + $0x60] sm:$0xff]
        %v669 = vld [vmem:[#allocation4 + $0x68] sm:$0xff]
        %v670 = vld [vmem:[#allocation4 + $0x70] sm:$0xff]
        %v671 = vld [vmem:[#allocation4 + $0x78] sm:$0xff]
        %v672 = vld [vmem:[#allocation4 + $0x80] sm:$0xff]
        %v673 = vld [vmem:[#allocation4 + $0x88] sm:$0xff]
        %v674 = vld [vmem:[#allocation4 + $0x90] sm:$0xff]
        %v675 = vld [vmem:[#allocation4 + $0x98] sm:$0xff]
        %v676 = vld [vmem:[#allocation4 + $0xa0] sm:$0xff]
        %v677 = vld [vmem:[#allocation4 + $0xa8] sm:$0xff]
        %v678 = vld [vmem:[#allocation4 + $0xb0] sm:$0xff]
        %v679 = vld [vmem:[#allocation4 + $0xb8] sm:$0xff]
        %v680 = vld [vmem:[#allocation4 + $0xc0] sm:$0xff]
        %v681 = vld [vmem:[#allocation4 + $0xc8] sm:$0xff]
        %v682 = vld [vmem:[#allocation4 + $0xd0] sm:$0xff]
        %v683 = vld [vmem:[#allocation4 + $0xd8] sm:$0xff]
        %v684 = vld [vmem:[#allocation4 + $0xe0] sm:$0xff]
        %v685 = vld [vmem:[#allocation4 + $0xe8] sm:$0xff]
        %v686 = vld [vmem:[#allocation4 + $0xf0] sm:$0xff]
        %v687 = vld [vmem:[#allocation4 + $0xf8] sm:$0xff]
        %v688 = vld [vmem:[#allocation4 + $0x100] sm:$0xff]
        %v689 = vld [vmem:[#allocation4 + $0x108] sm:$0xff]
        %v690 = vld [vmem:[#allocation4 + $0x110] sm:$0xff]
        %v691 = vld [vmem:[#allocation4 + $0x118] sm:$0xff]
        %s692 = scalar_lea.vmem [#allocation2], 16
        %v693 = vld [vmem:[%s692] sm:$0xff]
        %v694 = vld [vmem:[%s692 + $0x8] sm:$0x3]
        %v696 = vsel %vm626, %v693, 0
        %v699 = vsel %vm626, %v694, 0
        %701 = vmatpush.msra.mxu0 0.0
        %702 = vmatpush.msra.mxu0 0.0
        %703 = vmatpush.msra.mxu0 0.0
        %704 = vmatpush.msra.mxu0 0.0
        %705 = vmatpush.msra.mxu0 0.0
        %706 = vmatpush.msra.mxu0 0.0
        %707 = vmatpush.msra.mxu0 0.0
        %708 = vmatpush.msra.mxu0 0.0
        %709 = vmatpush.msra.mxu0 0.0
        %710 = vmatpush.msra.mxu0 0.0
        %711 = vmatpush.msra.mxu0 0.0
        %712 = vmatpush.msra.mxu0 0.0
        %713 = vmatpush.msra.mxu0 %v623
        %714 = vmatpush.msra.mxu0 %v622
        %715 = vmatpush.msra.mxu0 %v621
        %716 = vmatpush.msra.mxu0 %v620
        %717 = vmatmul.f32.gmra.mxu0 %v696
        %v718 = vpop.f32.mrf.mxu0
        %v719 = vadd.f32 0.0, %v718
        %720 = vmatmul.f32.gmra.mxu0 %v699
        %v721 = vpop.f32.mrf.mxu0
        %v722 = vadd.f32 0.0, %v721
        %723 = vdwg.mxu0
        %s724 = scalar_lea.vmem [#allocation4], 288
        %v725 = vld [vmem:[%s724] sm:$0xff]
        %v726 = vld [vmem:[%s724 + $0x8] sm:$0xff]
        %v727 = vld [vmem:[%s724 + $0x10] sm:$0xff]
        %v728 = vld [vmem:[%s724 + $0x18] sm:$0xff]
        %v729 = vld [vmem:[%s724 + $0x20] sm:$0xff]
        %v730 = vld [vmem:[%s724 + $0x28] sm:$0xff]
        %v731 = vld [vmem:[%s724 + $0x30] sm:$0xff]
        %v732 = vld [vmem:[%s724 + $0x38] sm:$0xff]
        %v733 = vld [vmem:[%s724 + $0x40] sm:$0xff]
        %v734 = vld [vmem:[%s724 + $0x48] sm:$0xff]
        %v735 = vld [vmem:[%s724 + $0x50] sm:$0xff]
        %v736 = vld [vmem:[%s724 + $0x58] sm:$0xff]
        %v737 = vld [vmem:[%s724 + $0x60] sm:$0xff]
        %v738 = vld [vmem:[%s724 + $0x68] sm:$0xff]
        %v739 = vld [vmem:[%s724 + $0x70] sm:$0xff]
        %v740 = vld [vmem:[%s724 + $0x78] sm:$0xff]
        %v741 = vld [vmem:[%s724 + $0x80] sm:$0xff]
        %v742 = vld [vmem:[%s724 + $0x88] sm:$0xff]
        %v743 = vld [vmem:[%s724 + $0x90] sm:$0xff]
        %v744 = vld [vmem:[%s724 + $0x98] sm:$0xff]
        %v745 = vld [vmem:[%s724 + $0xa0] sm:$0xff]
        %v746 = vld [vmem:[%s724 + $0xa8] sm:$0xff]
        %v747 = vld [vmem:[%s724 + $0xb0] sm:$0xff]
        %v748 = vld [vmem:[%s724 + $0xb8] sm:$0xff]
        %v749 = vld [vmem:[%s724 + $0xc0] sm:$0xff]
        %v750 = vld [vmem:[%s724 + $0xc8] sm:$0xff]
        %v751 = vld [vmem:[%s724 + $0xd0] sm:$0xff]
        %v752 = vld [vmem:[%s724 + $0xd8] sm:$0xff]
        %v753 = vld [vmem:[%s724 + $0xe0] sm:$0xff]
        %v754 = vld [vmem:[%s724 + $0xe8] sm:$0xff]
        %v755 = vld [vmem:[%s724 + $0xf0] sm:$0xff]
        %v756 = vld [vmem:[%s724 + $0xf8] sm:$0xff]
        %v757 = vld [vmem:[%s724 + $0x100] sm:$0xff]
        %v758 = vld [vmem:[%s724 + $0x108] sm:$0xff]
        %v759 = vld [vmem:[%s724 + $0x110] sm:$0xff]
        %v760 = vld [vmem:[%s724 + $0x118] sm:$0xff]
        %vm761 = vcmask 785408
        %v763 = vsel %vm761, %v719, 0
        %v766 = vsel %vm761, %v722, 0
        %768 = vmatpush.msra.mxu0 0.0
        %769 = vmatpush.msra.mxu0 0.0
        %770 = vmatpush.msra.mxu0 0.0
        %771 = vmatpush.msra.mxu0 0.0
        %772 = vmatpush.msra.mxu0 %v758
        %773 = vmatpush.msra.mxu0 %v755
        %774 = vmatpush.msra.mxu0 %v752
        %775 = vmatpush.msra.mxu0 %v749
        %776 = vmatpush.msra.mxu0 %v746
        %777 = vmatpush.msra.mxu0 %v743
        %778 = vmatpush.msra.mxu0 %v740
        %779 = vmatpush.msra.mxu0 %v737
        %780 = vmatpush.msra.mxu0 %v734
        %781 = vmatpush.msra.mxu0 %v731
        %782 = vmatpush.msra.mxu0 %v728
        %783 = vmatpush.msra.mxu0 %v725
        %784 = vmatmul.f32.gmra.mxu0 %v763
        %v785 = vpop.f32.mrf.mxu0
        %v786 = vadd.f32 0.0, %v785
        %787 = vmatmul.f32.gmra.mxu0 %v766
        %v788 = vpop.f32.mrf.mxu0
        %v789 = vadd.f32 0.0, %v788
        %790 = vdwg.mxu0
        %791 = vmatpush.msra.mxu0 0.0
        %792 = vmatpush.msra.mxu0 0.0
        %793 = vmatpush.msra.mxu0 0.0
        %794 = vmatpush.msra.mxu0 0.0
        %795 = vmatpush.msra.mxu0 %v759
        %796 = vmatpush.msra.mxu0 %v756
        %797 = vmatpush.msra.mxu0 %v753
        %798 = vmatpush.msra.mxu0 %v750
        %799 = vmatpush.msra.mxu0 %v747
        %800 = vmatpush.msra.mxu0 %v744
        %801 = vmatpush.msra.mxu0 %v741
        %802 = vmatpush.msra.mxu0 %v738
        %803 = vmatpush.msra.mxu0 %v735
        %804 = vmatpush.msra.mxu0 %v732
        %805 = vmatpush.msra.mxu0 %v729
        %806 = vmatpush.msra.mxu0 %v726
        %807 = vmatmul.f32.gmra.mxu0 %v763
        %v808 = vpop.f32.mrf.mxu0
        %v809 = vadd.f32 0.0, %v808
        %810 = vmatmul.f32.gmra.mxu0 %v766
        %v811 = vpop.f32.mrf.mxu0
        %v812 = vadd.f32 0.0, %v811
        %813 = vdwg.mxu0
        %814 = vmatpush.msra.mxu0 0.0
        %815 = vmatpush.msra.mxu0 0.0
        %816 = vmatpush.msra.mxu0 0.0
        %817 = vmatpush.msra.mxu0 0.0
        %818 = vmatpush.msra.mxu0 %v760
        %819 = vmatpush.msra.mxu0 %v757
        %820 = vmatpush.msra.mxu0 %v754
        %821 = vmatpush.msra.mxu0 %v751
        %822 = vmatpush.msra.mxu0 %v748
        %823 = vmatpush.msra.mxu0 %v745
        %824 = vmatpush.msra.mxu0 %v742
        %825 = vmatpush.msra.mxu0 %v739
        %826 = vmatpush.msra.mxu0 %v736
        %827 = vmatpush.msra.mxu0 %v733
        %828 = vmatpush.msra.mxu0 %v730
        %829 = vmatpush.msra.mxu0 %v727
        %830 = vmatmul.f32.gmra.mxu0 %v763
        %v831 = vpop.f32.mrf.mxu0
        %v832 = vadd.f32 0.0, %v831
        %833 = vmatmul.f32.gmra.mxu0 %v766
        %v834 = vpop.f32.mrf.mxu0
        %v835 = vadd.f32 0.0, %v834
        %836 = vdwg.mxu0
        %v838 = vsel %vm761, %v651, 0
        %v841 = vsel %vm761, %v654, 0
        %843 = vmatpush.msra.mxu0 0.0
        %844 = vmatpush.msra.mxu0 0.0
        %845 = vmatpush.msra.mxu0 0.0
        %846 = vmatpush.msra.mxu0 0.0
        %847 = vmatpush.msra.mxu0 %v689
        %848 = vmatpush.msra.mxu0 %v686
        %849 = vmatpush.msra.mxu0 %v683
        %850 = vmatpush.msra.mxu0 %v680
        %851 = vmatpush.msra.mxu0 %v677
        %852 = vmatpush.msra.mxu0 %v674
        %853 = vmatpush.msra.mxu0 %v671
        %854 = vmatpush.msra.mxu0 %v668
        %855 = vmatpush.msra.mxu0 %v665
        %856 = vmatpush.msra.mxu0 %v662
        %857 = vmatpush.msra.mxu0 %v659
        %858 = vmatpush.msra.mxu0 %v656
        %859 = vmatmul.f32.gmra.mxu0 %v838
        %v860 = vpop.f32.mrf.mxu0
        %v861 = vadd.f32 %v786, %v860
        %862 = vmatmul.f32.gmra.mxu0 %v841
        %v863 = vpop.f32.mrf.mxu0
        %v864 = vadd.f32 %v789, %v863
        %865 = vdwg.mxu0
        %866 = vmatpush.msra.mxu0 0.0
        %867 = vmatpush.msra.mxu0 0.0
        %868 = vmatpush.msra.mxu0 0.0
        %869 = vmatpush.msra.mxu0 0.0
        %870 = vmatpush.msra.mxu0 %v690
        %871 = vmatpush.msra.mxu0 %v687
        %872 = vmatpush.msra.mxu0 %v684
        %873 = vmatpush.msra.mxu0 %v681
        %874 = vmatpush.msra.mxu0 %v678
        %875 = vmatpush.msra.mxu0 %v675
        %876 = vmatpush.msra.mxu0 %v672
        %877 = vmatpush.msra.mxu0 %v669
        %878 = vmatpush.msra.mxu0 %v666
        %879 = vmatpush.msra.mxu0 %v663
        %880 = vmatpush.msra.mxu0 %v660
        %881 = vmatpush.msra.mxu0 %v657
        %882 = vmatmul.f32.gmra.mxu0 %v838
        %v883 = vpop.f32.mrf.mxu0
        %v884 = vadd.f32 %v809, %v883
        %885 = vmatmul.f32.gmra.mxu0 %v841
        %v886 = vpop.f32.mrf.mxu0
        %v887 = vadd.f32 %v812, %v886
        %888 = vdwg.mxu0
        %889 = vmatpush.msra.mxu0 0.0
        %890 = vmatpush.msra.mxu0 0.0
        %891 = vmatpush.msra.mxu0 0.0
        %892 = vmatpush.msra.mxu0 0.0
        %893 = vmatpush.msra.mxu0 %v691
        %894 = vmatpush.msra.mxu0 %v688
        %895 = vmatpush.msra.mxu0 %v685
        %896 = vmatpush.msra.mxu0 %v682
        %897 = vmatpush.msra.mxu0 %v679
        %898 = vmatpush.msra.mxu0 %v676
        %899 = vmatpush.msra.mxu0 %v673
        %900 = vmatpush.msra.mxu0 %v670
        %901 = vmatpush.msra.mxu0 %v667
        %902 = vmatpush.msra.mxu0 %v664
        %903 = vmatpush.msra.mxu0 %v661
        %904 = vmatpush.msra.mxu0 %v658
        %905 = vmatmul.f32.gmra.mxu0 %v838
        %v906 = vpop.f32.mrf.mxu0
        %v907 = vadd.f32 %v832, %v906
        %908 = vmatmul.f32.gmra.mxu0 %v841
        %v909 = vpop.f32.mrf.mxu0
        %v910 = vadd.f32 %v835, %v909
        %911 = vdwg.mxu0
        %s912 = scalar_lea.vmem [#allocation2], 32
        %v913 = vld [vmem:[%s912] sm:$0xff]
        %v914 = vld [vmem:[%s912 + $0x8] sm:$0x3]
        %v916 = vsel %vm626, %v913, 0
        %v919 = vsel %vm626, %v914, 0
        %921 = vmatpush.msra.mxu0 0.0
        %922 = vmatpush.msra.mxu0 0.0
        %923 = vmatpush.msra.mxu0 0.0
        %924 = vmatpush.msra.mxu0 0.0
        %925 = vmatpush.msra.mxu0 0.0
        %926 = vmatpush.msra.mxu0 0.0
        %927 = vmatpush.msra.mxu0 0.0
        %928 = vmatpush.msra.mxu0 0.0
        %929 = vmatpush.msra.mxu0 0.0
        %930 = vmatpush.msra.mxu0 0.0
        %931 = vmatpush.msra.mxu0 0.0
        %932 = vmatpush.msra.mxu0 0.0
        %933 = vmatpush.msra.mxu0 %v623
        %934 = vmatpush.msra.mxu0 %v622
        %935 = vmatpush.msra.mxu0 %v621
        %936 = vmatpush.msra.mxu0 %v620
        %937 = vmatmul.f32.gmra.mxu0 %v916
        %v938 = vpop.f32.mrf.mxu0
        %v939 = vadd.f32 0.0, %v938
        %940 = vmatmul.f32.gmra.mxu0 %v919
        %v941 = vpop.f32.mrf.mxu0
        %v942 = vadd.f32 0.0, %v941
        %943 = vdwg.mxu0
        %s944 = scalar_lea.vmem [#allocation4], 576
        %v945 = vld [vmem:[%s944] sm:$0xff]
        %v946 = vld [vmem:[%s944 + $0x8] sm:$0xff]
        %v947 = vld [vmem:[%s944 + $0x10] sm:$0xff]
        %v948 = vld [vmem:[%s944 + $0x18] sm:$0xff]
        %v949 = vld [vmem:[%s944 + $0x20] sm:$0xff]
        %v950 = vld [vmem:[%s944 + $0x28] sm:$0xff]
        %v951 = vld [vmem:[%s944 + $0x30] sm:$0xff]
        %v952 = vld [vmem:[%s944 + $0x38] sm:$0xff]
        %v953 = vld [vmem:[%s944 + $0x40] sm:$0xff]
        %v954 = vld [vmem:[%s944 + $0x48] sm:$0xff]
        %v955 = vld [vmem:[%s944 + $0x50] sm:$0xff]
        %v956 = vld [vmem:[%s944 + $0x58] sm:$0xff]
        %v957 = vld [vmem:[%s944 + $0x60] sm:$0xff]
        %v958 = vld [vmem:[%s944 + $0x68] sm:$0xff]
        %v959 = vld [vmem:[%s944 + $0x70] sm:$0xff]
        %v960 = vld [vmem:[%s944 + $0x78] sm:$0xff]
        %v961 = vld [vmem:[%s944 + $0x80] sm:$0xff]
        %v962 = vld [vmem:[%s944 + $0x88] sm:$0xff]
        %v963 = vld [vmem:[%s944 + $0x90] sm:$0xff]
        %v964 = vld [vmem:[%s944 + $0x98] sm:$0xff]
        %v965 = vld [vmem:[%s944 + $0xa0] sm:$0xff]
        %v966 = vld [vmem:[%s944 + $0xa8] sm:$0xff]
        %v967 = vld [vmem:[%s944 + $0xb0] sm:$0xff]
        %v968 = vld [vmem:[%s944 + $0xb8] sm:$0xff]
        %v969 = vld [vmem:[%s944 + $0xc0] sm:$0xff]
        %v970 = vld [vmem:[%s944 + $0xc8] sm:$0xff]
        %v971 = vld [vmem:[%s944 + $0xd0] sm:$0xff]
        %v972 = vld [vmem:[%s944 + $0xd8] sm:$0xff]
        %v973 = vld [vmem:[%s944 + $0xe0] sm:$0xff]
        %v974 = vld [vmem:[%s944 + $0xe8] sm:$0xff]
        %v975 = vld [vmem:[%s944 + $0xf0] sm:$0xff]
        %v976 = vld [vmem:[%s944 + $0xf8] sm:$0xff]
        %v977 = vld [vmem:[%s944 + $0x100] sm:$0xff]
        %v978 = vld [vmem:[%s944 + $0x108] sm:$0xff]
        %v979 = vld [vmem:[%s944 + $0x110] sm:$0xff]
        %v980 = vld [vmem:[%s944 + $0x118] sm:$0xff]
        %v982 = vsel %vm761, %v939, 0
        %v985 = vsel %vm761, %v942, 0
        %987 = vmatpush.msra.mxu0 0.0
        %988 = vmatpush.msra.mxu0 0.0
        %989 = vmatpush.msra.mxu0 0.0
        %990 = vmatpush.msra.mxu0 0.0
        %991 = vmatpush.msra.mxu0 %v978
        %992 = vmatpush.msra.mxu0 %v975
        %993 = vmatpush.msra.mxu0 %v972
        %994 = vmatpush.msra.mxu0 %v969
        %995 = vmatpush.msra.mxu0 %v966
        %996 = vmatpush.msra.mxu0 %v963
        %997 = vmatpush.msra.mxu0 %v960
        %998 = vmatpush.msra.mxu0 %v957
        %999 = vmatpush.msra.mxu0 %v954
        %1000 = vmatpush.msra.mxu0 %v951
        %1001 = vmatpush.msra.mxu0 %v948
        %1002 = vmatpush.msra.mxu0 %v945
        %1003 = vmatmul.f32.gmra.mxu0 %v982
        %v1004 = vpop.f32.mrf.mxu0
        %v1005 = vadd.f32 0.0, %v1004
        %1006 = vmatmul.f32.gmra.mxu0 %v985
        %v1007 = vpop.f32.mrf.mxu0
        %v1008 = vadd.f32 0.0, %v1007
        %1009 = vdwg.mxu0
        %1010 = vmatpush.msra.mxu0 0.0
        %1011 = vmatpush.msra.mxu0 0.0
        %1012 = vmatpush.msra.mxu0 0.0
        %1013 = vmatpush.msra.mxu0 0.0
        %1014 = vmatpush.msra.mxu0 %v979
        %1015 = vmatpush.msra.mxu0 %v976
        %1016 = vmatpush.msra.mxu0 %v973
        %1017 = vmatpush.msra.mxu0 %v970
        %1018 = vmatpush.msra.mxu0 %v967
        %1019 = vmatpush.msra.mxu0 %v964
        %1020 = vmatpush.msra.mxu0 %v961
        %1021 = vmatpush.msra.mxu0 %v958
        %1022 = vmatpush.msra.mxu0 %v955
        %1023 = vmatpush.msra.mxu0 %v952
        %1024 = vmatpush.msra.mxu0 %v949
        %1025 = vmatpush.msra.mxu0 %v946
        %1026 = vmatmul.f32.gmra.mxu0 %v982
        %v1027 = vpop.f32.mrf.mxu0
        %v1028 = vadd.f32 0.0, %v1027
        %1029 = vmatmul.f32.gmra.mxu0 %v985
        %v1030 = vpop.f32.mrf.mxu0
        %v1031 = vadd.f32 0.0, %v1030
        %1032 = vdwg.mxu0
        %1033 = vmatpush.msra.mxu0 0.0
        %1034 = vmatpush.msra.mxu0 0.0
        %1035 = vmatpush.msra.mxu0 0.0
        %1036 = vmatpush.msra.mxu0 0.0
        %1037 = vmatpush.msra.mxu0 %v980
        %1038 = vmatpush.msra.mxu0 %v977
        %1039 = vmatpush.msra.mxu0 %v974
        %1040 = vmatpush.msra.mxu0 %v971
        %1041 = vmatpush.msra.mxu0 %v968
        %1042 = vmatpush.msra.mxu0 %v965
        %1043 = vmatpush.msra.mxu0 %v962
        %1044 = vmatpush.msra.mxu0 %v959
        %1045 = vmatpush.msra.mxu0 %v956
        %1046 = vmatpush.msra.mxu0 %v953
        %1047 = vmatpush.msra.mxu0 %v950
        %1048 = vmatpush.msra.mxu0 %v947
        %1049 = vmatmul.f32.gmra.mxu0 %v982
        %v1050 = vpop.f32.mrf.mxu0
        %v1051 = vadd.f32 0.0, %v1050
        %1052 = vmatmul.f32.gmra.mxu0 %v985
        %v1053 = vpop.f32.mrf.mxu0
        %v1054 = vadd.f32 0.0, %v1053
        %1055 = vdwg.mxu0
        %v1056 = vadd.f32 %v861, %v1005
        %v1057 = vadd.f32 %v884, %v1028
        %v1058 = vadd.f32 %v907, %v1051
        %v1059 = vadd.f32 %v864, %v1008
        %v1060 = vadd.f32 %v887, %v1031
        %v1061 = vadd.f32 %v910, %v1054
        %s1062 = scalar_lea.vmem [#allocation2], 48
        %v1063 = vld [vmem:[%s1062] sm:$0xff]
        %v1064 = vld [vmem:[%s1062 + $0x8] sm:$0x3]
        %v1066 = vsel %vm626, %v1063, 0
        %v1069 = vsel %vm626, %v1064, 0
        %1071 = vmatpush.msra.mxu0 0.0
        %1072 = vmatpush.msra.mxu0 0.0
        %1073 = vmatpush.msra.mxu0 0.0
        %1074 = vmatpush.msra.mxu0 0.0
        %1075 = vmatpush.msra.mxu0 0.0
        %1076 = vmatpush.msra.mxu0 0.0
        %1077 = vmatpush.msra.mxu0 0.0
        %1078 = vmatpush.msra.mxu0 0.0
        %1079 = vmatpush.msra.mxu0 0.0
        %1080 = vmatpush.msra.mxu0 0.0
        %1081 = vmatpush.msra.mxu0 0.0
        %1082 = vmatpush.msra.mxu0 0.0
        %1083 = vmatpush.msra.mxu0 %v623
        %1084 = vmatpush.msra.mxu0 %v622
        %1085 = vmatpush.msra.mxu0 %v621
        %1086 = vmatpush.msra.mxu0 %v620
        %1087 = vmatmul.f32.gmra.mxu0 %v1066
        %v1088 = vpop.f32.mrf.mxu0
        %v1089 = vadd.f32 0.0, %v1088
        %1090 = vmatmul.f32.gmra.mxu0 %v1069
        %v1091 = vpop.f32.mrf.mxu0
        %v1092 = vadd.f32 0.0, %v1091
        %1093 = vdwg.mxu0
        %s1094 = scalar_lea.vmem [#allocation4], 864
        %v1095 = vld [vmem:[%s1094] sm:$0xff]
        %v1096 = vld [vmem:[%s1094 + $0x8] sm:$0xff]
        %v1097 = vld [vmem:[%s1094 + $0x10] sm:$0xff]
        %v1098 = vld [vmem:[%s1094 + $0x18] sm:$0xff]
        %v1099 = vld [vmem:[%s1094 + $0x20] sm:$0xff]
        %v1100 = vld [vmem:[%s1094 + $0x28] sm:$0xff]
        %v1101 = vld [vmem:[%s1094 + $0x30] sm:$0xff]
        %v1102 = vld [vmem:[%s1094 + $0x38] sm:$0xff]
        %v1103 = vld [vmem:[%s1094 + $0x40] sm:$0xff]
        %v1104 = vld [vmem:[%s1094 + $0x48] sm:$0xff]
        %v1105 = vld [vmem:[%s1094 + $0x50] sm:$0xff]
        %v1106 = vld [vmem:[%s1094 + $0x58] sm:$0xff]
        %v1107 = vld [vmem:[%s1094 + $0x60] sm:$0xff]
        %v1108 = vld [vmem:[%s1094 + $0x68] sm:$0xff]
        %v1109 = vld [vmem:[%s1094 + $0x70] sm:$0xff]
        %v1110 = vld [vmem:[%s1094 + $0x78] sm:$0xff]
        %v1111 = vld [vmem:[%s1094 + $0x80] sm:$0xff]
        %v1112 = vld [vmem:[%s1094 + $0x88] sm:$0xff]
        %v1113 = vld [vmem:[%s1094 + $0x90] sm:$0xff]
        %v1114 = vld [vmem:[%s1094 + $0x98] sm:$0xff]
        %v1115 = vld [vmem:[%s1094 + $0xa0] sm:$0xff]
        %v1116 = vld [vmem:[%s1094 + $0xa8] sm:$0xff]
        %v1117 = vld [vmem:[%s1094 + $0xb0] sm:$0xff]
        %v1118 = vld [vmem:[%s1094 + $0xb8] sm:$0xff]
        %v1119 = vld [vmem:[%s1094 + $0xc0] sm:$0xff]
        %v1120 = vld [vmem:[%s1094 + $0xc8] sm:$0xff]
        %v1121 = vld [vmem:[%s1094 + $0xd0] sm:$0xff]
        %v1122 = vld [vmem:[%s1094 + $0xd8] sm:$0xff]
        %v1123 = vld [vmem:[%s1094 + $0xe0] sm:$0xff]
        %v1124 = vld [vmem:[%s1094 + $0xe8] sm:$0xff]
        %v1125 = vld [vmem:[%s1094 + $0xf0] sm:$0xff]
        %v1126 = vld [vmem:[%s1094 + $0xf8] sm:$0xff]
        %v1127 = vld [vmem:[%s1094 + $0x100] sm:$0xff]
        %v1128 = vld [vmem:[%s1094 + $0x108] sm:$0xff]
        %v1129 = vld [vmem:[%s1094 + $0x110] sm:$0xff]
        %v1130 = vld [vmem:[%s1094 + $0x118] sm:$0xff]
        %v1132 = vsel %vm761, %v1089, 0
        %v1135 = vsel %vm761, %v1092, 0
        %1137 = vmatpush.msra.mxu0 0.0
        %1138 = vmatpush.msra.mxu0 0.0
        %1139 = vmatpush.msra.mxu0 0.0
        %1140 = vmatpush.msra.mxu0 0.0
        %1141 = vmatpush.msra.mxu0 %v1128
        %1142 = vmatpush.msra.mxu0 %v1125
        %1143 = vmatpush.msra.mxu0 %v1122
        %1144 = vmatpush.msra.mxu0 %v1119
        %1145 = vmatpush.msra.mxu0 %v1116
        %1146 = vmatpush.msra.mxu0 %v1113
        %1147 = vmatpush.msra.mxu0 %v1110
        %1148 = vmatpush.msra.mxu0 %v1107
        %1149 = vmatpush.msra.mxu0 %v1104
        %1150 = vmatpush.msra.mxu0 %v1101
        %1151 = vmatpush.msra.mxu0 %v1098
        %1152 = vmatpush.msra.mxu0 %v1095
        %1153 = vmatmul.f32.gmra.mxu0 %v1132
        %v1154 = vpop.f32.mrf.mxu0
        %v1155 = vadd.f32 0.0, %v1154
        %1156 = vmatmul.f32.gmra.mxu0 %v1135
        %v1157 = vpop.f32.mrf.mxu0
        %v1158 = vadd.f32 0.0, %v1157
        %1159 = vdwg.mxu0
        %1160 = vmatpush.msra.mxu0 0.0
        %1161 = vmatpush.msra.mxu0 0.0
        %1162 = vmatpush.msra.mxu0 0.0
        %1163 = vmatpush.msra.mxu0 0.0
        %1164 = vmatpush.msra.mxu0 %v1129
        %1165 = vmatpush.msra.mxu0 %v1126
        %1166 = vmatpush.msra.mxu0 %v1123
        %1167 = vmatpush.msra.mxu0 %v1120
        %1168 = vmatpush.msra.mxu0 %v1117
        %1169 = vmatpush.msra.mxu0 %v1114
        %1170 = vmatpush.msra.mxu0 %v1111
        %1171 = vmatpush.msra.mxu0 %v1108
        %1172 = vmatpush.msra.mxu0 %v1105
        %1173 = vmatpush.msra.mxu0 %v1102
        %1174 = vmatpush.msra.mxu0 %v1099
        %1175 = vmatpush.msra.mxu0 %v1096
        %1176 = vmatmul.f32.gmra.mxu0 %v1132
        %v1177 = vpop.f32.mrf.mxu0
        %v1178 = vadd.f32 0.0, %v1177
        %1179 = vmatmul.f32.gmra.mxu0 %v1135
        %v1180 = vpop.f32.mrf.mxu0
        %v1181 = vadd.f32 0.0, %v1180
        %1182 = vdwg.mxu0
        %1183 = vmatpush.msra.mxu0 0.0
        %1184 = vmatpush.msra.mxu0 0.0
        %1185 = vmatpush.msra.mxu0 0.0
        %1186 = vmatpush.msra.mxu0 0.0
        %1187 = vmatpush.msra.mxu0 %v1130
        %1188 = vmatpush.msra.mxu0 %v1127
        %1189 = vmatpush.msra.mxu0 %v1124
        %1190 = vmatpush.msra.mxu0 %v1121
        %1191 = vmatpush.msra.mxu0 %v1118
        %1192 = vmatpush.msra.mxu0 %v1115
        %1193 = vmatpush.msra.mxu0 %v1112
        %1194 = vmatpush.msra.mxu0 %v1109
        %1195 = vmatpush.msra.mxu0 %v1106
        %1196 = vmatpush.msra.mxu0 %v1103
        %1197 = vmatpush.msra.mxu0 %v1100
        %1198 = vmatpush.msra.mxu0 %v1097
        %1199 = vmatmul.f32.gmra.mxu0 %v1132
        %v1200 = vpop.f32.mrf.mxu0
        %v1201 = vadd.f32 0.0, %v1200
        %1202 = vmatmul.f32.gmra.mxu0 %v1135
        %v1203 = vpop.f32.mrf.mxu0
        %v1204 = vadd.f32 0.0, %v1203
        %1205 = vdwg.mxu0
        %v1206 = vadd.f32 %v1056, %v1155
        %v1207 = vadd.f32 %v1057, %v1178
        %v1208 = vadd.f32 %v1058, %v1201
        %v1209 = vadd.f32 %v1059, %v1158
        %v1210 = vadd.f32 %v1060, %v1181
        %v1211 = vadd.f32 %v1061, %v1204
        %s1212 = scalar_lea.vmem [#allocation2], 64
        %v1213 = vld [vmem:[%s1212] sm:$0xff]
        %v1214 = vld [vmem:[%s1212 + $0x8] sm:$0x3]
        %v1216 = vsel %vm626, %v1213, 0
        %v1219 = vsel %vm626, %v1214, 0
        %1221 = vmatpush.msra.mxu0 0.0
        %1222 = vmatpush.msra.mxu0 0.0
        %1223 = vmatpush.msra.mxu0 0.0
        %1224 = vmatpush.msra.mxu0 0.0
        %1225 = vmatpush.msra.mxu0 0.0
        %1226 = vmatpush.msra.mxu0 0.0
        %1227 = vmatpush.msra.mxu0 0.0
        %1228 = vmatpush.msra.mxu0 0.0
        %1229 = vmatpush.msra.mxu0 0.0
        %1230 = vmatpush.msra.mxu0 0.0
        %1231 = vmatpush.msra.mxu0 0.0
        %1232 = vmatpush.msra.mxu0 0.0
        %1233 = vmatpush.msra.mxu0 %v623
        %1234 = vmatpush.msra.mxu0 %v622
        %1235 = vmatpush.msra.mxu0 %v621
        %1236 = vmatpush.msra.mxu0 %v620
        %1237 = vmatmul.f32.gmra.mxu0 %v1216
        %v1238 = vpop.f32.mrf.mxu0
        %v1239 = vadd.f32 0.0, %v1238
        %1240 = vmatmul.f32.gmra.mxu0 %v1219
        %v1241 = vpop.f32.mrf.mxu0
        %v1242 = vadd.f32 0.0, %v1241
        %1243 = vdwg.mxu0
        %s1244 = scalar_lea.vmem [#allocation4], 1152
        %v1245 = vld [vmem:[%s1244] sm:$0xff]
        %v1246 = vld [vmem:[%s1244 + $0x8] sm:$0xff]
        %v1247 = vld [vmem:[%s1244 + $0x10] sm:$0xff]
        %v1248 = vld [vmem:[%s1244 + $0x18] sm:$0xff]
        %v1249 = vld [vmem:[%s1244 + $0x20] sm:$0xff]
        %v1250 = vld [vmem:[%s1244 + $0x28] sm:$0xff]
        %v1251 = vld [vmem:[%s1244 + $0x30] sm:$0xff]
        %v1252 = vld [vmem:[%s1244 + $0x38] sm:$0xff]
        %v1253 = vld [vmem:[%s1244 + $0x40] sm:$0xff]
        %v1254 = vld [vmem:[%s1244 + $0x48] sm:$0xff]
        %v1255 = vld [vmem:[%s1244 + $0x50] sm:$0xff]
        %v1256 = vld [vmem:[%s1244 + $0x58] sm:$0xff]
        %v1257 = vld [vmem:[%s1244 + $0x60] sm:$0xff]
        %v1258 = vld [vmem:[%s1244 + $0x68] sm:$0xff]
        %v1259 = vld [vmem:[%s1244 + $0x70] sm:$0xff]
        %v1260 = vld [vmem:[%s1244 + $0x78] sm:$0xff]
        %v1261 = vld [vmem:[%s1244 + $0x80] sm:$0xff]
        %v1262 = vld [vmem:[%s1244 + $0x88] sm:$0xff]
        %v1263 = vld [vmem:[%s1244 + $0x90] sm:$0xff]
        %v1264 = vld [vmem:[%s1244 + $0x98] sm:$0xff]
        %v1265 = vld [vmem:[%s1244 + $0xa0] sm:$0xff]
        %v1266 = vld [vmem:[%s1244 + $0xa8] sm:$0xff]
        %v1267 = vld [vmem:[%s1244 + $0xb0] sm:$0xff]
        %v1268 = vld [vmem:[%s1244 + $0xb8] sm:$0xff]
        %v1269 = vld [vmem:[%s1244 + $0xc0] sm:$0xff]
        %v1270 = vld [vmem:[%s1244 + $0xc8] sm:$0xff]
        %v1271 = vld [vmem:[%s1244 + $0xd0] sm:$0xff]
        %v1272 = vld [vmem:[%s1244 + $0xd8] sm:$0xff]
        %v1273 = vld [vmem:[%s1244 + $0xe0] sm:$0xff]
        %v1274 = vld [vmem:[%s1244 + $0xe8] sm:$0xff]
        %v1275 = vld [vmem:[%s1244 + $0xf0] sm:$0xff]
        %v1276 = vld [vmem:[%s1244 + $0xf8] sm:$0xff]
        %v1277 = vld [vmem:[%s1244 + $0x100] sm:$0xff]
        %v1278 = vld [vmem:[%s1244 + $0x108] sm:$0xff]
        %v1279 = vld [vmem:[%s1244 + $0x110] sm:$0xff]
        %v1280 = vld [vmem:[%s1244 + $0x118] sm:$0xff]
        %v1282 = vsel %vm761, %v1239, 0
        %v1285 = vsel %vm761, %v1242, 0
        %1287 = vmatpush.msra.mxu0 0.0
        %1288 = vmatpush.msra.mxu0 0.0
        %1289 = vmatpush.msra.mxu0 0.0
        %1290 = vmatpush.msra.mxu0 0.0
        %1291 = vmatpush.msra.mxu0 %v1278
        %1292 = vmatpush.msra.mxu0 %v1275
        %1293 = vmatpush.msra.mxu0 %v1272
        %1294 = vmatpush.msra.mxu0 %v1269
        %1295 = vmatpush.msra.mxu0 %v1266
        %1296 = vmatpush.msra.mxu0 %v1263
        %1297 = vmatpush.msra.mxu0 %v1260
        %1298 = vmatpush.msra.mxu0 %v1257
        %1299 = vmatpush.msra.mxu0 %v1254
        %1300 = vmatpush.msra.mxu0 %v1251
        %1301 = vmatpush.msra.mxu0 %v1248
        %1302 = vmatpush.msra.mxu0 %v1245
        %1303 = vmatmul.f32.gmra.mxu0 %v1282
        %v1304 = vpop.f32.mrf.mxu0
        %v1305 = vadd.f32 0.0, %v1304
        %1306 = vmatmul.f32.gmra.mxu0 %v1285
        %v1307 = vpop.f32.mrf.mxu0
        %v1308 = vadd.f32 0.0, %v1307
        %1309 = vdwg.mxu0
        %1310 = vmatpush.msra.mxu0 0.0
        %1311 = vmatpush.msra.mxu0 0.0
        %1312 = vmatpush.msra.mxu0 0.0
        %1313 = vmatpush.msra.mxu0 0.0
        %1314 = vmatpush.msra.mxu0 %v1279
        %1315 = vmatpush.msra.mxu0 %v1276
        %1316 = vmatpush.msra.mxu0 %v1273
        %1317 = vmatpush.msra.mxu0 %v1270
        %1318 = vmatpush.msra.mxu0 %v1267
        %1319 = vmatpush.msra.mxu0 %v1264
        %1320 = vmatpush.msra.mxu0 %v1261
        %1321 = vmatpush.msra.mxu0 %v1258
        %1322 = vmatpush.msra.mxu0 %v1255
        %1323 = vmatpush.msra.mxu0 %v1252
        %1324 = vmatpush.msra.mxu0 %v1249
        %1325 = vmatpush.msra.mxu0 %v1246
        %1326 = vmatmul.f32.gmra.mxu0 %v1282
        %v1327 = vpop.f32.mrf.mxu0
        %v1328 = vadd.f32 0.0, %v1327
        %1329 = vmatmul.f32.gmra.mxu0 %v1285
        %v1330 = vpop.f32.mrf.mxu0
        %v1331 = vadd.f32 0.0, %v1330
        %1332 = vdwg.mxu0
        %1333 = vmatpush.msra.mxu0 0.0
        %1334 = vmatpush.msra.mxu0 0.0
        %1335 = vmatpush.msra.mxu0 0.0
        %1336 = vmatpush.msra.mxu0 0.0
        %1337 = vmatpush.msra.mxu0 %v1280
        %1338 = vmatpush.msra.mxu0 %v1277
        %1339 = vmatpush.msra.mxu0 %v1274
        %1340 = vmatpush.msra.mxu0 %v1271
        %1341 = vmatpush.msra.mxu0 %v1268
        %1342 = vmatpush.msra.mxu0 %v1265
        %1343 = vmatpush.msra.mxu0 %v1262
        %1344 = vmatpush.msra.mxu0 %v1259
        %1345 = vmatpush.msra.mxu0 %v1256
        %1346 = vmatpush.msra.mxu0 %v1253
        %1347 = vmatpush.msra.mxu0 %v1250
        %1348 = vmatpush.msra.mxu0 %v1247
        %1349 = vmatmul.f32.gmra.mxu0 %v1282
        %v1350 = vpop.f32.mrf.mxu0
        %v1351 = vadd.f32 0.0, %v1350
        %1352 = vmatmul.f32.gmra.mxu0 %v1285
        %v1353 = vpop.f32.mrf.mxu0
        %v1354 = vadd.f32 0.0, %v1353
        %1355 = vdwg.mxu0
        %v1356 = vadd.f32 %v1206, %v1305
        %v1357 = vadd.f32 %v1207, %v1328
        %v1358 = vadd.f32 %v1208, %v1351
        %v1359 = vadd.f32 %v1209, %v1308
        %v1360 = vadd.f32 %v1210, %v1331
        %v1361 = vadd.f32 %v1211, %v1354
        %v1362 = vld [vmem:[#allocation6] sm:$0x7]
        %v1364 = vperm.slane %v1362, 0
        %v1365 = vperm.slane %v1362, 1
        %v1366 = vperm.slane %v1362, 2
        %v1370 = vadd.f32 %v1356, %v1364
        %v1371 = vadd.f32 %v1357, %v1365
        %v1372 = vadd.f32 %v1358, %v1366
        %v1373 = vadd.f32 %v1359, %v1364
        %v1374 = vadd.f32 %v1360, %v1365
        %v1375 = vadd.f32 %v1361, %v1366
        %v1376 = vmax.f32 %v1370, 0.0
        %v1377 = vmax.f32 %v1371, 0.0
        %v1378 = vmax.f32 %v1372, 0.0
        %v1379 = vmax.f32 %v1373, 0.0
        %v1380 = vmax.f32 %v1374, 0.0
        %v1381 = vmax.f32 %v1375, 0.0
        %v1382 = vld [vmem:[#allocation7] sm:$0xf]
        %vm1383 = vcmask 80896
        %v1385 = vsel %vm1383, %v1382, 0
        %vm1387 = vcmask 1041408
        %v1389 = vsel %vm1387, %v1379, 0
        %v1392 = vsel %vm1387, %v1380, 0
        %v1395 = vsel %vm1387, %v1381, 0
        %1397 = vmatpush.msra.mxu0 0.0
        %1398 = vmatpush.msra.mxu0 0.0
        %1399 = vmatpush.msra.mxu0 0.0
        %1400 = vmatpush.msra.mxu0 0.0
        %1401 = vmatpush.msra.mxu0 0.0
        %1402 = vmatpush.msra.mxu0 0.0
        %1403 = vmatpush.msra.mxu0 0.0
        %1404 = vmatpush.msra.mxu0 0.0
        %1405 = vmatpush.msra.mxu0 0.0
        %1406 = vmatpush.msra.mxu0 0.0
        %1407 = vmatpush.msra.mxu0 0.0
        %1408 = vmatpush.msra.mxu0 0.0
        %1409 = vmatpush.msra.mxu0 0.0
        %1410 = vmatpush.msra.mxu0 0.0
        %1411 = vmatpush.msra.mxu0 %v1389
        %1412 = vmatpush.msra.mxu0 %v1376
        %1413 = vmatmul.f32.gmra.mxu0 %v1385
        %v1414 = vpop.f32.mrf.mxu0
        %v1415 = vadd.f32 0.0, %v1414
        %1416 = vdwg.mxu0
        %1417 = vmatpush.msra.mxu0 0.0
        %1418 = vmatpush.msra.mxu0 0.0
        %1419 = vmatpush.msra.mxu0 0.0
        %1420 = vmatpush.msra.mxu0 0.0
        %1421 = vmatpush.msra.mxu0 0.0
        %1422 = vmatpush.msra.mxu0 0.0
        %1423 = vmatpush.msra.mxu0 0.0
        %1424 = vmatpush.msra.mxu0 0.0
        %1425 = vmatpush.msra.mxu0 0.0
        %1426 = vmatpush.msra.mxu0 0.0
        %1427 = vmatpush.msra.mxu0 0.0
        %1428 = vmatpush.msra.mxu0 0.0
        %1429 = vmatpush.msra.mxu0 0.0
        %1430 = vmatpush.msra.mxu0 0.0
        %1431 = vmatpush.msra.mxu0 %v1392
        %1432 = vmatpush.msra.mxu0 %v1377
        %1433 = vmatmul.f32.gmra.mxu0 %v1385
        %v1434 = vpop.f32.mrf.mxu0
        %v1435 = vadd.f32 0.0, %v1434
        %1436 = vdwg.mxu0
        %1437 = vmatpush.msra.mxu0 0.0
        %1438 = vmatpush.msra.mxu0 0.0
        %1439 = vmatpush.msra.mxu0 0.0
        %1440 = vmatpush.msra.mxu0 0.0
        %1441 = vmatpush.msra.mxu0 0.0
        %1442 = vmatpush.msra.mxu0 0.0
        %1443 = vmatpush.msra.mxu0 0.0
        %1444 = vmatpush.msra.mxu0 0.0
        %1445 = vmatpush.msra.mxu0 0.0
        %1446 = vmatpush.msra.mxu0 0.0
        %1447 = vmatpush.msra.mxu0 0.0
        %1448 = vmatpush.msra.mxu0 0.0
        %1449 = vmatpush.msra.mxu0 0.0
        %1450 = vmatpush.msra.mxu0 0.0
        %1451 = vmatpush.msra.mxu0 %v1395
        %1452 = vmatpush.msra.mxu0 %v1378
        %1453 = vmatmul.f32.gmra.mxu0 %v1385
        %v1454 = vpop.f32.mrf.mxu0
        %v1455 = vadd.f32 0.0, %v1454
        %1456 = vdwg.mxu0
        %v1457 = vld [vmem:[#allocation9] sm:$0xff]
        %v1458 = vld [vmem:[#allocation9 + $0x8] sm:$0xff]
        %v1459 = vld [vmem:[#allocation9 + $0x10] sm:$0xff]
        %v1460 = vld [vmem:[#allocation9 + $0x18] sm:$0xff]
        %v1461 = vld [vmem:[#allocation9 + $0x20] sm:$0xff]
        %v1462 = vld [vmem:[#allocation9 + $0x28] sm:$0xff]
        %v1463 = vld [vmem:[#allocation9 + $0x30] sm:$0xff]
        %v1464 = vld [vmem:[#allocation9 + $0x38] sm:$0xff]
        %v1465 = vld [vmem:[#allocation9 + $0x40] sm:$0xff]
        %v1466 = vld [vmem:[#allocation9 + $0x48] sm:$0xff]
        %v1467 = vld [vmem:[#allocation9 + $0x50] sm:$0xff]
        %v1468 = vld [vmem:[#allocation9 + $0x58] sm:$0xff]
        %v1469 = vld [vmem:[#allocation9 + $0x60] sm:$0xff]
        %v1470 = vld [vmem:[#allocation9 + $0x68] sm:$0xff]
        %v1471 = vld [vmem:[#allocation9 + $0x70] sm:$0xff]
        %v1472 = vld [vmem:[#allocation9 + $0x78] sm:$0xff]
        %v1473 = vld [vmem:[#allocation9 + $0x80] sm:$0xff]
        %v1474 = vld [vmem:[#allocation9 + $0x88] sm:$0xff]
        %v1475 = vld [vmem:[#allocation9 + $0x90] sm:$0xff]
        %v1476 = vld [vmem:[#allocation9 + $0x98] sm:$0xff]
        %v1477 = vld [vmem:[#allocation9 + $0xa0] sm:$0xff]
        %v1478 = vld [vmem:[#allocation9 + $0xa8] sm:$0xff]
        %v1479 = vld [vmem:[#allocation9 + $0xb0] sm:$0xff]
        %v1480 = vld [vmem:[#allocation9 + $0xb8] sm:$0xff]
        %v1481 = vld [vmem:[#allocation9 + $0xc0] sm:$0xff]
        %v1482 = vld [vmem:[#allocation9 + $0xc8] sm:$0xff]
        %v1483 = vld [vmem:[#allocation9 + $0xd0] sm:$0xff]
        %v1484 = vld [vmem:[#allocation9 + $0xd8] sm:$0xff]
        %v1485 = vld [vmem:[#allocation9 + $0xe0] sm:$0xff]
        %v1486 = vld [vmem:[#allocation9 + $0xe8] sm:$0xff]
        %v1487 = vld [vmem:[#allocation9 + $0xf0] sm:$0xff]
        %v1488 = vld [vmem:[#allocation9 + $0xf8] sm:$0xff]
        %v1489 = vld [vmem:[#allocation9 + $0x100] sm:$0xff]
        %v1490 = vld [vmem:[#allocation9 + $0x108] sm:$0xff]
        %v1491 = vld [vmem:[#allocation9 + $0x110] sm:$0xff]
        %v1492 = vld [vmem:[#allocation9 + $0x118] sm:$0xff]
        %v1493 = vld [vmem:[#allocation9 + $0x120] sm:$0xff]
        %v1494 = vld [vmem:[#allocation9 + $0x128] sm:$0xff]
        %v1495 = vld [vmem:[#allocation9 + $0x130] sm:$0xff]
        %v1496 = vld [vmem:[#allocation9 + $0x138] sm:$0xff]
        %s1497 = scalar_lea.vmem [#allocation7], 4
        %v1498 = vld [vmem:[%s1497] sm:$0xf]
        %v1500 = vsel %vm1383, %v1498, 0
        %1502 = vmatpush.msra.mxu0 0.0
        %1503 = vmatpush.msra.mxu0 0.0
        %1504 = vmatpush.msra.mxu0 0.0
        %1505 = vmatpush.msra.mxu0 0.0
        %1506 = vmatpush.msra.mxu0 0.0
        %1507 = vmatpush.msra.mxu0 0.0
        %1508 = vmatpush.msra.mxu0 0.0
        %1509 = vmatpush.msra.mxu0 0.0
        %1510 = vmatpush.msra.mxu0 0.0
        %1511 = vmatpush.msra.mxu0 0.0
        %1512 = vmatpush.msra.mxu0 0.0
        %1513 = vmatpush.msra.mxu0 0.0
        %1514 = vmatpush.msra.mxu0 0.0
        %1515 = vmatpush.msra.mxu0 0.0
        %1516 = vmatpush.msra.mxu0 %v1389
        %1517 = vmatpush.msra.mxu0 %v1376
        %1518 = vmatmul.f32.gmra.mxu0 %v1500
        %v1519 = vpop.f32.mrf.mxu0
        %v1520 = vadd.f32 0.0, %v1519
        %1521 = vdwg.mxu0
        %1522 = vmatpush.msra.mxu0 0.0
        %1523 = vmatpush.msra.mxu0 0.0
        %1524 = vmatpush.msra.mxu0 0.0
        %1525 = vmatpush.msra.mxu0 0.0
        %1526 = vmatpush.msra.mxu0 0.0
        %1527 = vmatpush.msra.mxu0 0.0
        %1528 = vmatpush.msra.mxu0 0.0
        %1529 = vmatpush.msra.mxu0 0.0
        %1530 = vmatpush.msra.mxu0 0.0
        %1531 = vmatpush.msra.mxu0 0.0
        %1532 = vmatpush.msra.mxu0 0.0
        %1533 = vmatpush.msra.mxu0 0.0
        %1534 = vmatpush.msra.mxu0 0.0
        %1535 = vmatpush.msra.mxu0 0.0
        %1536 = vmatpush.msra.mxu0 %v1392
        %1537 = vmatpush.msra.mxu0 %v1377
        %1538 = vmatmul.f32.gmra.mxu0 %v1500
        %v1539 = vpop.f32.mrf.mxu0
        %v1540 = vadd.f32 0.0, %v1539
        %1541 = vdwg.mxu0
        %1542 = vmatpush.msra.mxu0 0.0
        %1543 = vmatpush.msra.mxu0 0.0
        %1544 = vmatpush.msra.mxu0 0.0
        %1545 = vmatpush.msra.mxu0 0.0
        %1546 = vmatpush.msra.mxu0 0.0
        %1547 = vmatpush.msra.mxu0 0.0
        %1548 = vmatpush.msra.mxu0 0.0
        %1549 = vmatpush.msra.mxu0 0.0
        %1550 = vmatpush.msra.mxu0 0.0
        %1551 = vmatpush.msra.mxu0 0.0
        %1552 = vmatpush.msra.mxu0 0.0
        %1553 = vmatpush.msra.mxu0 0.0
        %1554 = vmatpush.msra.mxu0 0.0
        %1555 = vmatpush.msra.mxu0 0.0
        %1556 = vmatpush.msra.mxu0 %v1395
        %1557 = vmatpush.msra.mxu0 %v1378
        %1558 = vmatmul.f32.gmra.mxu0 %v1500
        %v1559 = vpop.f32.mrf.mxu0
        %v1560 = vadd.f32 0.0, %v1559
        %1561 = vdwg.mxu0
        %s1562 = scalar_lea.vmem [#allocation9], 320
        %v1563 = vld [vmem:[%s1562] sm:$0xff]
        %v1564 = vld [vmem:[%s1562 + $0x8] sm:$0xff]
        %v1565 = vld [vmem:[%s1562 + $0x10] sm:$0xff]
        %v1566 = vld [vmem:[%s1562 + $0x18] sm:$0xff]
        %v1567 = vld [vmem:[%s1562 + $0x20] sm:$0xff]
        %v1568 = vld [vmem:[%s1562 + $0x28] sm:$0xff]
        %v1569 = vld [vmem:[%s1562 + $0x30] sm:$0xff]
        %v1570 = vld [vmem:[%s1562 + $0x38] sm:$0xff]
        %v1571 = vld [vmem:[%s1562 + $0x40] sm:$0xff]
        %v1572 = vld [vmem:[%s1562 + $0x48] sm:$0xff]
        %v1573 = vld [vmem:[%s1562 + $0x50] sm:$0xff]
        %v1574 = vld [vmem:[%s1562 + $0x58] sm:$0xff]
        %v1575 = vld [vmem:[%s1562 + $0x60] sm:$0xff]
        %v1576 = vld [vmem:[%s1562 + $0x68] sm:$0xff]
        %v1577 = vld [vmem:[%s1562 + $0x70] sm:$0xff]
        %v1578 = vld [vmem:[%s1562 + $0x78] sm:$0xff]
        %v1579 = vld [vmem:[%s1562 + $0x80] sm:$0xff]
        %v1580 = vld [vmem:[%s1562 + $0x88] sm:$0xff]
        %v1581 = vld [vmem:[%s1562 + $0x90] sm:$0xff]
        %v1582 = vld [vmem:[%s1562 + $0x98] sm:$0xff]
        %v1583 = vld [vmem:[%s1562 + $0xa0] sm:$0xff]
        %v1584 = vld [vmem:[%s1562 + $0xa8] sm:$0xff]
        %v1585 = vld [vmem:[%s1562 + $0xb0] sm:$0xff]
        %v1586 = vld [vmem:[%s1562 + $0xb8] sm:$0xff]
        %v1587 = vld [vmem:[%s1562 + $0xc0] sm:$0xff]
        %v1588 = vld [vmem:[%s1562 + $0xc8] sm:$0xff]
        %v1589 = vld [vmem:[%s1562 + $0xd0] sm:$0xff]
        %v1590 = vld [vmem:[%s1562 + $0xd8] sm:$0xff]
        %v1591 = vld [vmem:[%s1562 + $0xe0] sm:$0xff]
        %v1592 = vld [vmem:[%s1562 + $0xe8] sm:$0xff]
        %v1593 = vld [vmem:[%s1562 + $0xf0] sm:$0xff]
        %v1594 = vld [vmem:[%s1562 + $0xf8] sm:$0xff]
        %v1595 = vld [vmem:[%s1562 + $0x100] sm:$0xff]
        %v1596 = vld [vmem:[%s1562 + $0x108] sm:$0xff]
        %v1597 = vld [vmem:[%s1562 + $0x110] sm:$0xff]
        %v1598 = vld [vmem:[%s1562 + $0x118] sm:$0xff]
        %v1599 = vld [vmem:[%s1562 + $0x120] sm:$0xff]
        %v1600 = vld [vmem:[%s1562 + $0x128] sm:$0xff]
        %v1601 = vld [vmem:[%s1562 + $0x130] sm:$0xff]
        %v1602 = vld [vmem:[%s1562 + $0x138] sm:$0xff]
        %vm1603 = vcmask 523264
        %v1605 = vsel %vm1603, %v1560, 0
        %1607 = vmatpush.msra.mxu0 %v1578
        %1608 = vmatpush.msra.mxu0 %v1577
        %1609 = vmatpush.msra.mxu0 %v1576
        %1610 = vmatpush.msra.mxu0 %v1575
        %1611 = vmatpush.msra.mxu0 %v1574
        %1612 = vmatpush.msra.mxu0 %v1573
        %1613 = vmatpush.msra.mxu0 %v1572
        %1614 = vmatpush.msra.mxu0 %v1571
        %1615 = vmatpush.msra.mxu0 %v1570
        %1616 = vmatpush.msra.mxu0 %v1569
        %1617 = vmatpush.msra.mxu0 %v1568
        %1618 = vmatpush.msra.mxu0 %v1567
        %1619 = vmatpush.msra.mxu0 %v1566
        %1620 = vmatpush.msra.mxu0 %v1565
        %1621 = vmatpush.msra.mxu0 %v1564
        %1622 = vmatpush.msra.mxu0 %v1563
        %1623 = vmatmul.f32.gmra.mxu0 %v1520
        %v1624 = vpop.f32.mrf.mxu0
        %v1625 = vadd.f32 0.0, %v1624
        %1626 = vdwg.mxu0
        %1627 = vmatpush.msra.mxu0 %v1594
        %1628 = vmatpush.msra.mxu0 %v1593
        %1629 = vmatpush.msra.mxu0 %v1592
        %1630 = vmatpush.msra.mxu0 %v1591
        %1631 = vmatpush.msra.mxu0 %v1590
        %1632 = vmatpush.msra.mxu0 %v1589
        %1633 = vmatpush.msra.mxu0 %v1588
        %1634 = vmatpush.msra.mxu0 %v1587
        %1635 = vmatpush.msra.mxu0 %v1586
        %1636 = vmatpush.msra.mxu0 %v1585
        %1637 = vmatpush.msra.mxu0 %v1584
        %1638 = vmatpush.msra.mxu0 %v1583
        %1639 = vmatpush.msra.mxu0 %v1582
        %1640 = vmatpush.msra.mxu0 %v1581
        %1641 = vmatpush.msra.mxu0 %v1580
        %1642 = vmatpush.msra.mxu0 %v1579
        %1643 = vmatmul.f32.gmra.mxu0 %v1540
        %v1644 = vpop.f32.mrf.mxu0
        %v1645 = vadd.f32 %v1625, %v1644
        %1646 = vdwg.mxu0
        %1647 = vmatpush.msra.mxu0 0.0
        %1648 = vmatpush.msra.mxu0 0.0
        %1649 = vmatpush.msra.mxu0 0.0
        %1650 = vmatpush.msra.mxu0 0.0
        %1651 = vmatpush.msra.mxu0 0.0
        %1652 = vmatpush.msra.mxu0 0.0
        %1653 = vmatpush.msra.mxu0 0.0
        %1654 = vmatpush.msra.mxu0 0.0
        %1655 = vmatpush.msra.mxu0 %v1602
        %1656 = vmatpush.msra.mxu0 %v1601
        %1657 = vmatpush.msra.mxu0 %v1600
        %1658 = vmatpush.msra.mxu0 %v1599
        %1659 = vmatpush.msra.mxu0 %v1598
        %1660 = vmatpush.msra.mxu0 %v1597
        %1661 = vmatpush.msra.mxu0 %v1596
        %1662 = vmatpush.msra.mxu0 %v1595
        %1663 = vmatmul.f32.gmra.mxu0 %v1605
        %v1664 = vpop.f32.mrf.mxu0
        %v1665 = vadd.f32 %v1645, %v1664
        %1666 = vdwg.mxu0
        %v1668 = vsel %vm1603, %v1455, 0
        %1670 = vmatpush.msra.mxu0 %v1472
        %1671 = vmatpush.msra.mxu0 %v1471
        %1672 = vmatpush.msra.mxu0 %v1470
        %1673 = vmatpush.msra.mxu0 %v1469
        %1674 = vmatpush.msra.mxu0 %v1468
        %1675 = vmatpush.msra.mxu0 %v1467
        %1676 = vmatpush.msra.mxu0 %v1466
        %1677 = vmatpush.msra.mxu0 %v1465
        %1678 = vmatpush.msra.mxu0 %v1464
        %1679 = vmatpush.msra.mxu0 %v1463
        %1680 = vmatpush.msra.mxu0 %v1462
        %1681 = vmatpush.msra.mxu0 %v1461
        %1682 = vmatpush.msra.mxu0 %v1460
        %1683 = vmatpush.msra.mxu0 %v1459
        %1684 = vmatpush.msra.mxu0 %v1458
        %1685 = vmatpush.msra.mxu0 %v1457
        %1686 = vmatmul.f32.gmra.mxu0 %v1415
        %v1687 = vpop.f32.mrf.mxu0
        %v1688 = vadd.f32 %v1665, %v1687
        %1689 = vdwg.mxu0
        %1690 = vmatpush.msra.mxu0 %v1488
        %1691 = vmatpush.msra.mxu0 %v1487
        %1692 = vmatpush.msra.mxu0 %v1486
        %1693 = vmatpush.msra.mxu0 %v1485
        %1694 = vmatpush.msra.mxu0 %v1484
        %1695 = vmatpush.msra.mxu0 %v1483
        %1696 = vmatpush.msra.mxu0 %v1482
        %1697 = vmatpush.msra.mxu0 %v1481
        %1698 = vmatpush.msra.mxu0 %v1480
        %1699 = vmatpush.msra.mxu0 %v1479
        %1700 = vmatpush.msra.mxu0 %v1478
        %1701 = vmatpush.msra.mxu0 %v1477
        %1702 = vmatpush.msra.mxu0 %v1476
        %1703 = vmatpush.msra.mxu0 %v1475
        %1704 = vmatpush.msra.mxu0 %v1474
        %1705 = vmatpush.msra.mxu0 %v1473
        %1706 = vmatmul.f32.gmra.mxu0 %v1435
        %v1707 = vpop.f32.mrf.mxu0
        %v1708 = vadd.f32 %v1688, %v1707
        %1709 = vdwg.mxu0
        %1710 = vmatpush.msra.mxu0 0.0
        %1711 = vmatpush.msra.mxu0 0.0
        %1712 = vmatpush.msra.mxu0 0.0
        %1713 = vmatpush.msra.mxu0 0.0
        %1714 = vmatpush.msra.mxu0 0.0
        %1715 = vmatpush.msra.mxu0 0.0
        %1716 = vmatpush.msra.mxu0 0.0
        %1717 = vmatpush.msra.mxu0 0.0
        %1718 = vmatpush.msra.mxu0 %v1496
        %1719 = vmatpush.msra.mxu0 %v1495
        %1720 = vmatpush.msra.mxu0 %v1494
        %1721 = vmatpush.msra.mxu0 %v1493
        %1722 = vmatpush.msra.mxu0 %v1492
        %1723 = vmatpush.msra.mxu0 %v1491
        %1724 = vmatpush.msra.mxu0 %v1490
        %1725 = vmatpush.msra.mxu0 %v1489
        %1726 = vmatmul.f32.gmra.mxu0 %v1668
        %v1727 = vpop.f32.mrf.mxu0
        %v1728 = vadd.f32 %v1708, %v1727
        %1729 = vdwg.mxu0
        %s1730 = scalar_lea.vmem [#allocation7], 8
        %v1731 = vld [vmem:[%s1730] sm:$0xf]
        %v1733 = vsel %vm1383, %v1731, 0
        %1735 = vmatpush.msra.mxu0 0.0
        %1736 = vmatpush.msra.mxu0 0.0
        %1737 = vmatpush.msra.mxu0 0.0
        %1738 = vmatpush.msra.mxu0 0.0
        %1739 = vmatpush.msra.mxu0 0.0
        %1740 = vmatpush.msra.mxu0 0.0
        %1741 = vmatpush.msra.mxu0 0.0
        %1742 = vmatpush.msra.mxu0 0.0
        %1743 = vmatpush.msra.mxu0 0.0
        %1744 = vmatpush.msra.mxu0 0.0
        %1745 = vmatpush.msra.mxu0 0.0
        %1746 = vmatpush.msra.mxu0 0.0
        %1747 = vmatpush.msra.mxu0 0.0
        %1748 = vmatpush.msra.mxu0 0.0
        %1749 = vmatpush.msra.mxu0 %v1389
        %1750 = vmatpush.msra.mxu0 %v1376
        %1751 = vmatmul.f32.gmra.mxu0 %v1733
        %v1752 = vpop.f32.mrf.mxu0
        %v1753 = vadd.f32 0.0, %v1752
        %1754 = vdwg.mxu0
        %1755 = vmatpush.msra.mxu0 0.0
        %1756 = vmatpush.msra.mxu0 0.0
        %1757 = vmatpush.msra.mxu0 0.0
        %1758 = vmatpush.msra.mxu0 0.0
        %1759 = vmatpush.msra.mxu0 0.0
        %1760 = vmatpush.msra.mxu0 0.0
        %1761 = vmatpush.msra.mxu0 0.0
        %1762 = vmatpush.msra.mxu0 0.0
        %1763 = vmatpush.msra.mxu0 0.0
        %1764 = vmatpush.msra.mxu0 0.0
        %1765 = vmatpush.msra.mxu0 0.0
        %1766 = vmatpush.msra.mxu0 0.0
        %1767 = vmatpush.msra.mxu0 0.0
        %1768 = vmatpush.msra.mxu0 0.0
        %1769 = vmatpush.msra.mxu0 %v1392
        %1770 = vmatpush.msra.mxu0 %v1377
        %1771 = vmatmul.f32.gmra.mxu0 %v1733
        %v1772 = vpop.f32.mrf.mxu0
        %v1773 = vadd.f32 0.0, %v1772
        %1774 = vdwg.mxu0
        %1775 = vmatpush.msra.mxu0 0.0
        %1776 = vmatpush.msra.mxu0 0.0
        %1777 = vmatpush.msra.mxu0 0.0
        %1778 = vmatpush.msra.mxu0 0.0
        %1779 = vmatpush.msra.mxu0 0.0
        %1780 = vmatpush.msra.mxu0 0.0
        %1781 = vmatpush.msra.mxu0 0.0
        %1782 = vmatpush.msra.mxu0 0.0
        %1783 = vmatpush.msra.mxu0 0.0
        %1784 = vmatpush.msra.mxu0 0.0
        %1785 = vmatpush.msra.mxu0 0.0
        %1786 = vmatpush.msra.mxu0 0.0
        %1787 = vmatpush.msra.mxu0 0.0
        %1788 = vmatpush.msra.mxu0 0.0
        %1789 = vmatpush.msra.mxu0 %v1395
        %1790 = vmatpush.msra.mxu0 %v1378
        %1791 = vmatmul.f32.gmra.mxu0 %v1733
        %v1792 = vpop.f32.mrf.mxu0
        %v1793 = vadd.f32 0.0, %v1792
        %1794 = vdwg.mxu0
        %s1795 = scalar_lea.vmem [#allocation9], 640
        %v1796 = vld [vmem:[%s1795] sm:$0xff]
        %v1797 = vld [vmem:[%s1795 + $0x8] sm:$0xff]
        %v1798 = vld [vmem:[%s1795 + $0x10] sm:$0xff]
        %v1799 = vld [vmem:[%s1795 + $0x18] sm:$0xff]
        %v1800 = vld [vmem:[%s1795 + $0x20] sm:$0xff]
        %v1801 = vld [vmem:[%s1795 + $0x28] sm:$0xff]
        %v1802 = vld [vmem:[%s1795 + $0x30] sm:$0xff]
        %v1803 = vld [vmem:[%s1795 + $0x38] sm:$0xff]
        %v1804 = vld [vmem:[%s1795 + $0x40] sm:$0xff]
        %v1805 = vld [vmem:[%s1795 + $0x48] sm:$0xff]
        %v1806 = vld [vmem:[%s1795 + $0x50] sm:$0xff]
        %v1807 = vld [vmem:[%s1795 + $0x58] sm:$0xff]
        %v1808 = vld [vmem:[%s1795 + $0x60] sm:$0xff]
        %v1809 = vld [vmem:[%s1795 + $0x68] sm:$0xff]
        %v1810 = vld [vmem:[%s1795 + $0x70] sm:$0xff]
        %v1811 = vld [vmem:[%s1795 + $0x78] sm:$0xff]
        %v1812 = vld [vmem:[%s1795 + $0x80] sm:$0xff]
        %v1813 = vld [vmem:[%s1795 + $0x88] sm:$0xff]
        %v1814 = vld [vmem:[%s1795 + $0x90] sm:$0xff]
        %v1815 = vld [vmem:[%s1795 + $0x98] sm:$0xff]
        %v1816 = vld [vmem:[%s1795 + $0xa0] sm:$0xff]
        %v1817 = vld [vmem:[%s1795 + $0xa8] sm:$0xff]
        %v1818 = vld [vmem:[%s1795 + $0xb0] sm:$0xff]
        %v1819 = vld [vmem:[%s1795 + $0xb8] sm:$0xff]
        %v1820 = vld [vmem:[%s1795 + $0xc0] sm:$0xff]
        %v1821 = vld [vmem:[%s1795 + $0xc8] sm:$0xff]
        %v1822 = vld [vmem:[%s1795 + $0xd0] sm:$0xff]
        %v1823 = vld [vmem:[%s1795 + $0xd8] sm:$0xff]
        %v1824 = vld [vmem:[%s1795 + $0xe0] sm:$0xff]
        %v1825 = vld [vmem:[%s1795 + $0xe8] sm:$0xff]
        %v1826 = vld [vmem:[%s1795 + $0xf0] sm:$0xff]
        %v1827 = vld [vmem:[%s1795 + $0xf8] sm:$0xff]
        %v1828 = vld [vmem:[%s1795 + $0x100] sm:$0xff]
        %v1829 = vld [vmem:[%s1795 + $0x108] sm:$0xff]
        %v1830 = vld [vmem:[%s1795 + $0x110] sm:$0xff]
        %v1831 = vld [vmem:[%s1795 + $0x118] sm:$0xff]
        %v1832 = vld [vmem:[%s1795 + $0x120] sm:$0xff]
        %v1833 = vld [vmem:[%s1795 + $0x128] sm:$0xff]
        %v1834 = vld [vmem:[%s1795 + $0x130] sm:$0xff]
        %v1835 = vld [vmem:[%s1795 + $0x138] sm:$0xff]
        %v1837 = vsel %vm1603, %v1793, 0
        %1839 = vmatpush.msra.mxu0 %v1811
        %1840 = vmatpush.msra.mxu0 %v1810
        %1841 = vmatpush.msra.mxu0 %v1809
        %1842 = vmatpush.msra.mxu0 %v1808
        %1843 = vmatpush.msra.mxu0 %v1807
        %1844 = vmatpush.msra.mxu0 %v1806
        %1845 = vmatpush.msra.mxu0 %v1805
        %1846 = vmatpush.msra.mxu0 %v1804
        %1847 = vmatpush.msra.mxu0 %v1803
        %1848 = vmatpush.msra.mxu0 %v1802
        %1849 = vmatpush.msra.mxu0 %v1801
        %1850 = vmatpush.msra.mxu0 %v1800
        %1851 = vmatpush.msra.mxu0 %v1799
        %1852 = vmatpush.msra.mxu0 %v1798
        %1853 = vmatpush.msra.mxu0 %v1797
        %1854 = vmatpush.msra.mxu0 %v1796
        %1855 = vmatmul.f32.gmra.mxu0 %v1753
        %v1856 = vpop.f32.mrf.mxu0
        %v1857 = vadd.f32 0.0, %v1856
        %1858 = vdwg.mxu0
        %1859 = vmatpush.msra.mxu0 %v1827
        %1860 = vmatpush.msra.mxu0 %v1826
        %1861 = vmatpush.msra.mxu0 %v1825
        %1862 = vmatpush.msra.mxu0 %v1824
        %1863 = vmatpush.msra.mxu0 %v1823
        %1864 = vmatpush.msra.mxu0 %v1822
        %1865 = vmatpush.msra.mxu0 %v1821
        %1866 = vmatpush.msra.mxu0 %v1820
        %1867 = vmatpush.msra.mxu0 %v1819
        %1868 = vmatpush.msra.mxu0 %v1818
        %1869 = vmatpush.msra.mxu0 %v1817
        %1870 = vmatpush.msra.mxu0 %v1816
        %1871 = vmatpush.msra.mxu0 %v1815
        %1872 = vmatpush.msra.mxu0 %v1814
        %1873 = vmatpush.msra.mxu0 %v1813
        %1874 = vmatpush.msra.mxu0 %v1812
        %1875 = vmatmul.f32.gmra.mxu0 %v1773
        %v1876 = vpop.f32.mrf.mxu0
        %v1877 = vadd.f32 %v1857, %v1876
        %1878 = vdwg.mxu0
        %1879 = vmatpush.msra.mxu0 0.0
        %1880 = vmatpush.msra.mxu0 0.0
        %1881 = vmatpush.msra.mxu0 0.0
        %1882 = vmatpush.msra.mxu0 0.0
        %1883 = vmatpush.msra.mxu0 0.0
        %1884 = vmatpush.msra.mxu0 0.0
        %1885 = vmatpush.msra.mxu0 0.0
        %1886 = vmatpush.msra.mxu0 0.0
        %1887 = vmatpush.msra.mxu0 %v1835
        %1888 = vmatpush.msra.mxu0 %v1834
        %1889 = vmatpush.msra.mxu0 %v1833
        %1890 = vmatpush.msra.mxu0 %v1832
        %1891 = vmatpush.msra.mxu0 %v1831
        %1892 = vmatpush.msra.mxu0 %v1830
        %1893 = vmatpush.msra.mxu0 %v1829
        %1894 = vmatpush.msra.mxu0 %v1828
        %1895 = vmatmul.f32.gmra.mxu0 %v1837
        %v1896 = vpop.f32.mrf.mxu0
        %v1897 = vadd.f32 %v1877, %v1896
        %1898 = vdwg.mxu0
        %v1899 = vadd.f32 %v1728, %v1897
        %v1900 = vld [vmem:[%s6] sm:$0x1]
        %v1902 = vperm.slane %v1900, 0
        %v1904 = vadd.f32 %v1899, %v1902
        %v1905 = vld [vmem:[%s7] sm:$0x3]
        %vm1906 = vcmask 31744
        %v1908 = vsel %vm1906, %v1905, 0
        %vm1910 = vcmask 1043456
        %v1912 = vsel %vm1910, %v1904, 0
        %1914 = vmatpush.msra.mxu0 0.0
        %1915 = vmatpush.msra.mxu0 0.0
        %1916 = vmatpush.msra.mxu0 0.0
        %1917 = vmatpush.msra.mxu0 0.0
        %1918 = vmatpush.msra.mxu0 0.0
        %1919 = vmatpush.msra.mxu0 0.0
        %1920 = vmatpush.msra.mxu0 0.0
        %1921 = vmatpush.msra.mxu0 0.0
        %1922 = vmatpush.msra.mxu0 0.0
        %1923 = vmatpush.msra.mxu0 0.0
        %1924 = vmatpush.msra.mxu0 0.0
        %1925 = vmatpush.msra.mxu0 0.0
        %1926 = vmatpush.msra.mxu0 0.0
        %1927 = vmatpush.msra.mxu0 0.0
        %1928 = vmatpush.msra.mxu0 0.0
        %1929 = vmatpush.msra.mxu0 %v1912
        %1930 = vmatmul.f32.gmra.mxu0 %v1908
        %v1931 = vpop.f32.mrf.mxu0
        %v1932 = vadd.f32 0.0, %v1931
        %1933 = vdwg.mxu0
        %v1934 = vld [vmem:[%s8] sm:$0xff]
        %v1935 = vld [vmem:[%s8 + $0x8] sm:$0xff]
        %v1936 = vld [vmem:[%s8 + $0x10] sm:$0xff]
        %v1937 = vld [vmem:[%s8 + $0x18] sm:$0xff]
        %v1938 = vld [vmem:[%s8 + $0x20] sm:$0xff]
        %v1939 = vld [vmem:[%s8 + $0x28] sm:$0xff]
        %v1940 = vld [vmem:[%s8 + $0x30] sm:$0xff]
        %v1941 = vld [vmem:[%s8 + $0x38] sm:$0xff]
        %s1942 = scalar_lea.vmem %s7, 2
        %v1943 = vld [vmem:[%s1942] sm:$0x3]
        %v1945 = vsel %vm1906, %v1943, 0
        %1947 = vmatpush.msra.mxu0 0.0
        %1948 = vmatpush.msra.mxu0 0.0
        %1949 = vmatpush.msra.mxu0 0.0
        %1950 = vmatpush.msra.mxu0 0.0
        %1951 = vmatpush.msra.mxu0 0.0
        %1952 = vmatpush.msra.mxu0 0.0
        %1953 = vmatpush.msra.mxu0 0.0
        %1954 = vmatpush.msra.mxu0 0.0
        %1955 = vmatpush.msra.mxu0 0.0
        %1956 = vmatpush.msra.mxu0 0.0
        %1957 = vmatpush.msra.mxu0 0.0
        %1958 = vmatpush.msra.mxu0 0.0
        %1959 = vmatpush.msra.mxu0 0.0
        %1960 = vmatpush.msra.mxu0 0.0
        %1961 = vmatpush.msra.mxu0 0.0
        %1962 = vmatpush.msra.mxu0 %v1912
        %1963 = vmatmul.f32.gmra.mxu0 %v1945
        %v1964 = vpop.f32.mrf.mxu0
        %v1965 = vadd.f32 0.0, %v1964
        %1966 = vdwg.mxu0
        %s1967 = scalar_lea.vmem %s8, 64
        %v1968 = vld [vmem:[%s1967] sm:$0xff]
        %v1969 = vld [vmem:[%s1967 + $0x8] sm:$0xff]
        %v1970 = vld [vmem:[%s1967 + $0x10] sm:$0xff]
        %v1971 = vld [vmem:[%s1967 + $0x18] sm:$0xff]
        %v1972 = vld [vmem:[%s1967 + $0x20] sm:$0xff]
        %v1973 = vld [vmem:[%s1967 + $0x28] sm:$0xff]
        %v1974 = vld [vmem:[%s1967 + $0x30] sm:$0xff]
        %v1975 = vld [vmem:[%s1967 + $0x38] sm:$0xff]
        %v1977 = vsel %vm1603, %v1965, 0
        %1979 = vmatpush.msra.mxu0 0.0
        %1980 = vmatpush.msra.mxu0 0.0
        %1981 = vmatpush.msra.mxu0 0.0
        %1982 = vmatpush.msra.mxu0 0.0
        %1983 = vmatpush.msra.mxu0 0.0
        %1984 = vmatpush.msra.mxu0 0.0
        %1985 = vmatpush.msra.mxu0 0.0
        %1986 = vmatpush.msra.mxu0 0.0
        %1987 = vmatpush.msra.mxu0 %v1975
        %1988 = vmatpush.msra.mxu0 %v1974
        %1989 = vmatpush.msra.mxu0 %v1973
        %1990 = vmatpush.msra.mxu0 %v1972
        %1991 = vmatpush.msra.mxu0 %v1971
        %1992 = vmatpush.msra.mxu0 %v1970
        %1993 = vmatpush.msra.mxu0 %v1969
        %1994 = vmatpush.msra.mxu0 %v1968
        %1995 = vmatmul.f32.gmra.mxu0 %v1977
        %v1996 = vpop.f32.mrf.mxu0
        %v1997 = vadd.f32 0.0, %v1996
        %1998 = vdwg.mxu0
        %v2000 = vsel %vm1603, %v1932, 0
        %2002 = vmatpush.msra.mxu0 0.0
        %2003 = vmatpush.msra.mxu0 0.0
        %2004 = vmatpush.msra.mxu0 0.0
        %2005 = vmatpush.msra.mxu0 0.0
        %2006 = vmatpush.msra.mxu0 0.0
        %2007 = vmatpush.msra.mxu0 0.0
        %2008 = vmatpush.msra.mxu0 0.0
        %2009 = vmatpush.msra.mxu0 0.0
        %2010 = vmatpush.msra.mxu0 %v1941
        %2011 = vmatpush.msra.mxu0 %v1940
        %2012 = vmatpush.msra.mxu0 %v1939
        %2013 = vmatpush.msra.mxu0 %v1938
        %2014 = vmatpush.msra.mxu0 %v1937
        %2015 = vmatpush.msra.mxu0 %v1936
        %2016 = vmatpush.msra.mxu0 %v1935
        %2017 = vmatpush.msra.mxu0 %v1934
        %2018 = vmatmul.f32.gmra.mxu0 %v2000
        %v2019 = vpop.f32.mrf.mxu0
        %v2020 = vadd.f32 %v1997, %v2019
        %2021 = vdwg.mxu0
        %s2022 = scalar_lea.vmem %s7, 4
        %v2023 = vld [vmem:[%s2022] sm:$0x3]
        %v2025 = vsel %vm1906, %v2023, 0
        %2027 = vmatpush.msra.mxu0 0.0
        %2028 = vmatpush.msra.mxu0 0.0
        %2029 = vmatpush.msra.mxu0 0.0
        %2030 = vmatpush.msra.mxu0 0.0
        %2031 = vmatpush.msra.mxu0 0.0
        %2032 = vmatpush.msra.mxu0 0.0
        %2033 = vmatpush.msra.mxu0 0.0
        %2034 = vmatpush.msra.mxu0 0.0
        %2035 = vmatpush.msra.mxu0 0.0
        %2036 = vmatpush.msra.mxu0 0.0
        %2037 = vmatpush.msra.mxu0 0.0
        %2038 = vmatpush.msra.mxu0 0.0
        %2039 = vmatpush.msra.mxu0 0.0
        %2040 = vmatpush.msra.mxu0 0.0
        %2041 = vmatpush.msra.mxu0 0.0
        %2042 = vmatpush.msra.mxu0 %v1912
        %2043 = vmatmul.f32.gmra.mxu0 %v2025
        %v2044 = vpop.f32.mrf.mxu0
        %v2045 = vadd.f32 0.0, %v2044
        %2046 = vdwg.mxu0
        %s2047 = scalar_lea.vmem %s8, 128
        %v2048 = vld [vmem:[%s2047] sm:$0xff]
        %v2049 = vld [vmem:[%s2047 + $0x8] sm:$0xff]
        %v2050 = vld [vmem:[%s2047 + $0x10] sm:$0xff]
        %v2051 = vld [vmem:[%s2047 + $0x18] sm:$0xff]
        %v2052 = vld [vmem:[%s2047 + $0x20] sm:$0xff]
        %v2053 = vld [vmem:[%s2047 + $0x28] sm:$0xff]
        %v2054 = vld [vmem:[%s2047 + $0x30] sm:$0xff]
        %v2055 = vld [vmem:[%s2047 + $0x38] sm:$0xff]
        %v2057 = vsel %vm1603, %v2045, 0
        %2059 = vmatpush.msra.mxu0 0.0
        %2060 = vmatpush.msra.mxu0 0.0
        %2061 = vmatpush.msra.mxu0 0.0
        %2062 = vmatpush.msra.mxu0 0.0
        %2063 = vmatpush.msra.mxu0 0.0
        %2064 = vmatpush.msra.mxu0 0.0
        %2065 = vmatpush.msra.mxu0 0.0
        %2066 = vmatpush.msra.mxu0 0.0
        %2067 = vmatpush.msra.mxu0 %v2055
        %2068 = vmatpush.msra.mxu0 %v2054
        %2069 = vmatpush.msra.mxu0 %v2053
        %2070 = vmatpush.msra.mxu0 %v2052
        %2071 = vmatpush.msra.mxu0 %v2051
        %2072 = vmatpush.msra.mxu0 %v2050
        %2073 = vmatpush.msra.mxu0 %v2049
        %2074 = vmatpush.msra.mxu0 %v2048
        %2075 = vmatmul.f32.gmra.mxu0 %v2057
        %v2076 = vpop.f32.mrf.mxu0
        %v2077 = vadd.f32 0.0, %v2076
        %2078 = vdwg.mxu0
        %v2079 = vadd.f32 %v2020, %v2077
        %v2080 = vld [vmem:[%s9] sm:$0x1]
        %v2082 = vperm.slane %v2080, 0
        %v2084 = vadd.f32 %v2079, %v2082
        %v2085 = vld [vmem:[#allocation10] sm:$0x3f]
        %vm2086 = vcmask 15360
        %v2088 = vsel %vm2086, %v2085, 0
        %v2091 = vsel %vm1387, %v2084, 0
        %2093 = vmatpush.msra.mxu0 0.0
        %2094 = vmatpush.msra.mxu0 0.0
        %2095 = vmatpush.msra.mxu0 0.0
        %2096 = vmatpush.msra.mxu0 0.0
        %2097 = vmatpush.msra.mxu0 0.0
        %2098 = vmatpush.msra.mxu0 0.0
        %2099 = vmatpush.msra.mxu0 0.0
        %2100 = vmatpush.msra.mxu0 0.0
        %2101 = vmatpush.msra.mxu0 0.0
        %2102 = vmatpush.msra.mxu0 0.0
        %2103 = vmatpush.msra.mxu0 0.0
        %2104 = vmatpush.msra.mxu0 0.0
        %2105 = vmatpush.msra.mxu0 0.0
        %2106 = vmatpush.msra.mxu0 0.0
        %2107 = vmatpush.msra.mxu0 0.0
        %2108 = vmatpush.msra.mxu0 %v2091
        %2109 = vmatmul.f32.gmra.mxu0 %v2088
        %v2110 = vpop.f32.mrf.mxu0
        %v2111 = vadd.f32 0.0, %v2110
        %2112 = vdwg.mxu0
        %v2113 = vld [vmem:[%s11] sm:$0xff]
        %v2114 = vld [vmem:[%s11 + $0x8] sm:$0xf]
        %s2115 = scalar_lea.vmem [#allocation10], 8
        %v2116 = vld [vmem:[%s2115] sm:$0x3f]
        %v2118 = vsel %vm2086, %v2116, 0
        %2120 = vmatpush.msra.mxu0 0.0
        %2121 = vmatpush.msra.mxu0 0.0
        %2122 = vmatpush.msra.mxu0 0.0
        %2123 = vmatpush.msra.mxu0 0.0
        %2124 = vmatpush.msra.mxu0 0.0
        %2125 = vmatpush.msra.mxu0 0.0
        %2126 = vmatpush.msra.mxu0 0.0
        %2127 = vmatpush.msra.mxu0 0.0
        %2128 = vmatpush.msra.mxu0 0.0
        %2129 = vmatpush.msra.mxu0 0.0
        %2130 = vmatpush.msra.mxu0 0.0
        %2131 = vmatpush.msra.mxu0 0.0
        %2132 = vmatpush.msra.mxu0 0.0
        %2133 = vmatpush.msra.mxu0 0.0
        %2134 = vmatpush.msra.mxu0 0.0
        %2135 = vmatpush.msra.mxu0 %v2091
        %2136 = vmatmul.f32.gmra.mxu0 %v2118
        %v2137 = vpop.f32.mrf.mxu0
        %v2138 = vadd.f32 0.0, %v2137
        %2139 = vdwg.mxu0
        %s2140 = scalar_lea.vmem %s11, 16
        %v2141 = vld [vmem:[%s2140] sm:$0xff]
        %v2142 = vld [vmem:[%s2140 + $0x8] sm:$0xf]
        %vm2143 = vcmask 97280
        %v2145 = vsel %vm2143, %v2138, 0
        %v2148 = vsel %vm1910, %v2142, 0
        %2150 = vmatpush.msra.mxu0 0.0
        %2151 = vmatpush.msra.mxu0 0.0
        %2152 = vmatpush.msra.mxu0 0.0
        %2153 = vmatpush.msra.mxu0 0.0
        %2154 = vmatpush.msra.mxu0 0.0
        %2155 = vmatpush.msra.mxu0 0.0
        %2156 = vmatpush.msra.mxu0 0.0
        %2157 = vmatpush.msra.mxu0 0.0
        %2158 = vmatpush.msra.mxu0 0.0
        %2159 = vmatpush.msra.mxu0 0.0
        %2160 = vmatpush.msra.mxu0 0.0
        %2161 = vmatpush.msra.mxu0 0.0
        %2162 = vmatpush.msra.mxu0 0.0
        %2163 = vmatpush.msra.mxu0 0.0
        %2164 = vmatpush.msra.mxu0 %v2148
        %2165 = vmatpush.msra.mxu0 %v2141
        %2166 = vmatmul.f32.gmra.mxu0 %v2145
        %v2167 = vpop.f32.mrf.mxu0
        %v2168 = vadd.f32 0.0, %v2167
        %2169 = vdwg.mxu0
        %v2171 = vsel %vm2143, %v2111, 0
        %v2174 = vsel %vm1910, %v2114, 0
        %2176 = vmatpush.msra.mxu0 0.0
        %2177 = vmatpush.msra.mxu0 0.0
        %2178 = vmatpush.msra.mxu0 0.0
        %2179 = vmatpush.msra.mxu0 0.0
        %2180 = vmatpush.msra.mxu0 0.0
        %2181 = vmatpush.msra.mxu0 0.0
        %2182 = vmatpush.msra.mxu0 0.0
        %2183 = vmatpush.msra.mxu0 0.0
        %2184 = vmatpush.msra.mxu0 0.0
        %2185 = vmatpush.msra.mxu0 0.0
        %2186 = vmatpush.msra.mxu0 0.0
        %2187 = vmatpush.msra.mxu0 0.0
        %2188 = vmatpush.msra.mxu0 0.0
        %2189 = vmatpush.msra.mxu0 0.0
        %2190 = vmatpush.msra.mxu0 %v2174
        %2191 = vmatpush.msra.mxu0 %v2113
        %2192 = vmatmul.f32.gmra.mxu0 %v2171
        %v2193 = vpop.f32.mrf.mxu0
        %v2194 = vadd.f32 %v2168, %v2193
        %2195 = vdwg.mxu0
        %s2196 = scalar_lea.vmem [#allocation10], 16
        %v2197 = vld [vmem:[%s2196] sm:$0x3f]
        %v2199 = vsel %vm2086, %v2197, 0
        %2201 = vmatpush.msra.mxu0 0.0
        %2202 = vmatpush.msra.mxu0 0.0
        %2203 = vmatpush.msra.mxu0 0.0
        %2204 = vmatpush.msra.mxu0 0.0
        %2205 = vmatpush.msra.mxu0 0.0
        %2206 = vmatpush.msra.mxu0 0.0
        %2207 = vmatpush.msra.mxu0 0.0
        %2208 = vmatpush.msra.mxu0 0.0
        %2209 = vmatpush.msra.mxu0 0.0
        %2210 = vmatpush.msra.mxu0 0.0
        %2211 = vmatpush.msra.mxu0 0.0
        %2212 = vmatpush.msra.mxu0 0.0
        %2213 = vmatpush.msra.mxu0 0.0
        %2214 = vmatpush.msra.mxu0 0.0
        %2215 = vmatpush.msra.mxu0 0.0
        %2216 = vmatpush.msra.mxu0 %v2091
        %2217 = vmatmul.f32.gmra.mxu0 %v2199
        %v2218 = vpop.f32.mrf.mxu0
        %v2219 = vadd.f32 0.0, %v2218
        %2220 = vdwg.mxu0
        %s2221 = scalar_lea.vmem %s11, 32
        %v2222 = vld [vmem:[%s2221] sm:$0xff]
        %v2223 = vld [vmem:[%s2221 + $0x8] sm:$0xf]
        %v2225 = vsel %vm2143, %v2219, 0
        %v2228 = vsel %vm1910, %v2223, 0
        %2230 = vmatpush.msra.mxu0 0.0
        %2231 = vmatpush.msra.mxu0 0.0
        %2232 = vmatpush.msra.mxu0 0.0
        %2233 = vmatpush.msra.mxu0 0.0
        %2234 = vmatpush.msra.mxu0 0.0
        %2235 = vmatpush.msra.mxu0 0.0
        %2236 = vmatpush.msra.mxu0 0.0
        %2237 = vmatpush.msra.mxu0 0.0
        %2238 = vmatpush.msra.mxu0 0.0
        %2239 = vmatpush.msra.mxu0 0.0
        %2240 = vmatpush.msra.mxu0 0.0
        %2241 = vmatpush.msra.mxu0 0.0
        %2242 = vmatpush.msra.mxu0 0.0
        %2243 = vmatpush.msra.mxu0 0.0
        %2244 = vmatpush.msra.mxu0 %v2228
        %2245 = vmatpush.msra.mxu0 %v2222
        %2246 = vmatmul.f32.gmra.mxu0 %v2225
        %v2247 = vpop.f32.mrf.mxu0
        %v2248 = vadd.f32 0.0, %v2247
        %2249 = vdwg.mxu0
        %v2250 = vadd.f32 %v2194, %v2248
        %s2251 = scalar_lea.vmem [#allocation10], 24
        %v2252 = vld [vmem:[%s2251] sm:$0x3f]
        %v2254 = vsel %vm2086, %v2252, 0
        %2256 = vmatpush.msra.mxu0 0.0
        %2257 = vmatpush.msra.mxu0 0.0
        %2258 = vmatpush.msra.mxu0 0.0
        %2259 = vmatpush.msra.mxu0 0.0
        %2260 = vmatpush.msra.mxu0 0.0
        %2261 = vmatpush.msra.mxu0 0.0
        %2262 = vmatpush.msra.mxu0 0.0
        %2263 = vmatpush.msra.mxu0 0.0
        %2264 = vmatpush.msra.mxu0 0.0
        %2265 = vmatpush.msra.mxu0 0.0
        %2266 = vmatpush.msra.mxu0 0.0
        %2267 = vmatpush.msra.mxu0 0.0
        %2268 = vmatpush.msra.mxu0 0.0
        %2269 = vmatpush.msra.mxu0 0.0
        %2270 = vmatpush.msra.mxu0 0.0
        %2271 = vmatpush.msra.mxu0 %v2091
        %2272 = vmatmul.f32.gmra.mxu0 %v2254
        %v2273 = vpop.f32.mrf.mxu0
        %v2274 = vadd.f32 0.0, %v2273
        %2275 = vdwg.mxu0
        %s2276 = scalar_lea.vmem %s11, 48
        %v2277 = vld [vmem:[%s2276] sm:$0xff]
        %v2278 = vld [vmem:[%s2276 + $0x8] sm:$0xf]
        %v2280 = vsel %vm2143, %v2274, 0
        %v2283 = vsel %vm1910, %v2278, 0
        %2285 = vmatpush.msra.mxu0 0.0
        %2286 = vmatpush.msra.mxu0 0.0
        %2287 = vmatpush.msra.mxu0 0.0
        %2288 = vmatpush.msra.mxu0 0.0
        %2289 = vmatpush.msra.mxu0 0.0
        %2290 = vmatpush.msra.mxu0 0.0
        %2291 = vmatpush.msra.mxu0 0.0
        %2292 = vmatpush.msra.mxu0 0.0
        %2293 = vmatpush.msra.mxu0 0.0
        %2294 = vmatpush.msra.mxu0 0.0
        %2295 = vmatpush.msra.mxu0 0.0
        %2296 = vmatpush.msra.mxu0 0.0
        %2297 = vmatpush.msra.mxu0 0.0
        %2298 = vmatpush.msra.mxu0 0.0
        %2299 = vmatpush.msra.mxu0 %v2283
        %2300 = vmatpush.msra.mxu0 %v2277
        %2301 = vmatmul.f32.gmra.mxu0 %v2280
        %v2302 = vpop.f32.mrf.mxu0
        %v2303 = vadd.f32 0.0, %v2302
        %2304 = vdwg.mxu0
        %v2305 = vadd.f32 %v2250, %v2303
        %s2306 = scalar_lea.vmem [#allocation10], 32
        %v2307 = vld [vmem:[%s2306] sm:$0x3f]
        %v2309 = vsel %vm2086, %v2307, 0
        %2311 = vmatpush.msra.mxu0 0.0
        %2312 = vmatpush.msra.mxu0 0.0
        %2313 = vmatpush.msra.mxu0 0.0
        %2314 = vmatpush.msra.mxu0 0.0
        %2315 = vmatpush.msra.mxu0 0.0
        %2316 = vmatpush.msra.mxu0 0.0
        %2317 = vmatpush.msra.mxu0 0.0
        %2318 = vmatpush.msra.mxu0 0.0
        %2319 = vmatpush.msra.mxu0 0.0
        %2320 = vmatpush.msra.mxu0 0.0
        %2321 = vmatpush.msra.mxu0 0.0
        %2322 = vmatpush.msra.mxu0 0.0
        %2323 = vmatpush.msra.mxu0 0.0
        %2324 = vmatpush.msra.mxu0 0.0
        %2325 = vmatpush.msra.mxu0 0.0
        %2326 = vmatpush.msra.mxu0 %v2091
        %2327 = vmatmul.f32.gmra.mxu0 %v2309
        %v2328 = vpop.f32.mrf.mxu0
        %v2329 = vadd.f32 0.0, %v2328
        %2330 = vdwg.mxu0
        %s2331 = scalar_lea.vmem %s11, 64
        %v2332 = vld [vmem:[%s2331] sm:$0xff]
        %v2333 = vld [vmem:[%s2331 + $0x8] sm:$0xf]
        %v2335 = vsel %vm2143, %v2329, 0
        %v2338 = vsel %vm1910, %v2333, 0
        %2340 = vmatpush.msra.mxu0 0.0
        %2341 = vmatpush.msra.mxu0 0.0
        %2342 = vmatpush.msra.mxu0 0.0
        %2343 = vmatpush.msra.mxu0 0.0
        %2344 = vmatpush.msra.mxu0 0.0
        %2345 = vmatpush.msra.mxu0 0.0
        %2346 = vmatpush.msra.mxu0 0.0
        %2347 = vmatpush.msra.mxu0 0.0
        %2348 = vmatpush.msra.mxu0 0.0
        %2349 = vmatpush.msra.mxu0 0.0
        %2350 = vmatpush.msra.mxu0 0.0
        %2351 = vmatpush.msra.mxu0 0.0
        %2352 = vmatpush.msra.mxu0 0.0
        %2353 = vmatpush.msra.mxu0 0.0
        %2354 = vmatpush.msra.mxu0 %v2338
        %2355 = vmatpush.msra.mxu0 %v2332
        %2356 = vmatmul.f32.gmra.mxu0 %v2335
        %v2357 = vpop.f32.mrf.mxu0
        %v2358 = vadd.f32 0.0, %v2357
        %2359 = vdwg.mxu0
        %v2360 = vadd.f32 %v2305, %v2358
        %v2361 = vld [vmem:[%s12] sm:$0x1]
        %v2363 = vperm.slane %v2361, 0
        %v2365 = vadd.f32 %v2360, %v2363
        %v2366 = vmax.f32 %v2365, 0.0
        %v2367 = vld [vmem:[%s13] sm:$0xff]
        %v2368 = vld [vmem:[%s13 + $0x8] sm:$0xff]
        %v2369 = vld [vmem:[%s13 + $0x10] sm:$0x3]
        %vm2370 = vcmask 48128
        %v2372 = vsel %vm2370, %v2367, 0
        %v2375 = vsel %vm2370, %v2368, 0
        %v2378 = vsel %vm2370, %v2369, 0
        %vm2380 = vcmask 1045504
        %v2382 = vsel %vm2380, %v2366, 0
        %2384 = vmatpush.msra.mxu0 0.0
        %2385 = vmatpush.msra.mxu0 0.0
        %2386 = vmatpush.msra.mxu0 0.0
        %2387 = vmatpush.msra.mxu0 0.0
        %2388 = vmatpush.msra.mxu0 0.0
        %2389 = vmatpush.msra.mxu0 0.0
        %2390 = vmatpush.msra.mxu0 0.0
        %2391 = vmatpush.msra.mxu0 0.0
        %2392 = vmatpush.msra.mxu0 0.0
        %2393 = vmatpush.msra.mxu0 0.0
        %2394 = vmatpush.msra.mxu0 0.0
        %2395 = vmatpush.msra.mxu0 0.0
        %2396 = vmatpush.msra.mxu0 0.0
        %2397 = vmatpush.msra.mxu0 0.0
        %2398 = vmatpush.msra.mxu0 0.0
        %2399 = vmatpush.msra.mxu0 %v2382
        %2400 = vmatmul.f32.gmra.mxu0 %v2372
        %v2401 = vpop.f32.mrf.mxu0
        %v2402 = vadd.f32 0.0, %v2401
        %2403 = vmatmul.f32.gmra.mxu0 %v2375
        %v2404 = vpop.f32.mrf.mxu0
        %v2405 = vadd.f32 0.0, %v2404
        %2406 = vmatmul.f32.gmra.mxu0 %v2378
        %v2407 = vpop.f32.mrf.mxu0
        %v2408 = vadd.f32 0.0, %v2407
        %2409 = vdwg.mxu0
        %v2410 = vld [vmem:[%s14] sm:$0xff]
        %v2411 = vld [vmem:[%s14 + $0x8] sm:$0xff]
        %v2412 = vld [vmem:[%s14 + $0x10] sm:$0xff]
        %v2413 = vld [vmem:[%s14 + $0x18] sm:$0xff]
        %v2414 = vld [vmem:[%s14 + $0x20] sm:$0xff]
        %v2415 = vld [vmem:[%s14 + $0x28] sm:$0xff]
        %s2416 = scalar_lea.vmem %s13, 24
        %v2417 = vld [vmem:[%s2416] sm:$0xff]
        %v2418 = vld [vmem:[%s2416 + $0x8] sm:$0xff]
        %v2419 = vld [vmem:[%s2416 + $0x10] sm:$0x3]
        %v2421 = vsel %vm2370, %v2417, 0
        %v2424 = vsel %vm2370, %v2418, 0
        %v2427 = vsel %vm2370, %v2419, 0
        %2429 = vmatpush.msra.mxu0 0.0
        %2430 = vmatpush.msra.mxu0 0.0
        %2431 = vmatpush.msra.mxu0 0.0
        %2432 = vmatpush.msra.mxu0 0.0
        %2433 = vmatpush.msra.mxu0 0.0
        %2434 = vmatpush.msra.mxu0 0.0
        %2435 = vmatpush.msra.mxu0 0.0
        %2436 = vmatpush.msra.mxu0 0.0
        %2437 = vmatpush.msra.mxu0 0.0
        %2438 = vmatpush.msra.mxu0 0.0
        %2439 = vmatpush.msra.mxu0 0.0
        %2440 = vmatpush.msra.mxu0 0.0
        %2441 = vmatpush.msra.mxu0 0.0
        %2442 = vmatpush.msra.mxu0 0.0
        %2443 = vmatpush.msra.mxu0 0.0
        %2444 = vmatpush.msra.mxu0 %v2382
        %2445 = vmatmul.f32.gmra.mxu0 %v2421
        %v2446 = vpop.f32.mrf.mxu0
        %v2447 = vadd.f32 0.0, %v2446
        %2448 = vmatmul.f32.gmra.mxu0 %v2424
        %v2449 = vpop.f32.mrf.mxu0
        %v2450 = vadd.f32 0.0, %v2449
        %2451 = vmatmul.f32.gmra.mxu0 %v2427
        %v2452 = vpop.f32.mrf.mxu0
        %v2453 = vadd.f32 0.0, %v2452
        %2454 = vdwg.mxu0
        %s2455 = scalar_lea.vmem %s14, 48
        %v2456 = vld [vmem:[%s2455] sm:$0xff]
        %v2457 = vld [vmem:[%s2455 + $0x8] sm:$0xff]
        %v2458 = vld [vmem:[%s2455 + $0x10] sm:$0xff]
        %v2459 = vld [vmem:[%s2455 + $0x18] sm:$0xff]
        %v2460 = vld [vmem:[%s2455 + $0x20] sm:$0xff]
        %v2461 = vld [vmem:[%s2455 + $0x28] sm:$0xff]
        %vm2462 = vcmask 392192
        %v2464 = vsel %vm2462, %v2447, 0
        %v2467 = vsel %vm2462, %v2450, 0
        %v2470 = vsel %vm2462, %v2453, 0
        %2472 = vmatpush.msra.mxu0 0.0
        %2473 = vmatpush.msra.mxu0 0.0
        %2474 = vmatpush.msra.mxu0 0.0
        %2475 = vmatpush.msra.mxu0 0.0
        %2476 = vmatpush.msra.mxu0 0.0
        %2477 = vmatpush.msra.mxu0 0.0
        %2478 = vmatpush.msra.mxu0 0.0
        %2479 = vmatpush.msra.mxu0 0.0
        %2480 = vmatpush.msra.mxu0 0.0
        %2481 = vmatpush.msra.mxu0 0.0
        %2482 = vmatpush.msra.mxu0 %v2461
        %2483 = vmatpush.msra.mxu0 %v2460
        %2484 = vmatpush.msra.mxu0 %v2459
        %2485 = vmatpush.msra.mxu0 %v2458
        %2486 = vmatpush.msra.mxu0 %v2457
        %2487 = vmatpush.msra.mxu0 %v2456
        %2488 = vmatmul.f32.gmra.mxu0 %v2464
        %v2489 = vpop.f32.mrf.mxu0
        %v2490 = vadd.f32 0.0, %v2489
        %2491 = vmatmul.f32.gmra.mxu0 %v2467
        %v2492 = vpop.f32.mrf.mxu0
        %v2493 = vadd.f32 0.0, %v2492
        %2494 = vmatmul.f32.gmra.mxu0 %v2470
        %v2495 = vpop.f32.mrf.mxu0
        %v2496 = vadd.f32 0.0, %v2495
        %2497 = vdwg.mxu0
        %v2499 = vsel %vm2462, %v2402, 0
        %v2502 = vsel %vm2462, %v2405, 0
        %v2505 = vsel %vm2462, %v2408, 0
        %2507 = vmatpush.msra.mxu0 0.0
        %2508 = vmatpush.msra.mxu0 0.0
        %2509 = vmatpush.msra.mxu0 0.0
        %2510 = vmatpush.msra.mxu0 0.0
        %2511 = vmatpush.msra.mxu0 0.0
        %2512 = vmatpush.msra.mxu0 0.0
        %2513 = vmatpush.msra.mxu0 0.0
        %2514 = vmatpush.msra.mxu0 0.0
        %2515 = vmatpush.msra.mxu0 0.0
        %2516 = vmatpush.msra.mxu0 0.0
        %2517 = vmatpush.msra.mxu0 %v2415
        %2518 = vmatpush.msra.mxu0 %v2414
        %2519 = vmatpush.msra.mxu0 %v2413
        %2520 = vmatpush.msra.mxu0 %v2412
        %2521 = vmatpush.msra.mxu0 %v2411
        %2522 = vmatpush.msra.mxu0 %v2410
        %2523 = vmatmul.f32.gmra.mxu0 %v2499
        %v2524 = vpop.f32.mrf.mxu0
        %v2525 = vadd.f32 %v2490, %v2524
        %2526 = vmatmul.f32.gmra.mxu0 %v2502
        %v2527 = vpop.f32.mrf.mxu0
        %v2528 = vadd.f32 %v2493, %v2527
        %2529 = vmatmul.f32.gmra.mxu0 %v2505
        %v2530 = vpop.f32.mrf.mxu0
        %v2531 = vadd.f32 %v2496, %v2530
        %2532 = vdwg.mxu0
        %s2533 = scalar_lea.vmem %s13, 48
        %v2534 = vld [vmem:[%s2533] sm:$0xff]
        %v2535 = vld [vmem:[%s2533 + $0x8] sm:$0xff]
        %v2536 = vld [vmem:[%s2533 + $0x10] sm:$0x3]
        %v2538 = vsel %vm2370, %v2534, 0
        %v2541 = vsel %vm2370, %v2535, 0
        %v2544 = vsel %vm2370, %v2536, 0
        %2546 = vmatpush.msra.mxu0 0.0
        %2547 = vmatpush.msra.mxu0 0.0
        %2548 = vmatpush.msra.mxu0 0.0
        %2549 = vmatpush.msra.mxu0 0.0
        %2550 = vmatpush.msra.mxu0 0.0
        %2551 = vmatpush.msra.mxu0 0.0
        %2552 = vmatpush.msra.mxu0 0.0
        %2553 = vmatpush.msra.mxu0 0.0
        %2554 = vmatpush.msra.mxu0 0.0
        %2555 = vmatpush.msra.mxu0 0.0
        %2556 = vmatpush.msra.mxu0 0.0
        %2557 = vmatpush.msra.mxu0 0.0
        %2558 = vmatpush.msra.mxu0 0.0
        %2559 = vmatpush.msra.mxu0 0.0
        %2560 = vmatpush.msra.mxu0 0.0
        %2561 = vmatpush.msra.mxu0 %v2382
        %2562 = vmatmul.f32.gmra.mxu0 %v2538
        %v2563 = vpop.f32.mrf.mxu0
        %v2564 = vadd.f32 0.0, %v2563
        %2565 = vmatmul.f32.gmra.mxu0 %v2541
        %v2566 = vpop.f32.mrf.mxu0
        %v2567 = vadd.f32 0.0, %v2566
        %2568 = vmatmul.f32.gmra.mxu0 %v2544
        %v2569 = vpop.f32.mrf.mxu0
        %v2570 = vadd.f32 0.0, %v2569
        %2571 = vdwg.mxu0
        %s2572 = scalar_lea.vmem %s14, 96
        %v2573 = vld [vmem:[%s2572] sm:$0xff]
        %v2574 = vld [vmem:[%s2572 + $0x8] sm:$0xff]
        %v2575 = vld [vmem:[%s2572 + $0x10] sm:$0xff]
        %v2576 = vld [vmem:[%s2572 + $0x18] sm:$0xff]
        %v2577 = vld [vmem:[%s2572 + $0x20] sm:$0xff]
        %v2578 = vld [vmem:[%s2572 + $0x28] sm:$0xff]
        %v2580 = vsel %vm2462, %v2564, 0
        %v2583 = vsel %vm2462, %v2567, 0
        %v2586 = vsel %vm2462, %v2570, 0
        %2588 = vmatpush.msra.mxu0 0.0
        %2589 = vmatpush.msra.mxu0 0.0
        %2590 = vmatpush.msra.mxu0 0.0
        %2591 = vmatpush.msra.mxu0 0.0
        %2592 = vmatpush.msra.mxu0 0.0
        %2593 = vmatpush.msra.mxu0 0.0
        %2594 = vmatpush.msra.mxu0 0.0
        %2595 = vmatpush.msra.mxu0 0.0
        %2596 = vmatpush.msra.mxu0 0.0
        %2597 = vmatpush.msra.mxu0 0.0
        %2598 = vmatpush.msra.mxu0 %v2578
        %2599 = vmatpush.msra.mxu0 %v2577
        %2600 = vmatpush.msra.mxu0 %v2576
        %2601 = vmatpush.msra.mxu0 %v2575
        %2602 = vmatpush.msra.mxu0 %v2574
        %2603 = vmatpush.msra.mxu0 %v2573
        %2604 = vmatmul.f32.gmra.mxu0 %v2580
        %v2605 = vpop.f32.mrf.mxu0
        %v2606 = vadd.f32 0.0, %v2605
        %2607 = vmatmul.f32.gmra.mxu0 %v2583
        %v2608 = vpop.f32.mrf.mxu0
        %v2609 = vadd.f32 0.0, %v2608
        %2610 = vmatmul.f32.gmra.mxu0 %v2586
        %v2611 = vpop.f32.mrf.mxu0
        %v2612 = vadd.f32 0.0, %v2611
        %2613 = vdwg.mxu0
        %v2614 = vadd.f32 %v2525, %v2606
        %v2615 = vadd.f32 %v2528, %v2609
        %v2616 = vadd.f32 %v2531, %v2612
        %s2617 = scalar_lea.vmem %s13, 72
        %v2618 = vld [vmem:[%s2617] sm:$0xff]
        %v2619 = vld [vmem:[%s2617 + $0x8] sm:$0xff]
        %v2620 = vld [vmem:[%s2617 + $0x10] sm:$0x3]
        %v2622 = vsel %vm2370, %v2618, 0
        %v2625 = vsel %vm2370, %v2619, 0
        %v2628 = vsel %vm2370, %v2620, 0
        %2630 = vmatpush.msra.mxu0 0.0
        %2631 = vmatpush.msra.mxu0 0.0
        %2632 = vmatpush.msra.mxu0 0.0
        %2633 = vmatpush.msra.mxu0 0.0
        %2634 = vmatpush.msra.mxu0 0.0
        %2635 = vmatpush.msra.mxu0 0.0
        %2636 = vmatpush.msra.mxu0 0.0
        %2637 = vmatpush.msra.mxu0 0.0
        %2638 = vmatpush.msra.mxu0 0.0
        %2639 = vmatpush.msra.mxu0 0.0
        %2640 = vmatpush.msra.mxu0 0.0
        %2641 = vmatpush.msra.mxu0 0.0
        %2642 = vmatpush.msra.mxu0 0.0
        %2643 = vmatpush.msra.mxu0 0.0
        %2644 = vmatpush.msra.mxu0 0.0
        %2645 = vmatpush.msra.mxu0 %v2382
        %2646 = vmatmul.f32.gmra.mxu0 %v2622
        %v2647 = vpop.f32.mrf.mxu0
        %v2648 = vadd.f32 0.0, %v2647
        %2649 = vmatmul.f32.gmra.mxu0 %v2625
        %v2650 = vpop.f32.mrf.mxu0
        %v2651 = vadd.f32 0.0, %v2650
        %2652 = vmatmul.f32.gmra.mxu0 %v2628
        %v2653 = vpop.f32.mrf.mxu0
        %v2654 = vadd.f32 0.0, %v2653
        %2655 = vdwg.mxu0
        %s2656 = scalar_lea.vmem %s14, 144
        %v2657 = vld [vmem:[%s2656] sm:$0xff]
        %v2658 = vld [vmem:[%s2656 + $0x8] sm:$0xff]
        %v2659 = vld [vmem:[%s2656 + $0x10] sm:$0xff]
        %v2660 = vld [vmem:[%s2656 + $0x18] sm:$0xff]
        %v2661 = vld [vmem:[%s2656 + $0x20] sm:$0xff]
        %v2662 = vld [vmem:[%s2656 + $0x28] sm:$0xff]
        %v2664 = vsel %vm2462, %v2648, 0
        %v2667 = vsel %vm2462, %v2651, 0
        %v2670 = vsel %vm2462, %v2654, 0
        %2672 = vmatpush.msra.mxu0 0.0
        %2673 = vmatpush.msra.mxu0 0.0
        %2674 = vmatpush.msra.mxu0 0.0
        %2675 = vmatpush.msra.mxu0 0.0
        %2676 = vmatpush.msra.mxu0 0.0
        %2677 = vmatpush.msra.mxu0 0.0
        %2678 = vmatpush.msra.mxu0 0.0
        %2679 = vmatpush.msra.mxu0 0.0
        %2680 = vmatpush.msra.mxu0 0.0
        %2681 = vmatpush.msra.mxu0 0.0
        %2682 = vmatpush.msra.mxu0 %v2662
        %2683 = vmatpush.msra.mxu0 %v2661
        %2684 = vmatpush.msra.mxu0 %v2660
        %2685 = vmatpush.msra.mxu0 %v2659
        %2686 = vmatpush.msra.mxu0 %v2658
        %2687 = vmatpush.msra.mxu0 %v2657
        %2688 = vmatmul.f32.gmra.mxu0 %v2664
        %v2689 = vpop.f32.mrf.mxu0
        %v2690 = vadd.f32 0.0, %v2689
        %2691 = vmatmul.f32.gmra.mxu0 %v2667
        %v2692 = vpop.f32.mrf.mxu0
        %v2693 = vadd.f32 0.0, %v2692
        %2694 = vmatmul.f32.gmra.mxu0 %v2670
        %v2695 = vpop.f32.mrf.mxu0
        %v2696 = vadd.f32 0.0, %v2695
        %2697 = vdwg.mxu0
        %v2698 = vadd.f32 %v2614, %v2690
        %v2699 = vadd.f32 %v2615, %v2693
        %v2700 = vadd.f32 %v2616, %v2696
        %s2701 = scalar_lea.vmem %s13, 96
        %v2702 = vld [vmem:[%s2701] sm:$0xff]
        %v2703 = vld [vmem:[%s2701 + $0x8] sm:$0xff]
        %v2704 = vld [vmem:[%s2701 + $0x10] sm:$0x3]
        %v2706 = vsel %vm2370, %v2702, 0
        %v2709 = vsel %vm2370, %v2703, 0
        %v2712 = vsel %vm2370, %v2704, 0
        %2714 = vmatpush.msra.mxu0 0.0
        %2715 = vmatpush.msra.mxu0 0.0
        %2716 = vmatpush.msra.mxu0 0.0
        %2717 = vmatpush.msra.mxu0 0.0
        %2718 = vmatpush.msra.mxu0 0.0
        %2719 = vmatpush.msra.mxu0 0.0
        %2720 = vmatpush.msra.mxu0 0.0
        %2721 = vmatpush.msra.mxu0 0.0
        %2722 = vmatpush.msra.mxu0 0.0
        %2723 = vmatpush.msra.mxu0 0.0
        %2724 = vmatpush.msra.mxu0 0.0
        %2725 = vmatpush.msra.mxu0 0.0
        %2726 = vmatpush.msra.mxu0 0.0
        %2727 = vmatpush.msra.mxu0 0.0
        %2728 = vmatpush.msra.mxu0 0.0
        %2729 = vmatpush.msra.mxu0 %v2382
        %2730 = vmatmul.f32.gmra.mxu0 %v2706
        %v2731 = vpop.f32.mrf.mxu0
        %v2732 = vadd.f32 0.0, %v2731
        %2733 = vmatmul.f32.gmra.mxu0 %v2709
        %v2734 = vpop.f32.mrf.mxu0
        %v2735 = vadd.f32 0.0, %v2734
        %2736 = vmatmul.f32.gmra.mxu0 %v2712
        %v2737 = vpop.f32.mrf.mxu0
        %v2738 = vadd.f32 0.0, %v2737
        %2739 = vdwg.mxu0
        %s2740 = scalar_lea.vmem %s14, 192
        %v2741 = vld [vmem:[%s2740] sm:$0xff]
        %v2742 = vld [vmem:[%s2740 + $0x8] sm:$0xff]
        %v2743 = vld [vmem:[%s2740 + $0x10] sm:$0xff]
        %v2744 = vld [vmem:[%s2740 + $0x18] sm:$0xff]
        %v2745 = vld [vmem:[%s2740 + $0x20] sm:$0xff]
        %v2746 = vld [vmem:[%s2740 + $0x28] sm:$0xff]
        %v2748 = vsel %vm2462, %v2732, 0
        %v2751 = vsel %vm2462, %v2735, 0
        %v2754 = vsel %vm2462, %v2738, 0
        %2756 = vmatpush.msra.mxu0 0.0
        %2757 = vmatpush.msra.mxu0 0.0
        %2758 = vmatpush.msra.mxu0 0.0
        %2759 = vmatpush.msra.mxu0 0.0
        %2760 = vmatpush.msra.mxu0 0.0
        %2761 = vmatpush.msra.mxu0 0.0
        %2762 = vmatpush.msra.mxu0 0.0
        %2763 = vmatpush.msra.mxu0 0.0
        %2764 = vmatpush.msra.mxu0 0.0
        %2765 = vmatpush.msra.mxu0 0.0
        %2766 = vmatpush.msra.mxu0 %v2746
        %2767 = vmatpush.msra.mxu0 %v2745
        %2768 = vmatpush.msra.mxu0 %v2744
        %2769 = vmatpush.msra.mxu0 %v2743
        %2770 = vmatpush.msra.mxu0 %v2742
        %2771 = vmatpush.msra.mxu0 %v2741
        %2772 = vmatmul.f32.gmra.mxu0 %v2748
        %v2773 = vpop.f32.mrf.mxu0
        %v2774 = vadd.f32 0.0, %v2773
        %2775 = vmatmul.f32.gmra.mxu0 %v2751
        %v2776 = vpop.f32.mrf.mxu0
        %v2777 = vadd.f32 0.0, %v2776
        %2778 = vmatmul.f32.gmra.mxu0 %v2754
        %v2779 = vpop.f32.mrf.mxu0
        %v2780 = vadd.f32 0.0, %v2779
        %2781 = vdwg.mxu0
        %v2782 = vadd.f32 %v2698, %v2774
        %v2783 = vadd.f32 %v2699, %v2777
        %v2784 = vadd.f32 %v2700, %v2780
        %v2785 = vld [vmem:[%s15] sm:$0x1]
        %v2787 = vperm.slane %v2785, 0
        %v2789 = vadd.f32 %v2782, %v2787
        %v2790 = vadd.f32 %v2783, %v2787
        %v2791 = vadd.f32 %v2784, %v2787
        %v2792 = vtanh.pop %v2789
        %v2793 = vtanh.pop %v2790
        %v2794 = vtanh.pop %v2791
        %2795 = vst.msk [vmem:[%s619] sm:$0xff] %vm2462, %v2792
        %2796 = vst.msk [vmem:[%s619 + $0x8] sm:$0xff] %vm2462, %v2793
        %vm2797 = vcmask 386048
        %2798 = vst.msk [vmem:[%s619 + $0x10] sm:$0x3] %vm2797, %v2794
        %p2799 = scmp.lt.s32.totalorder %s31, 1
        %s2800 = scalar_select %p2799, %s31, 1
        %s2801 = smul.addr %s2800, 3
        %s2802 = smul.addr %s2801, 8
        %s2803 = scalar_lea.vmem %s16, %s2802
        // Predicated region
        $region109: #{forward.1} parent=83 // pred_check
          %p2804 = pneg %p390
        $region110: #{forward.1} parent=83 // pred_check_branch
          %2806 = sbr.rel (%p2804) target = $region112
        $region111: #{forward.1} parent=83 // pred_region
          _
        $region112: #{forward.1} parent=83 // pred_fallthru
          _
      $region84: #{forward.1} parent=5 // pred_fallthru
        _
      %p2807 = scmp.le.s32.totalorder 2, %s26
      // Predicated region
      $region113: #{forward.1} parent=5 // pred_check
        %p2808 = pneg %p2807
      $region114: #{forward.1} parent=5 // pred_check_branch
        %2810 = sbr.rel (%p2808) target = $region116
      $region115: #{forward.1} parent=5 // pred_region
        %s2811 = ssub.s32 %s26, 2
        // Predicated region
        $region117: #{forward.1} parent=115 // pred_check
          %p2812 = pneg %p396
        $region118: #{forward.1} parent=115 // pred_check_branch
          %2814 = sbr.rel (%p2812) target = $region120
        $region119: #{forward.1} parent=115 // pred_region
          %p2815 = scmp.lt.s32.totalorder %s32, 1
          %s2816 = scalar_select %p2815, %s32, 1
          %s2817 = smul.addr %s2816, 3
          %s2818 = smul.addr %s2817, 8
          %s2819 = scalar_lea.vmem %s16, %s2818
        $region120: #{forward.1} parent=115 // pred_fallthru
          _
      $region116: #{forward.1} parent=5 // pred_fallthru
        _
    $region6: #{forward.1} parent=1 // loop_footer
      %s30 = sadd.s32 1, %s26
    $region7: #{forward.1} parent=1 // loop_footer_branch
      %25 = sbr.rel target = $region3
    $region8: #{forward.1} parent=1 // loop_exit
      _
    %2820 = vsyncpa [#allocation3], 1
    %s2821 = scalar_lea.sflag [#allocation3], 1
    %2822 = vsyncpa %s2821, 1
    %2823 = vsyncpa [#allocation5], 1
    %2824 = vsyncpa [#allocation8], 1
    %2825 = vsyncpa [#allocation11], 1

</llo_original>
